<compile_context>
chip_gen: v7x
topology: tpu7x:2x2x1
jax: 0.10.0
libtpu: 0.0.40
codegen_flags: <defaults>
</compile_context>

<pallas_src>
import functools

import jax
import jax.numpy as jnp
from jax.experimental import pallas as pl
from jax.experimental.pallas import tpu as pltpu

CLS_NUM = 3
BIG_NEG = 1.0e12


# ----------------------------------------------------------------------------
# Fused kernel: PointerMatrix (LinearWithAct x2 + RoPE + stacked Biaffine)
#               + bit-mask + 1/sqrt(biaffine_size) scaling
#               + multilabel categorical CE per (batch, head).
#               One batch element per grid step.
# ----------------------------------------------------------------------------
def _pointer_loss_kernel(x_ref, maskf_ref, labels_ref, wbig_ref, bbig_ref,
                         cos_ref, sins_ref, acat_ref, vcat_ref, u_ref, c_ref,
                         out_ref, loss_ref, *, biaffine_size):
    D = biaffine_size
    S = x_ref.shape[1]
    inv_sqrt2 = 0.7071067811865476
    inv_scale = 1.0 / (float(D) ** 0.5)

    x = x_ref[0]                                            # (S, H) bf16

    # One MXU matmul for [h_raw | h_perm_raw | t_raw | t_perm_raw] (f32 acc).
    z = jnp.dot(x, wbig_ref[...], preferred_element_type=jnp.float32)
    z = z + bbig_ref[...]
    # LinearWithAct: exact GELU (erf).
    # TODO(synk): dropout(p=0.3) is treated as identity (eval-mode forward).
    g = 0.5 * z * (1.0 + jax.lax.erf(z * inv_sqrt2))        # (S, 4D) f32

    h, h2p = g[:, :D], g[:, D:2 * D]
    t, t2p = g[:, 2 * D:3 * D], g[:, 3 * D:]

    # RoPE exactly as PointerMatrix.sinusoidal_position_embedding:
    #   h2 = cat([-h[..., 1::2], h[..., ::2]], -1); h = h*cos_pos + h2*sin_pos.
    # h2p already holds GELU of the column-permuted pre-activation; the sign of
    # the permutation is folded into sins (= sin_pos * sign), so this is exact.
    cos = cos_ref[...]
    sins = sins_ref[...]
    h_rope = h * cos + h2p * sins
    t_rope = t * cos + t2p * sins

    h_bf = h_rope.astype(jnp.bfloat16)
    t_bf = t_rope.astype(jnp.bfloat16)

    # Stacked biaffine left product for all heads: (S, D) @ (D, 3D), bf16 MXU.
    ha = jnp.dot(h_bf, acat_ref[...], preferred_element_type=jnp.float32)
    # Fold v_o . t_j bias into the main matmul: (HA_o + 1 v_o^T) @ t^T.
    ha = ha + vcat_ref[...]
    ha_bf = ha.astype(jnp.bfloat16)

    # Mask / big-neg epilogue, hoisted out of the per-head loop.
    # bit_mask[b,0,i,j] depends only on mask[b,j] (matches build_bit_mask).
    mrow = maskf_ref[0]                                     # (1, S)
    mask_bc = jnp.broadcast_to(mrow, (S, S))
    neg_bc = jnp.broadcast_to((1.0 - mrow) * (BIG_NEG * inv_scale), (S, S))

    def lse_with_zero(vals):
        # logsumexp over all S*S elements plus an appended zero logit,
        # staged as lane reduce -> sublane reduce (stays 2D throughout).
        m = jnp.max(vals, axis=-1, keepdims=True)                   # (S, 1)
        m = jnp.max(m, axis=0, keepdims=True)                       # (1, 1)
        m = jnp.maximum(m, 0.0)                                     # zero logit
        se = jnp.sum(jnp.exp(vals - m), axis=-1, keepdims=True)     # (S, 1)
        se = jnp.sum(se, axis=0, keepdims=True) + jnp.exp(-m)       # (1, 1)
        return m + jnp.log(se)                                      # (1, 1)

    for o in range(CLS_NUM):                                # static unroll
        # s'[i,j] = (h A'_o t^T + v'_o.t_j) with A',v' pre-scaled by 1/sqrt(D)
        s = jax.lax.dot_general(
            ha_bf[:, o * D:(o + 1) * D], t_bf,
            dimension_numbers=(((1,), (1,)), ((), ())),
            preferred_element_type=jnp.float32)             # (S, S)
        # + h_i . u'_o + c'_o  (VPU multiply + lane reduce, no tiny matmul)
        hu = jnp.sum(h_rope * u_ref[o], axis=-1, keepdims=True) + c_ref[o]
        s = s + hu
        # logits = (s*m - (1-m)*1e12)/sqrt(D); scale already folded into s.
        logit = s * mask_bc - neg_bc
        out_ref[0, o] = logit

        # Multilabel categorical cross-entropy for this (batch, head) row,
        # computed from the VMEM-resident logits (no HBM re-read).
        yt = labels_ref[0, o].astype(jnp.float32)           # (S, S)
        yp = (1.0 - 2.0 * yt) * logit
        y_neg = yp - yt * BIG_NEG
        y_pos = yp - (1.0 - yt) * BIG_NEG
        loss_ref[0, o] = lse_with_zero(y_neg) + lse_with_zero(y_pos)


def pointer_logits_and_loss(hidden, mask, labels_i8, consts, biaffine_size):
    B, S, H = hidden.shape
    D = biaffine_size
    hidden_bf = hidden.astype(jnp.bfloat16)
    maskf = (mask > 0).astype(jnp.float32)[:, None, :]      # (B, 1, S)
    kernel = functools.partial(_pointer_loss_kernel, biaffine_size=D)
    logits, loss_rows = pl.pallas_call(
        kernel,
        out_shape=(jax.ShapeDtypeStruct((B, CLS_NUM, S, S), jnp.float32),
                   jax.ShapeDtypeStruct((B, CLS_NUM, 1, 1), jnp.float32)),
        grid=(B,),
        in_specs=[
            pl.BlockSpec((1, S, H), lambda b: (b, 0, 0)),             # hidden (bf16)
            pl.BlockSpec((1, 1, S), lambda b: (b, 0, 0)),             # mask row
            pl.BlockSpec((1, CLS_NUM, S, S), lambda b: (b, 0, 0, 0)), # labels int8
            pl.BlockSpec((H, 4 * D), lambda b: (0, 0)),               # [Wh|WhP|Wt|WtP] bf16
            pl.BlockSpec((1, 4 * D), lambda b: (0, 0)),               # fused bias f32
            pl.BlockSpec((S, D), lambda b: (0, 0)),                   # cos_pos
            pl.BlockSpec((S, D), lambda b: (0, 0)),                   # sin_pos * sign
            pl.BlockSpec((D, 3 * D), lambda b: (0, 0)),               # stacked A' bf16
            pl.BlockSpec((1, 3 * D), lambda b: (0, 0)),               # stacked v' f32
            pl.BlockSpec((CLS_NUM, 1, D), lambda b: (0, 0, 0)),       # u' f32
            pl.BlockSpec((CLS_NUM, 1, 1), lambda b: (0, 0, 0)),       # c' f32
        ],
        out_specs=(pl.BlockSpec((1, CLS_NUM, S, S), lambda b: (b, 0, 0, 0)),
                   pl.BlockSpec((1, CLS_NUM, 1, 1), lambda b: (b, 0, 0, 0))),
        compiler_params=pltpu.CompilerParams(
            dimension_semantics=("parallel",),
            vmem_limit_bytes=32 * 1024 * 1024),
    )(hidden_bf, maskf, labels_i8, consts["w_big"], consts["b_big"],
      consts["cos"], consts["sin_signed"], consts["a_cat"],
      consts["v_cat"], consts["u"], consts["c"])
    return logits, loss_rows


# ----------------------------------------------------------------------------
# Host-side constant folding: RoPE tables, permuted/stacked/pre-scaled weights.
# ----------------------------------------------------------------------------
def prepare_pointer_constants(params, S, D):
    half = D // 2
    # Signed permutation of the "cat" rotation: h2[:, j] = sign[j] * h[:, perm[j]].
    perm = jnp.concatenate([2 * jnp.arange(half) + 1, 2 * jnp.arange(half)])
    sign = jnp.concatenate([-jnp.ones((half,), jnp.float32),
                            jnp.ones((half,), jnp.float32)])

    pos = jnp.arange(S, dtype=jnp.float32)[:, None]         # (S, 1)
    idx = jnp.arange(half, dtype=jnp.float32)
    inv_freq = jnp.power(10000.0, -2.0 * idx / D)           # (D/2,)
    ang = pos * inv_freq                                    # (S, D/2)
    cos_pos = jnp.repeat(jnp.cos(ang), 2, axis=-1)          # [c0,c0,c1,c1,...]
    sin_pos = jnp.repeat(jnp.sin(ang), 2, axis=-1)          # [s0,s0,s1,s1,...]
    sin_signed = sin_pos * sign[None, :]                    # fold rotation sign

    Wh, bh, Wt, bt = params["Wh"], params["bh"], params["Wt"], params["bt"]
    # GELU is elementwise, so the permutation commutes: one fused projection.
    w_big = jnp.concatenate([Wh, Wh[:, perm], Wt, Wt[:, perm]], axis=1)  # (H, 4D)
    b_big = jnp.concatenate([bh, bh[:, perm], bt, bt[:, perm]], axis=1)  # (1, 4D)

    inv_scale = 1.0 / (float(D) ** 0.5)                     # fold logits/sqrt(D)
    A = params["A"] * inv_scale                             # (3, D, D)
    u = params["u"] * inv_scale                             # (3, 1, D)
    v = params["v"] * inv_scale                             # (3, 1, D)
    c = params["c"] * inv_scale                             # (3, 1, 1)
    a_cat = jnp.concatenate([A[0], A[1], A[2]], axis=1)     # (D, 3D)
    v_cat = jnp.concatenate([v[0], v[1], v[2]], axis=-1)    # (1, 3D)

    return {
        "w_big": w_big.astype(jnp.bfloat16),
        "b_big": b_big.astype(jnp.float32),
        "cos": cos_pos.astype(jnp.float32),
        "sin_signed": sin_signed.astype(jnp.float32),
        "a_cat": a_cat.astype(jnp.bfloat16),
        "v_cat": v_cat.astype(jnp.float32),
        "u": u.astype(jnp.float32),
        "c": c.astype(jnp.float32),
    }


def init_params(key, vocab, H, D):
    ks = jax.random.split(key, 7)
    xavier = (2.0 / float(2 * (D + 1))) ** 0.5              # xavier_normal_ gain=1
    w_bi = xavier * jax.random.normal(ks[0], (CLS_NUM, D + 1, D + 1), jnp.float32)
    return {
        "emb": 0.02 * jax.random.normal(ks[1], (vocab, H), jnp.float32),
        "W_enc": jax.random.normal(ks[2], (H, H), jnp.float32) / H ** 0.5,
        "b_enc": jnp.zeros((1, H), jnp.float32),
        "Wh": jax.random.normal(ks[3], (H, D), jnp.float32) / H ** 0.5,
        "bh": 0.01 * jax.random.normal(ks[4], (1, D), jnp.float32),
        "Wt": jax.random.normal(ks[5], (H, D), jnp.float32) / H ** 0.5,
        "bt": 0.01 * jax.random.normal(ks[6], (1, D), jnp.float32),
        # Biaffine (bias_x=bias_y=True) decomposition of W (3, D+1, D+1):
        "A": w_bi[:, :D, :D],
        "u": w_bi[:, :D, D].reshape(CLS_NUM, 1, D),
        "v": w_bi[:, D, :D].reshape(CLS_NUM, 1, D),
        "c": w_bi[:, D, D].reshape(CLS_NUM, 1, 1),
    }


def forward(input_ids, mask, labels, params, pointer_consts, biaffine_size):
    # TODO(synk): AutoModel.from_pretrained (HF BERT encoder) cannot be loaded
    # in-script; replaced with a deterministic embedding + tanh(linear) stand-in
    # producing last_hidden_state of shape (B, S, H).
    hidden = jnp.tanh(params["emb"][input_ids] @ params["W_enc"] + params["b_enc"])
    B, S = input_ids.shape
    if labels is None:
        labels_i8 = jnp.zeros((B, CLS_NUM, S, S), jnp.int8)
    else:
        labels_i8 = labels.astype(jnp.int8)
    logits, loss_rows = pointer_logits_and_loss(
        hidden, mask, labels_i8, pointer_consts, biaffine_size)
    results = {"logits": logits}
    if labels is not None:
        # mean over the bs*cls_num per-row losses, as in the PyTorch module.
        results["loss"] = jnp.mean(loss_rows)
    # TODO(synk): decode() (Python graph-walk over predicted spans) is host-side
    # post-processing with no Pallas equivalent and is not implemented.
    return results


if __name__ == "__main__":
    # Small but lane-aligned synthetic config (last dims multiples of 128).
    B, S, H, D, VOCAB = 2, 128, 128, 128, 128
    key = jax.random.PRNGKey(0)
    k_ids, k_lab, k_par = jax.random.split(key, 3)

    params = init_params(k_par, VOCAB, H, D)
    consts = prepare_pointer_constants(params, S, D)

    input_ids = jax.random.randint(k_ids, (B, S), 0, VOCAB, dtype=jnp.int32)
    mask = jnp.ones((B, S), jnp.int32).at[1, S - 16:].set(0)   # padding tokens
    labels = jax.random.bernoulli(k_lab, 0.05, (B, CLS_NUM, S, S)).astype(jnp.float32)
    labels = labels * (mask > 0).astype(jnp.float32)[:, None, None, :]

    results = forward(input_ids, mask, labels, params, consts, D)
    jax.block_until_ready((results["logits"], results["loss"]))
    assert results["logits"].shape == (B, CLS_NUM, S, S)
    assert bool(jnp.isfinite(results["loss"]))
    print("KERNEL_OK")
</pallas_src>

<mosaic_0001>
module attributes {stable_mosaic.version = 11 : i64} {
  func.func @_pointer_loss_kernel(%arg0: i32, %arg1: memref<1x128x128xbf16, #tpu.memory_space<vmem>>, %arg2: memref<1x1x128xf32, #tpu.memory_space<vmem>>, %arg3: memref<1x3x128x128xi8, #tpu.memory_space<vmem>>, %arg4: memref<128x512xbf16, #tpu.memory_space<vmem>>, %arg5: memref<1x512xf32, #tpu.memory_space<vmem>>, %arg6: memref<128x128xf32, #tpu.memory_space<vmem>>, %arg7: memref<128x128xf32, #tpu.memory_space<vmem>>, %arg8: memref<128x384xbf16, #tpu.memory_space<vmem>>, %arg9: memref<1x384xf32, #tpu.memory_space<vmem>>, %arg10: memref<3x1x128xf32, #tpu.memory_space<vmem>>, %arg11: memref<3x1x1xf32, #tpu.memory_space<vmem>>, %arg12: memref<1x3x128x128xf32, #tpu.memory_space<vmem>>, %arg13: memref<1x3x1x1xf32, #tpu.memory_space<vmem>>) attributes {dimension_semantics = [#tpu.dimension_semantics<parallel>], iteration_bounds = array<i64: 2>, scalar_prefetch = 0 : i64, scratch_operands = 0 : i64, tpu.core_type = #tpu.core_type<tc>, window_params = [{transform_indices = @transform_0, window_bounds = array<i64: 1, 128, 128>}, {transform_indices = @transform_1, window_bounds = array<i64: 1, 1, 128>}, {transform_indices = @transform_2, window_bounds = array<i64: 1, 3, 128, 128>}, {pipeline_mode = #tpu.pipeline_mode<synchronous>, transform_indices = @transform_3, window_bounds = array<i64: 128, 512>}, {pipeline_mode = #tpu.pipeline_mode<synchronous>, transform_indices = @transform_4, window_bounds = array<i64: 1, 512>}, {pipeline_mode = #tpu.pipeline_mode<synchronous>, transform_indices = @transform_5, window_bounds = array<i64: 128, 128>}, {pipeline_mode = #tpu.pipeline_mode<synchronous>, transform_indices = @transform_6, window_bounds = array<i64: 128, 128>}, {pipeline_mode = #tpu.pipeline_mode<synchronous>, transform_indices = @transform_7, window_bounds = array<i64: 128, 384>}, {pipeline_mode = #tpu.pipeline_mode<synchronous>, transform_indices = @transform_8, window_bounds = array<i64: 1, 384>}, {pipeline_mode = #tpu.pipeline_mode<synchronous>, transform_indices = @transform_9, window_bounds = array<i64: 3, 1, 128>}, {pipeline_mode = #tpu.pipeline_mode<synchronous>, transform_indices = @transform_10, window_bounds = array<i64: 3, 1, 1>}, {transform_indices = @transform_11, window_bounds = array<i64: 1, 3, 128, 128>}, {transform_indices = @transform_12, window_bounds = array<i64: 1, 3, 1, 1>}]} {
    %c0 = arith.constant 0 : index
    %c0_0 = arith.constant 0 : index
    %c0_1 = arith.constant 0 : index
    %0 = vector.load %arg1[%c0, %c0_0, %c0_1] : memref<1x128x128xbf16, #tpu.memory_space<vmem>>, vector<1x128x128xbf16>
    %1 = vector.shape_cast %0 : vector<1x128x128xbf16> to vector<128x128xbf16>
    %c0_2 = arith.constant 0 : index
    %c0_3 = arith.constant 0 : index
    %2 = vector.load %arg4[%c0_2, %c0_3] : memref<128x512xbf16, #tpu.memory_space<vmem>>, vector<128x512xbf16>
    %cst = arith.constant dense<0.000000e+00> : vector<128x512xf32>
    %3 = tpu.matmul %1, %2, %cst {dimension_numbers = #tpu.dot_dimension_numbers<[1], [0], [0], [1], [0, 0, 1, 1], [], []>} : vector<128x128xbf16>, vector<128x512xbf16>, vector<128x512xf32> -> vector<128x512xf32>
    %c0_4 = arith.constant 0 : index
    %c0_5 = arith.constant 0 : index
    %4 = vector.load %arg5[%c0_4, %c0_5] : memref<1x512xf32, #tpu.memory_space<vmem>>, vector<1x512xf32>
    %5 = vector.broadcast %4 : vector<1x512xf32> to vector<128x512xf32>
    %6 = arith.addf %3, %5 : vector<128x512xf32>
    %cst_6 = arith.constant 5.000000e-01 : f32
    %7 = vector.broadcast %cst_6 : f32 to vector<128x512xf32>
    %8 = arith.mulf %7, %6 : vector<128x512xf32>
    %cst_7 = arith.constant 0.707106769 : f32
    %9 = vector.broadcast %cst_7 : f32 to vector<128x512xf32>
    %10 = arith.mulf %6, %9 : vector<128x512xf32>
    %11 = math.erf %10 : vector<128x512xf32>
    %cst_8 = arith.constant 1.000000e+00 : f32
    %12 = vector.broadcast %cst_8 : f32 to vector<128x512xf32>
    %13 = arith.addf %12, %11 : vector<128x512xf32>
    %14 = arith.mulf %8, %13 : vector<128x512xf32>
    %15 = vector.extract_strided_slice %14 {offsets = [0, 0], sizes = [128, 128], strides = [1, 1]} : vector<128x512xf32> to vector<128x128xf32>
    %16 = vector.extract_strided_slice %14 {offsets = [0, 128], sizes = [128, 128], strides = [1, 1]} : vector<128x512xf32> to vector<128x128xf32>
    %17 = vector.extract_strided_slice %14 {offsets = [0, 256], sizes = [128, 128], strides = [1, 1]} : vector<128x512xf32> to vector<128x128xf32>
    %18 = vector.extract_strided_slice %14 {offsets = [0, 384], sizes = [128, 128], strides = [1, 1]} : vector<128x512xf32> to vector<128x128xf32>
    %c0_9 = arith.constant 0 : index
    %c0_10 = arith.constant 0 : index
    %19 = vector.load %arg6[%c0_9, %c0_10] : memref<128x128xf32, #tpu.memory_space<vmem>>, vector<128x128xf32>
    %c0_11 = arith.constant 0 : index
    %c0_12 = arith.constant 0 : index
    %20 = vector.load %arg7[%c0_11, %c0_12] : memref<128x128xf32, #tpu.memory_space<vmem>>, vector<128x128xf32>
    %21 = arith.mulf %15, %19 : vector<128x128xf32>
    %22 = arith.mulf %16, %20 : vector<128x128xf32>
    %23 = arith.addf %21, %22 : vector<128x128xf32>
    %24 = arith.mulf %17, %19 : vector<128x128xf32>
    %25 = arith.mulf %18, %20 : vector<128x128xf32>
    %26 = arith.addf %24, %25 : vector<128x128xf32>
    %27 = arith.truncf %23 : vector<128x128xf32> to vector<128x128xbf16>
    %28 = arith.truncf %26 : vector<128x128xf32> to vector<128x128xbf16>
    %c0_13 = arith.constant 0 : index
    %c0_14 = arith.constant 0 : index
    %29 = vector.load %arg8[%c0_13, %c0_14] : memref<128x384xbf16, #tpu.memory_space<vmem>>, vector<128x384xbf16>
    %cst_15 = arith.constant dense<0.000000e+00> : vector<128x384xf32>
    %30 = tpu.matmul %27, %29, %cst_15 {dimension_numbers = #tpu.dot_dimension_numbers<[1], [0], [0], [1], [0, 0, 1, 1], [], []>} : vector<128x128xbf16>, vector<128x384xbf16>, vector<128x384xf32> -> vector<128x384xf32>
    %c0_16 = arith.constant 0 : index
    %c0_17 = arith.constant 0 : index
    %31 = vector.load %arg9[%c0_16, %c0_17] : memref<1x384xf32, #tpu.memory_space<vmem>>, vector<1x384xf32>
    %32 = vector.broadcast %31 : vector<1x384xf32> to vector<128x384xf32>
    %33 = arith.addf %30, %32 : vector<128x384xf32>
    %34 = arith.truncf %33 : vector<128x384xf32> to vector<128x384xbf16>
    %c0_18 = arith.constant 0 : index
    %c0_19 = arith.constant 0 : index
    %c0_20 = arith.constant 0 : index
    %35 = vector.load %arg2[%c0_18, %c0_19, %c0_20] : memref<1x1x128xf32, #tpu.memory_space<vmem>>, vector<1x1x128xf32>
    %36 = vector.shape_cast %35 : vector<1x1x128xf32> to vector<1x128xf32>
    %37 = vector.shape_cast %36 : vector<1x128xf32> to vector<1x128xf32>
    %38 = vector.broadcast %37 : vector<1x128xf32> to vector<128x128xf32>
    %cst_21 = arith.constant 1.000000e+00 : f32
    %39 = vector.broadcast %cst_21 : f32 to vector<1x128xf32>
    %40 = arith.subf %39, %36 : vector<1x128xf32>
    %cst_22 = arith.constant 8.83883458E+10 : f32
    %41 = vector.broadcast %cst_22 : f32 to vector<1x128xf32>
    %42 = arith.mulf %40, %41 : vector<1x128xf32>
    %43 = vector.shape_cast %42 : vector<1x128xf32> to vector<1x128xf32>
    %44 = vector.broadcast %43 : vector<1x128xf32> to vector<128x128xf32>
    %45 = vector.extract_strided_slice %34 {offsets = [0, 0], sizes = [128, 128], strides = [1, 1]} : vector<128x384xbf16> to vector<128x128xbf16>
    %cst_23 = arith.constant dense<0.000000e+00> : vector<128x128xf32>
    %46 = tpu.matmul %45, %28, %cst_23 {dimension_numbers = #tpu.dot_dimension_numbers<[1], [1], [0], [0], [0, 0, 1, 0], [], []>} : vector<128x128xbf16>, vector<128x128xbf16>, vector<128x128xf32> -> vector<128x128xf32>
    %c0_24 = arith.constant 0 : index
    %c0_25 = arith.constant 0 : index
    %c0_26 = arith.constant 0 : index
    %47 = vector.load %arg10[%c0_24, %c0_25, %c0_26] : memref<3x1x128xf32, #tpu.memory_space<vmem>>, vector<1x1x128xf32>
    %48 = vector.shape_cast %47 : vector<1x1x128xf32> to vector<1x128xf32>
    %49 = vector.broadcast %48 : vector<1x128xf32> to vector<128x128xf32>
    %50 = arith.mulf %23, %49 : vector<128x128xf32>
    %cst_27 = arith.constant dense<0.000000e+00> : vector<128xf32>
    %51 = vector.multi_reduction <add>, %50, %cst_27 [1] : vector<128x128xf32> to vector<128xf32>
    %52 = vector.shape_cast %51 : vector<128xf32> to vector<128x1xf32>
    %c0_28 = arith.constant 0 : index
    %c0_29 = arith.constant 0 : index
    %c0_30 = arith.constant 0 : index
    %53 = vector.load %arg11[%c0_28, %c0_29, %c0_30] : memref<3x1x1xf32, #tpu.memory_space<vmem>>, vector<1x1x1xf32>
    %54 = vector.shape_cast %53 : vector<1x1x1xf32> to vector<1x1xf32>
    %55 = vector.broadcast %54 : vector<1x1xf32> to vector<128x1xf32>
    %56 = arith.addf %52, %55 : vector<128x1xf32>
    %57 = vector.broadcast %56 : vector<128x1xf32> to vector<128x128xf32>
    %58 = arith.addf %46, %57 : vector<128x128xf32>
    %59 = arith.mulf %58, %38 : vector<128x128xf32>
    %60 = arith.subf %59, %44 : vector<128x128xf32>
    %c0_31 = arith.constant 0 : index
    %c0_32 = arith.constant 0 : index
    %c0_33 = arith.constant 0 : index
    %c0_34 = arith.constant 0 : index
    %61 = vector.load %arg12[%c0_31, %c0_32, %c0_33, %c0_34] : memref<1x3x128x128xf32, #tpu.memory_space<vmem>>, vector<1x1x128x128xf32>
    %62 = vector.shape_cast %61 : vector<1x1x128x128xf32> to vector<128x128xf32>
    %63 = vector.shape_cast %60 : vector<128x128xf32> to vector<1x1x128x128xf32>
    tpu.vector_store %arg12[%c0_31, %c0_32, %c0_33, %c0_34], %63 {strides = array<i32>} : memref<1x3x128x128xf32, #tpu.memory_space<vmem>>, vector<1x1x128x128xf32>,
    %c0_35 = arith.constant 0 : index
    %c0_36 = arith.constant 0 : index
    %c0_37 = arith.constant 0 : index
    %c0_38 = arith.constant 0 : index
    %64 = vector.load %arg3[%c0_35, %c0_36, %c0_37, %c0_38] : memref<1x3x128x128xi8, #tpu.memory_space<vmem>>, vector<1x1x128x128xi8>
    %65 = vector.shape_cast %64 : vector<1x1x128x128xi8> to vector<128x128xi8>
    %66 = arith.sitofp %65 : vector<128x128xi8> to vector<128x128xf32>
    %cst_39 = arith.constant 2.000000e+00 : f32
    %67 = vector.broadcast %cst_39 : f32 to vector<128x128xf32>
    %68 = arith.mulf %67, %66 : vector<128x128xf32>
    %cst_40 = arith.constant 1.000000e+00 : f32
    %69 = vector.broadcast %cst_40 : f32 to vector<128x128xf32>
    %70 = arith.subf %69, %68 : vector<128x128xf32>
    %71 = arith.mulf %70, %60 : vector<128x128xf32>
    %cst_41 = arith.constant 9.99999995E+11 : f32
    %72 = vector.broadcast %cst_41 : f32 to vector<128x128xf32>
    %73 = arith.mulf %66, %72 : vector<128x128xf32>
    %74 = arith.subf %71, %73 : vector<128x128xf32>
    %cst_42 = arith.constant 1.000000e+00 : f32
    %75 = vector.broadcast %cst_42 : f32 to vector<128x128xf32>
    %76 = arith.subf %75, %66 : vector<128x128xf32>
    %cst_43 = arith.constant 9.99999995E+11 : f32
    %77 = vector.broadcast %cst_43 : f32 to vector<128x128xf32>
    %78 = arith.mulf %76, %77 : vector<128x128xf32>
    %79 = arith.subf %71, %78 : vector<128x128xf32>
    %cst_44 = arith.constant dense<0xFF800000> : vector<128xf32>
    %80 = vector.multi_reduction <maximumf>, %74, %cst_44 [1] : vector<128x128xf32> to vector<128xf32>
    %81 = vector.shape_cast %80 : vector<128xf32> to vector<128x1xf32>
    %cst_45 = arith.constant dense<0xFF800000> : vector<1xf32>
    %82 = vector.multi_reduction <maximumf>, %81, %cst_45 [0] : vector<128x1xf32> to vector<1xf32>
    %83 = vector.shape_cast %82 : vector<1xf32> to vector<1x1xf32>
    %cst_46 = arith.constant 0.000000e+00 : f32
    %84 = vector.broadcast %cst_46 : f32 to vector<1x1xf32>
    %85 = arith.maximumf %83, %84 : vector<1x1xf32>
    %86 = vector.broadcast %85 : vector<1x1xf32> to vector<128x128xf32>
    %87 = arith.subf %74, %86 : vector<128x128xf32>
    %88 = math.exp %87 : vector<128x128xf32>
    %cst_47 = arith.constant dense<0.000000e+00> : vector<128xf32>
    %89 = vector.multi_reduction <add>, %88, %cst_47 [1] : vector<128x128xf32> to vector<128xf32>
    %90 = vector.shape_cast %89 : vector<128xf32> to vector<128x1xf32>
    %cst_48 = arith.constant dense<0.000000e+00> : vector<1xf32>
    %91 = vector.multi_reduction <add>, %90, %cst_48 [0] : vector<128x1xf32> to vector<1xf32>
    %92 = vector.shape_cast %91 : vector<1xf32> to vector<1x1xf32>
    %cst_49 = arith.constant 0.000000e+00 : f32
    %93 = vector.broadcast %cst_49 : f32 to vector<1x1xf32>
    %94 = arith.subf %93, %85 : vector<1x1xf32>
    %95 = math.exp %94 : vector<1x1xf32>
    %96 = arith.addf %92, %95 : vector<1x1xf32>
    %97 = math.log %96 : vector<1x1xf32>
    %98 = arith.addf %85, %97 : vector<1x1xf32>
    %cst_50 = arith.constant dense<0xFF800000> : vector<128xf32>
    %99 = vector.multi_reduction <maximumf>, %79, %cst_50 [1] : vector<128x128xf32> to vector<128xf32>
    %100 = vector.shape_cast %99 : vector<128xf32> to vector<128x1xf32>
    %cst_51 = arith.constant dense<0xFF800000> : vector<1xf32>
    %101 = vector.multi_reduction <maximumf>, %100, %cst_51 [0] : vector<128x1xf32> to vector<1xf32>
    %102 = vector.shape_cast %101 : vector<1xf32> to vector<1x1xf32>
    %cst_52 = arith.constant 0.000000e+00 : f32
    %103 = vector.broadcast %cst_52 : f32 to vector<1x1xf32>
    %104 = arith.maximumf %102, %103 : vector<1x1xf32>
    %105 = vector.broadcast %104 : vector<1x1xf32> to vector<128x128xf32>
    %106 = arith.subf %79, %105 : vector<128x128xf32>
    %107 = math.exp %106 : vector<128x128xf32>
    %cst_53 = arith.constant dense<0.000000e+00> : vector<128xf32>
    %108 = vector.multi_reduction <add>, %107, %cst_53 [1] : vector<128x128xf32> to vector<128xf32>
    %109 = vector.shape_cast %108 : vector<128xf32> to vector<128x1xf32>
    %cst_54 = arith.constant dense<0.000000e+00> : vector<1xf32>
    %110 = vector.multi_reduction <add>, %109, %cst_54 [0] : vector<128x1xf32> to vector<1xf32>
    %111 = vector.shape_cast %110 : vector<1xf32> to vector<1x1xf32>
    %cst_55 = arith.constant 0.000000e+00 : f32
    %112 = vector.broadcast %cst_55 : f32 to vector<1x1xf32>
    %113 = arith.subf %112, %104 : vector<1x1xf32>
    %114 = math.exp %113 : vector<1x1xf32>
    %115 = arith.addf %111, %114 : vector<1x1xf32>
    %116 = math.log %115 : vector<1x1xf32>
    %117 = arith.addf %104, %116 : vector<1x1xf32>
    %118 = arith.addf %98, %117 : vector<1x1xf32>
    %c0_56 = arith.constant 0 : index
    %c0_57 = arith.constant 0 : index
    %c0_58 = arith.constant 0 : index
    %c0_59 = arith.constant 0 : index
    %119 = vector.load %arg13[%c0_56, %c0_57, %c0_58, %c0_59] : memref<1x3x1x1xf32, #tpu.memory_space<vmem>>, vector<1x1x1x1xf32>
    %120 = vector.shape_cast %119 : vector<1x1x1x1xf32> to vector<1x1xf32>
    %121 = vector.shape_cast %118 : vector<1x1xf32> to vector<1x1x1x1xf32>
    tpu.vector_store %arg13[%c0_56, %c0_57, %c0_58, %c0_59], %121 {strides = array<i32>} : memref<1x3x1x1xf32, #tpu.memory_space<vmem>>, vector<1x1x1x1xf32>,
    %122 = vector.extract_strided_slice %34 {offsets = [0, 128], sizes = [128, 128], strides = [1, 1]} : vector<128x384xbf16> to vector<128x128xbf16>
    %cst_60 = arith.constant dense<0.000000e+00> : vector<128x128xf32>
    %123 = tpu.matmul %122, %28, %cst_60 {dimension_numbers = #tpu.dot_dimension_numbers<[1], [1], [0], [0], [0, 0, 1, 0], [], []>} : vector<128x128xbf16>, vector<128x128xbf16>, vector<128x128xf32> -> vector<128x128xf32>
    %c1 = arith.constant 1 : index
    %c0_61 = arith.constant 0 : index
    %c0_62 = arith.constant 0 : index
    %124 = vector.load %arg10[%c1, %c0_61, %c0_62] : memref<3x1x128xf32, #tpu.memory_space<vmem>>, vector<1x1x128xf32>
    %125 = vector.shape_cast %124 : vector<1x1x128xf32> to vector<1x128xf32>
    %126 = vector.broadcast %125 : vector<1x128xf32> to vector<128x128xf32>
    %127 = arith.mulf %23, %126 : vector<128x128xf32>
    %cst_63 = arith.constant dense<0.000000e+00> : vector<128xf32>
    %128 = vector.multi_reduction <add>, %127, %cst_63 [1] : vector<128x128xf32> to vector<128xf32>
    %129 = vector.shape_cast %128 : vector<128xf32> to vector<128x1xf32>
    %c1_64 = arith.constant 1 : index
    %c0_65 = arith.constant 0 : index
    %c0_66 = arith.constant 0 : index
    %130 = vector.load %arg11[%c1_64, %c0_65, %c0_66] : memref<3x1x1xf32, #tpu.memory_space<vmem>>, vector<1x1x1xf32>
    %131 = vector.shape_cast %130 : vector<1x1x1xf32> to vector<1x1xf32>
    %132 = vector.broadcast %131 : vector<1x1xf32> to vector<128x1xf32>
    %133 = arith.addf %129, %132 : vector<128x1xf32>
    %134 = vector.broadcast %133 : vector<128x1xf32> to vector<128x128xf32>
    %135 = arith.addf %123, %134 : vector<128x128xf32>
    %136 = arith.mulf %135, %38 : vector<128x128xf32>
    %137 = arith.subf %136, %44 : vector<128x128xf32>
    %c0_67 = arith.constant 0 : index
    %c1_68 = arith.constant 1 : index
    %c0_69 = arith.constant 0 : index
    %c0_70 = arith.constant 0 : index
    %138 = vector.load %arg12[%c0_67, %c1_68, %c0_69, %c0_70] : memref<1x3x128x128xf32, #tpu.memory_space<vmem>>, vector<1x1x128x128xf32>
    %139 = vector.shape_cast %138 : vector<1x1x128x128xf32> to vector<128x128xf32>
    %140 = vector.shape_cast %137 : vector<128x128xf32> to vector<1x1x128x128xf32>
    tpu.vector_store %arg12[%c0_67, %c1_68, %c0_69, %c0_70], %140 {strides = array<i32>} : memref<1x3x128x128xf32, #tpu.memory_space<vmem>>, vector<1x1x128x128xf32>,
    %c0_71 = arith.constant 0 : index
    %c1_72 = arith.constant 1 : index
    %c0_73 = arith.constant 0 : index
    %c0_74 = arith.constant 0 : index
    %141 = vector.load %arg3[%c0_71, %c1_72, %c0_73, %c0_74] : memref<1x3x128x128xi8, #tpu.memory_space<vmem>>, vector<1x1x128x128xi8>
    %142 = vector.shape_cast %141 : vector<1x1x128x128xi8> to vector<128x128xi8>
    %143 = arith.sitofp %142 : vector<128x128xi8> to vector<128x128xf32>
    %cst_75 = arith.constant 2.000000e+00 : f32
    %144 = vector.broadcast %cst_75 : f32 to vector<128x128xf32>
    %145 = arith.mulf %144, %143 : vector<128x128xf32>
    %cst_76 = arith.constant 1.000000e+00 : f32
    %146 = vector.broadcast %cst_76 : f32 to vector<128x128xf32>
    %147 = arith.subf %146, %145 : vector<128x128xf32>
    %148 = arith.mulf %147, %137 : vector<128x128xf32>
    %cst_77 = arith.constant 9.99999995E+11 : f32
    %149 = vector.broadcast %cst_77 : f32 to vector<128x128xf32>
    %150 = arith.mulf %143, %149 : vector<128x128xf32>
    %151 = arith.subf %148, %150 : vector<128x128xf32>
    %cst_78 = arith.constant 1.000000e+00 : f32
    %152 = vector.broadcast %cst_78 : f32 to vector<128x128xf32>
    %153 = arith.subf %152, %143 : vector<128x128xf32>
    %cst_79 = arith.constant 9.99999995E+11 : f32
    %154 = vector.broadcast %cst_79 : f32 to vector<128x128xf32>
    %155 = arith.mulf %153, %154 : vector<128x128xf32>
    %156 = arith.subf %148, %155 : vector<128x128xf32>
    %cst_80 = arith.constant dense<0xFF800000> : vector<128xf32>
    %157 = vector.multi_reduction <maximumf>, %151, %cst_80 [1] : vector<128x128xf32> to vector<128xf32>
    %158 = vector.shape_cast %157 : vector<128xf32> to vector<128x1xf32>
    %cst_81 = arith.constant dense<0xFF800000> : vector<1xf32>
    %159 = vector.multi_reduction <maximumf>, %158, %cst_81 [0] : vector<128x1xf32> to vector<1xf32>
    %160 = vector.shape_cast %159 : vector<1xf32> to vector<1x1xf32>
    %cst_82 = arith.constant 0.000000e+00 : f32
    %161 = vector.broadcast %cst_82 : f32 to vector<1x1xf32>
    %162 = arith.maximumf %160, %161 : vector<1x1xf32>
    %163 = vector.broadcast %162 : vector<1x1xf32> to vector<128x128xf32>
    %164 = arith.subf %151, %163 : vector<128x128xf32>
    %165 = math.exp %164 : vector<128x128xf32>
    %cst_83 = arith.constant dense<0.000000e+00> : vector<128xf32>
    %166 = vector.multi_reduction <add>, %165, %cst_83 [1] : vector<128x128xf32> to vector<128xf32>
    %167 = vector.shape_cast %166 : vector<128xf32> to vector<128x1xf32>
    %cst_84 = arith.constant dense<0.000000e+00> : vector<1xf32>
    %168 = vector.multi_reduction <add>, %167, %cst_84 [0] : vector<128x1xf32> to vector<1xf32>
    %169 = vector.shape_cast %168 : vector<1xf32> to vector<1x1xf32>
    %cst_85 = arith.constant 0.000000e+00 : f32
    %170 = vector.broadcast %cst_85 : f32 to vector<1x1xf32>
    %171 = arith.subf %170, %162 : vector<1x1xf32>
    %172 = math.exp %171 : vector<1x1xf32>
    %173 = arith.addf %169, %172 : vector<1x1xf32>
    %174 = math.log %173 : vector<1x1xf32>
    %175 = arith.addf %162, %174 : vector<1x1xf32>
    %cst_86 = arith.constant dense<0xFF800000> : vector<128xf32>
    %176 = vector.multi_reduction <maximumf>, %156, %cst_86 [1] : vector<128x128xf32> to vector<128xf32>
    %177 = vector.shape_cast %176 : vector<128xf32> to vector<128x1xf32>
    %cst_87 = arith.constant dense<0xFF800000> : vector<1xf32>
    %178 = vector.multi_reduction <maximumf>, %177, %cst_87 [0] : vector<128x1xf32> to vector<1xf32>
    %179 = vector.shape_cast %178 : vector<1xf32> to vector<1x1xf32>
    %cst_88 = arith.constant 0.000000e+00 : f32
    %180 = vector.broadcast %cst_88 : f32 to vector<1x1xf32>
    %181 = arith.maximumf %179, %180 : vector<1x1xf32>
    %182 = vector.broadcast %181 : vector<1x1xf32> to vector<128x128xf32>
    %183 = arith.subf %156, %182 : vector<128x128xf32>
    %184 = math.exp %183 : vector<128x128xf32>
    %cst_89 = arith.constant dense<0.000000e+00> : vector<128xf32>
    %185 = vector.multi_reduction <add>, %184, %cst_89 [1] : vector<128x128xf32> to vector<128xf32>
    %186 = vector.shape_cast %185 : vector<128xf32> to vector<128x1xf32>
    %cst_90 = arith.constant dense<0.000000e+00> : vector<1xf32>
    %187 = vector.multi_reduction <add>, %186, %cst_90 [0] : vector<128x1xf32> to vector<1xf32>
    %188 = vector.shape_cast %187 : vector<1xf32> to vector<1x1xf32>
    %cst_91 = arith.constant 0.000000e+00 : f32
    %189 = vector.broadcast %cst_91 : f32 to vector<1x1xf32>
    %190 = arith.subf %189, %181 : vector<1x1xf32>
    %191 = math.exp %190 : vector<1x1xf32>
    %192 = arith.addf %188, %191 : vector<1x1xf32>
    %193 = math.log %192 : vector<1x1xf32>
    %194 = arith.addf %181, %193 : vector<1x1xf32>
    %195 = arith.addf %175, %194 : vector<1x1xf32>
    %c0_92 = arith.constant 0 : index
    %c1_93 = arith.constant 1 : index
    %c0_94 = arith.constant 0 : index
    %c0_95 = arith.constant 0 : index
    %196 = vector.load %arg13[%c0_92, %c1_93, %c0_94, %c0_95] : memref<1x3x1x1xf32, #tpu.memory_space<vmem>>, vector<1x1x1x1xf32>
    %197 = vector.shape_cast %196 : vector<1x1x1x1xf32> to vector<1x1xf32>
    %198 = vector.shape_cast %195 : vector<1x1xf32> to vector<1x1x1x1xf32>
    tpu.vector_store %arg13[%c0_92, %c1_93, %c0_94, %c0_95], %198 {strides = array<i32>} : memref<1x3x1x1xf32, #tpu.memory_space<vmem>>, vector<1x1x1x1xf32>,
    %199 = vector.extract_strided_slice %34 {offsets = [0, 256], sizes = [128, 128], strides = [1, 1]} : vector<128x384xbf16> to vector<128x128xbf16>
    %cst_96 = arith.constant dense<0.000000e+00> : vector<128x128xf32>
    %200 = tpu.matmul %199, %28, %cst_96 {dimension_numbers = #tpu.dot_dimension_numbers<[1], [1], [0], [0], [0, 0, 1, 0], [], []>} : vector<128x128xbf16>, vector<128x128xbf16>, vector<128x128xf32> -> vector<128x128xf32>
    %c2 = arith.constant 2 : index
    %c0_97 = arith.constant 0 : index
    %c0_98 = arith.constant 0 : index
    %201 = vector.load %arg10[%c2, %c0_97, %c0_98] : memref<3x1x128xf32, #tpu.memory_space<vmem>>, vector<1x1x128xf32>
    %202 = vector.shape_cast %201 : vector<1x1x128xf32> to vector<1x128xf32>
    %203 = vector.broadcast %202 : vector<1x128xf32> to vector<128x128xf32>
    %204 = arith.mulf %23, %203 : vector<128x128xf32>
    %cst_99 = arith.constant dense<0.000000e+00> : vector<128xf32>
    %205 = vector.multi_reduction <add>, %204, %cst_99 [1] : vector<128x128xf32> to vector<128xf32>
    %206 = vector.shape_cast %205 : vector<128xf32> to vector<128x1xf32>
    %c2_100 = arith.constant 2 : index
    %c0_101 = arith.constant 0 : index
    %c0_102 = arith.constant 0 : index
    %207 = vector.load %arg11[%c2_100, %c0_101, %c0_102] : memref<3x1x1xf32, #tpu.memory_space<vmem>>, vector<1x1x1xf32>
    %208 = vector.shape_cast %207 : vector<1x1x1xf32> to vector<1x1xf32>
    %209 = vector.broadcast %208 : vector<1x1xf32> to vector<128x1xf32>
    %210 = arith.addf %206, %209 : vector<128x1xf32>
    %211 = vector.broadcast %210 : vector<128x1xf32> to vector<128x128xf32>
    %212 = arith.addf %200, %211 : vector<128x128xf32>
    %213 = arith.mulf %212, %38 : vector<128x128xf32>
    %214 = arith.subf %213, %44 : vector<128x128xf32>
    %c0_103 = arith.constant 0 : index
    %c2_104 = arith.constant 2 : index
    %c0_105 = arith.constant 0 : index
    %c0_106 = arith.constant 0 : index
    %215 = vector.load %arg12[%c0_103, %c2_104, %c0_105, %c0_106] : memref<1x3x128x128xf32, #tpu.memory_space<vmem>>, vector<1x1x128x128xf32>
    %216 = vector.shape_cast %215 : vector<1x1x128x128xf32> to vector<128x128xf32>
    %217 = vector.shape_cast %214 : vector<128x128xf32> to vector<1x1x128x128xf32>
    tpu.vector_store %arg12[%c0_103, %c2_104, %c0_105, %c0_106], %217 {strides = array<i32>} : memref<1x3x128x128xf32, #tpu.memory_space<vmem>>, vector<1x1x128x128xf32>,
    %c0_107 = arith.constant 0 : index
    %c2_108 = arith.constant 2 : index
    %c0_109 = arith.constant 0 : index
    %c0_110 = arith.constant 0 : index
    %218 = vector.load %arg3[%c0_107, %c2_108, %c0_109, %c0_110] : memref<1x3x128x128xi8, #tpu.memory_space<vmem>>, vector<1x1x128x128xi8>
    %219 = vector.shape_cast %218 : vector<1x1x128x128xi8> to vector<128x128xi8>
    %220 = arith.sitofp %219 : vector<128x128xi8> to vector<128x128xf32>
    %cst_111 = arith.constant 2.000000e+00 : f32
    %221 = vector.broadcast %cst_111 : f32 to vector<128x128xf32>
    %222 = arith.mulf %221, %220 : vector<128x128xf32>
    %cst_112 = arith.constant 1.000000e+00 : f32
    %223 = vector.broadcast %cst_112 : f32 to vector<128x128xf32>
    %224 = arith.subf %223, %222 : vector<128x128xf32>
    %225 = arith.mulf %224, %214 : vector<128x128xf32>
    %cst_113 = arith.constant 9.99999995E+11 : f32
    %226 = vector.broadcast %cst_113 : f32 to vector<128x128xf32>
    %227 = arith.mulf %220, %226 : vector<128x128xf32>
    %228 = arith.subf %225, %227 : vector<128x128xf32>
    %cst_114 = arith.constant 1.000000e+00 : f32
    %229 = vector.broadcast %cst_114 : f32 to vector<128x128xf32>
    %230 = arith.subf %229, %220 : vector<128x128xf32>
    %cst_115 = arith.constant 9.99999995E+11 : f32
    %231 = vector.broadcast %cst_115 : f32 to vector<128x128xf32>
    %232 = arith.mulf %230, %231 : vector<128x128xf32>
    %233 = arith.subf %225, %232 : vector<128x128xf32>
    %cst_116 = arith.constant dense<0xFF800000> : vector<128xf32>
    %234 = vector.multi_reduction <maximumf>, %228, %cst_116 [1] : vector<128x128xf32> to vector<128xf32>
    %235 = vector.shape_cast %234 : vector<128xf32> to vector<128x1xf32>
    %cst_117 = arith.constant dense<0xFF800000> : vector<1xf32>
    %236 = vector.multi_reduction <maximumf>, %235, %cst_117 [0] : vector<128x1xf32> to vector<1xf32>
    %237 = vector.shape_cast %236 : vector<1xf32> to vector<1x1xf32>
    %cst_118 = arith.constant 0.000000e+00 : f32
    %238 = vector.broadcast %cst_118 : f32 to vector<1x1xf32>
    %239 = arith.maximumf %237, %238 : vector<1x1xf32>
    %240 = vector.broadcast %239 : vector<1x1xf32> to vector<128x128xf32>
    %241 = arith.subf %228, %240 : vector<128x128xf32>
    %242 = math.exp %241 : vector<128x128xf32>
    %cst_119 = arith.constant dense<0.000000e+00> : vector<128xf32>
    %243 = vector.multi_reduction <add>, %242, %cst_119 [1] : vector<128x128xf32> to vector<128xf32>
    %244 = vector.shape_cast %243 : vector<128xf32> to vector<128x1xf32>
    %cst_120 = arith.constant dense<0.000000e+00> : vector<1xf32>
    %245 = vector.multi_reduction <add>, %244, %cst_120 [0] : vector<128x1xf32> to vector<1xf32>
    %246 = vector.shape_cast %245 : vector<1xf32> to vector<1x1xf32>
    %cst_121 = arith.constant 0.000000e+00 : f32
    %247 = vector.broadcast %cst_121 : f32 to vector<1x1xf32>
    %248 = arith.subf %247, %239 : vector<1x1xf32>
    %249 = math.exp %248 : vector<1x1xf32>
    %250 = arith.addf %246, %249 : vector<1x1xf32>
    %251 = math.log %250 : vector<1x1xf32>
    %252 = arith.addf %239, %251 : vector<1x1xf32>
    %cst_122 = arith.constant dense<0xFF800000> : vector<128xf32>
    %253 = vector.multi_reduction <maximumf>, %233, %cst_122 [1] : vector<128x128xf32> to vector<128xf32>
    %254 = vector.shape_cast %253 : vector<128xf32> to vector<128x1xf32>
    %cst_123 = arith.constant dense<0xFF800000> : vector<1xf32>
    %255 = vector.multi_reduction <maximumf>, %254, %cst_123 [0] : vector<128x1xf32> to vector<1xf32>
    %256 = vector.shape_cast %255 : vector<1xf32> to vector<1x1xf32>
    %cst_124 = arith.constant 0.000000e+00 : f32
    %257 = vector.broadcast %cst_124 : f32 to vector<1x1xf32>
    %258 = arith.maximumf %256, %257 : vector<1x1xf32>
    %259 = vector.broadcast %258 : vector<1x1xf32> to vector<128x128xf32>
    %260 = arith.subf %233, %259 : vector<128x128xf32>
    %261 = math.exp %260 : vector<128x128xf32>
    %cst_125 = arith.constant dense<0.000000e+00> : vector<128xf32>
    %262 = vector.multi_reduction <add>, %261, %cst_125 [1] : vector<128x128xf32> to vector<128xf32>
    %263 = vector.shape_cast %262 : vector<128xf32> to vector<128x1xf32>
    %cst_126 = arith.constant dense<0.000000e+00> : vector<1xf32>
    %264 = vector.multi_reduction <add>, %263, %cst_126 [0] : vector<128x1xf32> to vector<1xf32>
    %265 = vector.shape_cast %264 : vector<1xf32> to vector<1x1xf32>
    %cst_127 = arith.constant 0.000000e+00 : f32
    %266 = vector.broadcast %cst_127 : f32 to vector<1x1xf32>
    %267 = arith.subf %266, %258 : vector<1x1xf32>
    %268 = math.exp %267 : vector<1x1xf32>
    %269 = arith.addf %265, %268 : vector<1x1xf32>
    %270 = math.log %269 : vector<1x1xf32>
    %271 = arith.addf %258, %270 : vector<1x1xf32>
    %272 = arith.addf %252, %271 : vector<1x1xf32>
    %c0_128 = arith.constant 0 : index
    %c2_129 = arith.constant 2 : index
    %c0_130 = arith.constant 0 : index
    %c0_131 = arith.constant 0 : index
    %273 = vector.load %arg13[%c0_128, %c2_129, %c0_130, %c0_131] : memref<1x3x1x1xf32, #tpu.memory_space<vmem>>, vector<1x1x1x1xf32>
    %274 = vector.shape_cast %273 : vector<1x1x1x1xf32> to vector<1x1xf32>
    %275 = vector.shape_cast %272 : vector<1x1xf32> to vector<1x1x1x1xf32>
    tpu.vector_store %arg13[%c0_128, %c2_129, %c0_130, %c0_131], %275 {strides = array<i32>} : memref<1x3x1x1xf32, #tpu.memory_space<vmem>>, vector<1x1x1x1xf32>,
    return
  }
  func.func @transform_0(%arg0: i32) -> (i32, i32, i32) {
    %c0_i32 = arith.constant 0 : i32
    %c0_i32_0 = arith.constant 0 : i32
    %c0_i32_1 = arith.constant 0 : i32
    return %arg0, %c0_i32, %c0_i32_0 : i32, i32, i32
  }
  func.func @transform_1(%arg0: i32) -> (i32, i32, i32) {
    %c0_i32 = arith.constant 0 : i32
    %c0_i32_0 = arith.constant 0 : i32
    %c0_i32_1 = arith.constant 0 : i32
    return %arg0, %c0_i32, %c0_i32_0 : i32, i32, i32
  }
  func.func @transform_2(%arg0: i32) -> (i32, i32, i32, i32) {
    %c0_i32 = arith.constant 0 : i32
    %c0_i32_0 = arith.constant 0 : i32
    %c0_i32_1 = arith.constant 0 : i32
    %c0_i32_2 = arith.constant 0 : i32
    return %arg0, %c0_i32, %c0_i32_0, %c0_i32_1 : i32, i32, i32, i32
  }
  func.func @transform_3(%arg0: i32) -> (i32, i32) {
    %c0_i32 = arith.constant 0 : i32
    %c0_i32_0 = arith.constant 0 : i32
    %c0_i32_1 = arith.constant 0 : i32
    return %c0_i32, %c0_i32_0 : i32, i32
  }
  func.func @transform_4(%arg0: i32) -> (i32, i32) {
    %c0_i32 = arith.constant 0 : i32
    %c0_i32_0 = arith.constant 0 : i32
    %c0_i32_1 = arith.constant 0 : i32
    return %c0_i32, %c0_i32_0 : i32, i32
  }
  func.func @transform_5(%arg0: i32) -> (i32, i32) {
    %c0_i32 = arith.constant 0 : i32
    %c0_i32_0 = arith.constant 0 : i32
    %c0_i32_1 = arith.constant 0 : i32
    return %c0_i32, %c0_i32_0 : i32, i32
  }
  func.func @transform_6(%arg0: i32) -> (i32, i32) {
    %c0_i32 = arith.constant 0 : i32
    %c0_i32_0 = arith.constant 0 : i32
    %c0_i32_1 = arith.constant 0 : i32
    return %c0_i32, %c0_i32_0 : i32, i32
  }
  func.func @transform_7(%arg0: i32) -> (i32, i32) {
    %c0_i32 = arith.constant 0 : i32
    %c0_i32_0 = arith.constant 0 : i32
    %c0_i32_1 = arith.constant 0 : i32
    return %c0_i32, %c0_i32_0 : i32, i32
  }
  func.func @transform_8(%arg0: i32) -> (i32, i32) {
    %c0_i32 = arith.constant 0 : i32
    %c0_i32_0 = arith.constant 0 : i32
    %c0_i32_1 = arith.constant 0 : i32
    return %c0_i32, %c0_i32_0 : i32, i32
  }
  func.func @transform_9(%arg0: i32) -> (i32, i32, i32) {
    %c0_i32 = arith.constant 0 : i32
    %c0_i32_0 = arith.constant 0 : i32
    %c0_i32_1 = arith.constant 0 : i32
    %c0_i32_2 = arith.constant 0 : i32
    return %c0_i32, %c0_i32_0, %c0_i32_1 : i32, i32, i32
  }
  func.func @transform_10(%arg0: i32) -> (i32, i32, i32) {
    %c0_i32 = arith.constant 0 : i32
    %c0_i32_0 = arith.constant 0 : i32
    %c0_i32_1 = arith.constant 0 : i32
    %c0_i32_2 = arith.constant 0 : i32
    return %c0_i32, %c0_i32_0, %c0_i32_1 : i32, i32, i32
  }
  func.func @transform_11(%arg0: i32) -> (i32, i32, i32, i32) {
    %c0_i32 = arith.constant 0 : i32
    %c0_i32_0 = arith.constant 0 : i32
    %c0_i32_1 = arith.constant 0 : i32
    %c0_i32_2 = arith.constant 0 : i32
    return %arg0, %c0_i32, %c0_i32_0, %c0_i32_1 : i32, i32, i32, i32
  }
  func.func @transform_12(%arg0: i32) -> (i32, i32, i32, i32) {
    %c0_i32 = arith.constant 0 : i32
    %c0_i32_0 = arith.constant 0 : i32
    %c0_i32_1 = arith.constant 0 : i32
    %c0_i32_2 = arith.constant 0 : i32
    return %arg0, %c0_i32, %c0_i32_0, %c0_i32_1 : i32, i32, i32, i32
  }
}

</mosaic_0001>

<llo_original>
// kernel: tpu_custom_call.1
$region0: #{tpu_custom_call.1}
  #allocation0 [shape = 'u32[]', space=smem, size = 0x4, offset = 0x4, fixed_abs, tag = 'smem constant byte address 0x4 - core index']
  #allocation1 [shape = 'u32[144,128]{1,0:T(1,128)}', space=vmem, size = 0x12000, scoped, tag = 'internal scratch']
  %s0 = inlined_call_operand.hbm [shape: bf16[2,128,128], index: 0, kind: input, shape index: {}]
  %s1 = inlined_call_operand.hbm [shape: f32[2,1,128], index: 1, kind: input, shape index: {}]
  %s2 = inlined_call_operand.hbm [shape: s8[2,3,128,128], index: 2, kind: input, shape index: {}]
  %s3 = inlined_call_operand.hbm [shape: bf16[128,512], index: 3, kind: input, shape index: {}]
  %s4 = inlined_call_operand.vmem [shape: f32[1,512], index: 4, kind: input, shape index: {}]
  %s5 = inlined_call_operand.hbm [shape: f32[128,128], index: 5, kind: input, shape index: {}]
  %s6 = inlined_call_operand.hbm [shape: f32[128,128], index: 6, kind: input, shape index: {}]
  %s7 = inlined_call_operand.hbm [shape: bf16[128,384], index: 7, kind: input, shape index: {}]
  %s8 = inlined_call_operand.vmem [shape: f32[1,384], index: 8, kind: input, shape index: {}]
  %s9 = inlined_call_operand.vmem [shape: f32[3,1,128], index: 9, kind: input, shape index: {}]
  %s10 = inlined_call_operand.vmem [shape: f32[3,1,1], index: 10, kind: input, shape index: {}]
  %s11 = inlined_call_operand.hbm [shape: f32[2,3,128,128], index: 11, kind: output, shape index: {0}]
  %s12 = inlined_call_operand.vmem [shape: f32[2,3,1,1], index: 12, kind: output, shape index: {1}]
  %13 = xla_tuple %s11, %s12
  %s14 = sld [smem:[#allocation0]]
  $region113: #{tpu_custom_call.1} parent=0
    _
  %s16 = ssub.s32 1, %s14
  %s17 = scalar_select 0, %s16, %s14
  $region1: #{tpu_custom_call.1} parent=0
    #allocation2 [shape = 'u8[65536]{0}', space=vmem, size = 0x10000, scoped, tag = 'input window, operand 0']
    #allocation3 [shape = 's32[2]{0}', space=sflag, size = 0x8, scoped, tag = 'scoped memory for tpu_custom_call.1']
    #allocation4 [shape = 's32[2]{0}', space=sflag, size = 0x8, scoped, tag = 'scoped memory for tpu_custom_call.1']
    #allocation5 [shape = 'u8[1024]{0}', space=vmem, size = 0x400, scoped, tag = 'input window, operand 1']
    #allocation6 [shape = 's32[2]{0}', space=sflag, size = 0x8, scoped, tag = 'scoped memory for tpu_custom_call.1']
    #allocation7 [shape = 'u8[98304]{0}', space=vmem, size = 0x18000, scoped, tag = 'input window, operand 2']
    #allocation8 [shape = 'u8[131072]{0}', space=vmem, size = 0x20000, scoped, tag = 'input window, operand 3, single buffered']
    #allocation9 [shape = 's32[1]{0}', space=sflag, size = 0x4, scoped, tag = 'scoped memory for tpu_custom_call.1']
    #allocation10 [shape = 'u8[65536]{0}', space=vmem, size = 0x10000, scoped, tag = 'input window, operand 5, single buffered']
    #allocation11 [shape = 'u8[65536]{0}', space=vmem, size = 0x10000, scoped, tag = 'input window, operand 6, single buffered']
    #allocation12 [shape = 's32[1]{0}', space=sflag, size = 0x4, scoped, tag = 'scoped memory for tpu_custom_call.1']
    #allocation13 [shape = 'u8[98304]{0}', space=vmem, size = 0x18000, scoped, tag = 'input window, operand 7, single buffered']
    #allocation14 [shape = 'u8[393216]{0}', space=vmem, size = 0x60000, scoped, tag = 'output window, operand 0']
    %18 = vsyncpa [#allocation3], 0
    %s19 = scalar_lea.sflag [#allocation3], 1
    %20 = vsyncpa %s19, 0
    %21 = vsyncpa [#allocation6], 0
    %s22 = scalar_lea.sflag [#allocation6], 1
    %23 = vsyncpa %s22, 0
    %24 = vsyncpa [#allocation9], 0
    %25 = vsyncpa [#allocation12], 0
    %26 = vsyncpa [#allocation4], 0
    %s27 = scalar_lea.sflag [#allocation4], 1
    %28 = vsyncpa %s27, 0
    loop: start=0, step=1, limit=4
    $region2: #{tpu_custom_call.1} parent=1 // loop_pre_header
      _
    $region3: #{tpu_custom_call.1} parent=1 // loop_header
      %s30 = sphi 0, %s34
      %p31 = scmp.ge.s32.totalorder %s30, 4
      %s40 = sphi 0, %s42
      %s43 = sphi 0, %s40
      %s44 = sphi 0, %s43
      %s60 = sphi 0, %s44
      %s66 = sphi 0, %s68
      %s69 = sphi 0, %s66
      %s70 = sphi 0, %s69
      %s86 = sphi 0, %s70
      %s92 = sphi 0, %s94
      %s95 = sphi 0, %s92
      %s96 = sphi 0, %s95
      %s112 = sphi 0, %s96
      %s116 = sphi 0, %s116
      %s118 = sphi 0, %s116
      %s119 = sphi 0, %s118
      %s133 = sphi 0, %s119
      %s137 = sphi 0, %s137
      %s139 = sphi 0, %s137
      %s140 = sphi 0, %s139
      %s154 = sphi 0, %s140
      %s158 = sphi 0, %s158
      %s160 = sphi 0, %s158
      %s161 = sphi 0, %s160
      %s175 = sphi 0, %s161
      %s179 = sphi 0, %s179
      %s181 = sphi 0, %s179
      %s182 = sphi 0, %s181
      %s196 = sphi 0, %s182
      %s200 = sphi 0, %s200
      %s202 = sphi 0, %s200
      %s203 = sphi 0, %s202
      %s217 = sphi 0, %s203
      %s221 = sphi 0, %s221
      %s223 = sphi 0, %s221
      %s224 = sphi 0, %s223
      %s238 = sphi 0, %s224
      %s242 = sphi 0, %s242
      %s244 = sphi 0, %s242
      %s245 = sphi 0, %s244
      %s259 = sphi 0, %s245
      %s263 = sphi 0, %s263
      %s265 = sphi 0, %s263
      %s266 = sphi 0, %s265
      %s280 = sphi 0, %s266
      %s286 = sphi 0, %s288
      %s289 = sphi 0, %s286
      %s290 = sphi 0, %s289
      %s306 = sphi 0, %s290
      %s312 = sphi 0, %s314
      %s315 = sphi 0, %s312
      %s316 = sphi 0, %s315
      %s332 = sphi 0, %s316
    $region4: #{tpu_custom_call.1} parent=1 // loop_header_branch
      %33 = sbr.rel (%p31) target = $region8
    $region5: #{tpu_custom_call.1} parent=1 // loop_body
      %s35 = ssub.s32 %s30, 1
      %s36 = ssub.s32 %s30, 2
      %s37 = sadd.s32 %s30, 1
      %s38 = ssub.s32 %s30, %s37
      %p39 = scmp.eq.s32.totalorder %s38, 0
      %s41 = sadd.s32 %s40, 1
      %s42 = scalar_select %p39, %s40, %s41
      %p45 = pneg %p39
      %p46 = scmp.eq.s32.totalorder %s30, 1
      %p47 = por %p45, %p46
      %p48 = scmp.ne.s32.totalorder %s40, %s43
      %p49 = scmp.eq.s32.totalorder %s30, 0
      %p50 = por %p48, %p49
      %p51 = scmp.ne.s32.totalorder %s40, %s43
      %p52 = scmp.eq.s32.totalorder %s35, 1
      %p53 = por %p51, %p52
      %p54 = scmp.ne.s32.totalorder %s43, %s44
      %p55 = scmp.eq.s32.totalorder %s35, 0
      %p56 = por %p54, %p55
      %p57 = scmp.ne.s32.totalorder %s43, %s44
      %p58 = scmp.eq.s32.totalorder %s36, 1
      %p59 = por %p57, %p58
      %p61 = scmp.ne.s32.totalorder %s44, %s60
      %p62 = scmp.eq.s32.totalorder %s36, 0
      %p63 = por %p61, %p62
      %s64 = ssub.s32 %s30, %s37
      %p65 = scmp.eq.s32.totalorder %s64, 0
      %s67 = sadd.s32 %s66, 1
      %s68 = scalar_select %p65, %s66, %s67
      %p71 = pneg %p65
      %p72 = scmp.eq.s32.totalorder %s30, 1
      %p73 = por %p71, %p72
      %p74 = scmp.ne.s32.totalorder %s66, %s69
      %p75 = scmp.eq.s32.totalorder %s30, 0
      %p76 = por %p74, %p75
      %p77 = scmp.ne.s32.totalorder %s66, %s69
      %p78 = scmp.eq.s32.totalorder %s35, 1
      %p79 = por %p77, %p78
      %p80 = scmp.ne.s32.totalorder %s69, %s70
      %p81 = scmp.eq.s32.totalorder %s35, 0
      %p82 = por %p80, %p81
      %p83 = scmp.ne.s32.totalorder %s69, %s70
      %p84 = scmp.eq.s32.totalorder %s36, 1
      %p85 = por %p83, %p84
      %p87 = scmp.ne.s32.totalorder %s70, %s86
      %p88 = scmp.eq.s32.totalorder %s36, 0
      %p89 = por %p87, %p88
      %s90 = ssub.s32 %s30, %s37
      %p91 = scmp.eq.s32.totalorder %s90, 0
      %s93 = sadd.s32 %s92, 1
      %s94 = scalar_select %p91, %s92, %s93
      %p97 = pneg %p91
      %p98 = scmp.eq.s32.totalorder %s30, 1
      %p99 = por %p97, %p98
      %p100 = scmp.ne.s32.totalorder %s92, %s95
      %p101 = scmp.eq.s32.totalorder %s30, 0
      %p102 = por %p100, %p101
      %p103 = scmp.ne.s32.totalorder %s92, %s95
      %p104 = scmp.eq.s32.totalorder %s35, 1
      %p105 = por %p103, %p104
      %p106 = scmp.ne.s32.totalorder %s95, %s96
      %p107 = scmp.eq.s32.totalorder %s35, 0
      %p108 = por %p106, %p107
      %p109 = scmp.ne.s32.totalorder %s95, %s96
      %p110 = scmp.eq.s32.totalorder %s36, 1
      %p111 = por %p109, %p110
      %p113 = scmp.ne.s32.totalorder %s96, %s112
      %p114 = scmp.eq.s32.totalorder %s36, 0
      %p115 = por %p113, %p114
      %s117 = sadd.s32 %s116, 1
      %p120 = scmp.eq.s32.totalorder %s30, 1
      %p121 = scmp.ne.s32.totalorder %s116, %s118
      %p122 = scmp.eq.s32.totalorder %s30, 0
      %p123 = por %p121, %p122
      %p124 = scmp.ne.s32.totalorder %s116, %s118
      %p125 = scmp.eq.s32.totalorder %s35, 1
      %p126 = por %p124, %p125
      %p127 = scmp.ne.s32.totalorder %s118, %s119
      %p128 = scmp.eq.s32.totalorder %s35, 0
      %p129 = por %p127, %p128
      %p130 = scmp.ne.s32.totalorder %s118, %s119
      %p131 = scmp.eq.s32.totalorder %s36, 1
      %p132 = por %p130, %p131
      %p134 = scmp.ne.s32.totalorder %s119, %s133
      %p135 = scmp.eq.s32.totalorder %s36, 0
      %p136 = por %p134, %p135
      %s138 = sadd.s32 %s137, 1
      %p141 = scmp.eq.s32.totalorder %s30, 1
      %p142 = scmp.ne.s32.totalorder %s137, %s139
      %p143 = scmp.eq.s32.totalorder %s30, 0
      %p144 = por %p142, %p143
      %p145 = scmp.ne.s32.totalorder %s137, %s139
      %p146 = scmp.eq.s32.totalorder %s35, 1
      %p147 = por %p145, %p146
      %p148 = scmp.ne.s32.totalorder %s139, %s140
      %p149 = scmp.eq.s32.totalorder %s35, 0
      %p150 = por %p148, %p149
      %p151 = scmp.ne.s32.totalorder %s139, %s140
      %p152 = scmp.eq.s32.totalorder %s36, 1
      %p153 = por %p151, %p152
      %p155 = scmp.ne.s32.totalorder %s140, %s154
      %p156 = scmp.eq.s32.totalorder %s36, 0
      %p157 = por %p155, %p156
      %s159 = sadd.s32 %s158, 1
      %p162 = scmp.eq.s32.totalorder %s30, 1
      %p163 = scmp.ne.s32.totalorder %s158, %s160
      %p164 = scmp.eq.s32.totalorder %s30, 0
      %p165 = por %p163, %p164
      %p166 = scmp.ne.s32.totalorder %s158, %s160
      %p167 = scmp.eq.s32.totalorder %s35, 1
      %p168 = por %p166, %p167
      %p169 = scmp.ne.s32.totalorder %s160, %s161
      %p170 = scmp.eq.s32.totalorder %s35, 0
      %p171 = por %p169, %p170
      %p172 = scmp.ne.s32.totalorder %s160, %s161
      %p173 = scmp.eq.s32.totalorder %s36, 1
      %p174 = por %p172, %p173
      %p176 = scmp.ne.s32.totalorder %s161, %s175
      %p177 = scmp.eq.s32.totalorder %s36, 0
      %p178 = por %p176, %p177
      %s180 = sadd.s32 %s179, 1
      %p183 = scmp.eq.s32.totalorder %s30, 1
      %p184 = scmp.ne.s32.totalorder %s179, %s181
      %p185 = scmp.eq.s32.totalorder %s30, 0
      %p186 = por %p184, %p185
      %p187 = scmp.ne.s32.totalorder %s179, %s181
      %p188 = scmp.eq.s32.totalorder %s35, 1
      %p189 = por %p187, %p188
      %p190 = scmp.ne.s32.totalorder %s181, %s182
      %p191 = scmp.eq.s32.totalorder %s35, 0
      %p192 = por %p190, %p191
      %p193 = scmp.ne.s32.totalorder %s181, %s182
      %p194 = scmp.eq.s32.totalorder %s36, 1
      %p195 = por %p193, %p194
      %p197 = scmp.ne.s32.totalorder %s182, %s196
      %p198 = scmp.eq.s32.totalorder %s36, 0
      %p199 = por %p197, %p198
      %s201 = sadd.s32 %s200, 1
      %p204 = scmp.eq.s32.totalorder %s30, 1
      %p205 = scmp.ne.s32.totalorder %s200, %s202
      %p206 = scmp.eq.s32.totalorder %s30, 0
      %p207 = por %p205, %p206
      %p208 = scmp.ne.s32.totalorder %s200, %s202
      %p209 = scmp.eq.s32.totalorder %s35, 1
      %p210 = por %p208, %p209
      %p211 = scmp.ne.s32.totalorder %s202, %s203
      %p212 = scmp.eq.s32.totalorder %s35, 0
      %p213 = por %p211, %p212
      %p214 = scmp.ne.s32.totalorder %s202, %s203
      %p215 = scmp.eq.s32.totalorder %s36, 1
      %p216 = por %p214, %p215
      %p218 = scmp.ne.s32.totalorder %s203, %s217
      %p219 = scmp.eq.s32.totalorder %s36, 0
      %p220 = por %p218, %p219
      %s222 = sadd.s32 %s221, 1
      %p225 = scmp.eq.s32.totalorder %s30, 1
      %p226 = scmp.ne.s32.totalorder %s221, %s223
      %p227 = scmp.eq.s32.totalorder %s30, 0
      %p228 = por %p226, %p227
      %p229 = scmp.ne.s32.totalorder %s221, %s223
      %p230 = scmp.eq.s32.totalorder %s35, 1
      %p231 = por %p229, %p230
      %p232 = scmp.ne.s32.totalorder %s223, %s224
      %p233 = scmp.eq.s32.totalorder %s35, 0
      %p234 = por %p232, %p233
      %p235 = scmp.ne.s32.totalorder %s223, %s224
      %p236 = scmp.eq.s32.totalorder %s36, 1
      %p237 = por %p235, %p236
      %p239 = scmp.ne.s32.totalorder %s224, %s238
      %p240 = scmp.eq.s32.totalorder %s36, 0
      %p241 = por %p239, %p240
      %s243 = sadd.s32 %s242, 1
      %p246 = scmp.eq.s32.totalorder %s30, 1
      %p247 = scmp.ne.s32.totalorder %s242, %s244
      %p248 = scmp.eq.s32.totalorder %s30, 0
      %p249 = por %p247, %p248
      %p250 = scmp.ne.s32.totalorder %s242, %s244
      %p251 = scmp.eq.s32.totalorder %s35, 1
      %p252 = por %p250, %p251
      %p253 = scmp.ne.s32.totalorder %s244, %s245
      %p254 = scmp.eq.s32.totalorder %s35, 0
      %p255 = por %p253, %p254
      %p256 = scmp.ne.s32.totalorder %s244, %s245
      %p257 = scmp.eq.s32.totalorder %s36, 1
      %p258 = por %p256, %p257
      %p260 = scmp.ne.s32.totalorder %s245, %s259
      %p261 = scmp.eq.s32.totalorder %s36, 0
      %p262 = por %p260, %p261
      %s264 = sadd.s32 %s263, 1
      %p267 = scmp.eq.s32.totalorder %s30, 1
      %p268 = scmp.ne.s32.totalorder %s263, %s265
      %p269 = scmp.eq.s32.totalorder %s30, 0
      %p270 = por %p268, %p269
      %p271 = scmp.ne.s32.totalorder %s263, %s265
      %p272 = scmp.eq.s32.totalorder %s35, 1
      %p273 = por %p271, %p272
      %p274 = scmp.ne.s32.totalorder %s265, %s266
      %p275 = scmp.eq.s32.totalorder %s35, 0
      %p276 = por %p274, %p275
      %p277 = scmp.ne.s32.totalorder %s265, %s266
      %p278 = scmp.eq.s32.totalorder %s36, 1
      %p279 = por %p277, %p278
      %p281 = scmp.ne.s32.totalorder %s266, %s280
      %p282 = scmp.eq.s32.totalorder %s36, 0
      %p283 = por %p281, %p282
      %s284 = ssub.s32 %s30, %s37
      %p285 = scmp.eq.s32.totalorder %s284, 0
      %s287 = sadd.s32 %s286, 1
      %s288 = scalar_select %p285, %s286, %s287
      %p291 = pneg %p285
      %p292 = scmp.eq.s32.totalorder %s30, 1
      %p293 = por %p291, %p292
      %p294 = scmp.ne.s32.totalorder %s286, %s289
      %p295 = scmp.eq.s32.totalorder %s30, 0
      %p296 = por %p294, %p295
      %p297 = scmp.ne.s32.totalorder %s286, %s289
      %p298 = scmp.eq.s32.totalorder %s35, 1
      %p299 = por %p297, %p298
      %p300 = scmp.ne.s32.totalorder %s289, %s290
      %p301 = scmp.eq.s32.totalorder %s35, 0
      %p302 = por %p300, %p301
      %p303 = scmp.ne.s32.totalorder %s289, %s290
      %p304 = scmp.eq.s32.totalorder %s36, 1
      %p305 = por %p303, %p304
      %p307 = scmp.ne.s32.totalorder %s290, %s306
      %p308 = scmp.eq.s32.totalorder %s36, 0
      %p309 = por %p307, %p308
      %s310 = ssub.s32 %s30, %s37
      %p311 = scmp.eq.s32.totalorder %s310, 0
      %s313 = sadd.s32 %s312, 1
      %s314 = scalar_select %p311, %s312, %s313
      %p317 = pneg %p311
      %p318 = scmp.eq.s32.totalorder %s30, 1
      %p319 = por %p317, %p318
      %p320 = scmp.ne.s32.totalorder %s312, %s315
      %p321 = scmp.eq.s32.totalorder %s30, 0
      %p322 = por %p320, %p321
      %p323 = scmp.ne.s32.totalorder %s312, %s315
      %p324 = scmp.eq.s32.totalorder %s35, 1
      %p325 = por %p323, %p324
      %p326 = scmp.ne.s32.totalorder %s315, %s316
      %p327 = scmp.eq.s32.totalorder %s35, 0
      %p328 = por %p326, %p327
      %p329 = scmp.ne.s32.totalorder %s315, %s316
      %p330 = scmp.eq.s32.totalorder %s36, 1
      %p331 = por %p329, %p330
      %p333 = scmp.ne.s32.totalorder %s316, %s332
      %p334 = scmp.eq.s32.totalorder %s36, 0
      %p335 = por %p333, %p334
      %p336 = scmp.le.s32.totalorder 1, %s30
      %p337 = scmp.lt.s32.totalorder %s30, 3
      %p338 = pnand %p336, %p337
      %p339 = pneg %p338
      // Predicated region
      $region9: #{tpu_custom_call.1} parent=5 // pred_check
        _
      $region10: #{tpu_custom_call.1} parent=5 // pred_check_branch
        %341 = sbr.rel (%p338) target = $region12
      $region11: #{tpu_custom_call.1} parent=5 // pred_region
        %s342 = ssub.s32 %s30, 1
        // Predicated region
        $region13: #{tpu_custom_call.1} parent=11 // pred_check
          %p343 = pneg %p129
        $region14: #{tpu_custom_call.1} parent=11 // pred_check_branch
          %345 = sbr.rel (%p343) target = $region16
        $region15: #{tpu_custom_call.1} parent=11 // pred_region
          %s347 = ssub.s32 4096, 4096
          %348 = vsyncadd [#allocation9], %s347
          %s349 = sshll.u32 [#allocation8], 4
          %s350 = int_to_ptr.vmem [resolvable:$true] %s349
          %355 = dma.hbm_to_vmem [thread:$0]  %s3, 4096, %s350, [#allocation9], 256, 256, 16
        $region16: #{tpu_custom_call.1} parent=11 // pred_fallthru
          _
        // Predicated region
        $region17: #{tpu_custom_call.1} parent=11 // pred_check
          %p356 = pneg %p150
        $region18: #{tpu_custom_call.1} parent=11 // pred_check_branch
          %358 = sbr.rel (%p356) target = $region20
        $region19: #{tpu_custom_call.1} parent=11 // pred_region
          _
        $region20: #{tpu_custom_call.1} parent=11 // pred_fallthru
          _
        // Predicated region
        $region21: #{tpu_custom_call.1} parent=11 // pred_check
          %p359 = pneg %p171
        $region22: #{tpu_custom_call.1} parent=11 // pred_check_branch
          %361 = sbr.rel (%p359) target = $region24
        $region23: #{tpu_custom_call.1} parent=11 // pred_region
          %s363 = ssub.s32 2048, 2048
          %364 = vsyncadd [#allocation9], %s363
          %s365 = sshll.u32 [#allocation10], 4
          %s366 = int_to_ptr.vmem [resolvable:$true] %s365
          %371 = dma.hbm_to_vmem [thread:$0]  %s5, 2048, %s366, [#allocation9], 128, 128, 8
        $region24: #{tpu_custom_call.1} parent=11 // pred_fallthru
          _
        // Predicated region
        $region25: #{tpu_custom_call.1} parent=11 // pred_check
          %p372 = pneg %p192
        $region26: #{tpu_custom_call.1} parent=11 // pred_check_branch
          %374 = sbr.rel (%p372) target = $region28
        $region27: #{tpu_custom_call.1} parent=11 // pred_region
          %s376 = ssub.s32 2048, 2048
          %377 = vsyncadd [#allocation12], %s376
          %s378 = sshll.u32 [#allocation11], 4
          %s379 = int_to_ptr.vmem [resolvable:$true] %s378
          %384 = dma.hbm_to_vmem [thread:$0]  %s6, 2048, %s379, [#allocation12], 128, 128, 8
        $region28: #{tpu_custom_call.1} parent=11 // pred_fallthru
          _
        // Predicated region
        $region29: #{tpu_custom_call.1} parent=11 // pred_check
          %p385 = pneg %p213
        $region30: #{tpu_custom_call.1} parent=11 // pred_check_branch
          %387 = sbr.rel (%p385) target = $region32
        $region31: #{tpu_custom_call.1} parent=11 // pred_region
          %s389 = ssub.s32 3072, 3072
          %390 = vsyncadd [#allocation12], %s389
          %s391 = sshll.u32 [#allocation13], 4
          %s392 = int_to_ptr.vmem [resolvable:$true] %s391
          %397 = dma.hbm_to_vmem [thread:$0]  %s7, 3072, %s392, [#allocation12], 192, 192, 12
        $region32: #{tpu_custom_call.1} parent=11 // pred_fallthru
          _
        // Predicated region
        $region33: #{tpu_custom_call.1} parent=11 // pred_check
          %p398 = pneg %p234
        $region34: #{tpu_custom_call.1} parent=11 // pred_check_branch
          %400 = sbr.rel (%p398) target = $region36
        $region35: #{tpu_custom_call.1} parent=11 // pred_region
          _
        $region36: #{tpu_custom_call.1} parent=11 // pred_fallthru
          _
        // Predicated region
        $region37: #{tpu_custom_call.1} parent=11 // pred_check
          %p401 = pneg %p255
        $region38: #{tpu_custom_call.1} parent=11 // pred_check_branch
          %403 = sbr.rel (%p401) target = $region40
        $region39: #{tpu_custom_call.1} parent=11 // pred_region
          _
        $region40: #{tpu_custom_call.1} parent=11 // pred_fallthru
          _
        // Predicated region
        $region41: #{tpu_custom_call.1} parent=11 // pred_check
          %p404 = pneg %p276
        $region42: #{tpu_custom_call.1} parent=11 // pred_check_branch
          %406 = sbr.rel (%p404) target = $region44
        $region43: #{tpu_custom_call.1} parent=11 // pred_region
          _
        $region44: #{tpu_custom_call.1} parent=11 // pred_fallthru
          _
      $region12: #{tpu_custom_call.1} parent=5 // pred_fallthru
        _
      %p407 = scmp.lt.s32.totalorder %s30, 2
      // Predicated region
      $region45: #{tpu_custom_call.1} parent=5 // pred_check
        %p408 = pneg %p407
      $region46: #{tpu_custom_call.1} parent=5 // pred_check_branch
        %410 = sbr.rel (%p408) target = $region48
      $region47: #{tpu_custom_call.1} parent=5 // pred_region
        // Predicated region
        $region49: #{tpu_custom_call.1} parent=47 // pred_check
          %p411 = pneg %p50
        $region50: #{tpu_custom_call.1} parent=47 // pred_check_branch
          %413 = sbr.rel (%p411) target = $region52
        $region51: #{tpu_custom_call.1} parent=47 // pred_region
          %s414 = sand.u32 %s40, 1
          %s415 = scalar_lea.sflag [#allocation3], %s414
          %s416 = sand.u32 %s40, 1
          %s417 = smul.addr %s416, 64
          %s418 = scalar_lea.vmem [#allocation2], %s417
          %s420 = ssub.s32 1024, 1024
          %421 = vsyncadd %s415, %s420
          %s422 = smul.addr %s30, 16
          %s423 = smul.addr %s422, 64
          %s424 = scalar_lea.hbm %s0, %s423
          %s425 = sshll.u32 %s418, 4
          %s426 = int_to_ptr.vmem [resolvable:$true] %s425
          %431 = dma.hbm_to_vmem [thread:$0]  %s424, 1024, %s426, %s415, 64, 64, 4
        $region52: #{tpu_custom_call.1} parent=47 // pred_fallthru
          _
        // Predicated region
        $region53: #{tpu_custom_call.1} parent=47 // pred_check
          %p432 = pneg %p76
        $region54: #{tpu_custom_call.1} parent=47 // pred_check_branch
          %434 = sbr.rel (%p432) target = $region56
        $region55: #{tpu_custom_call.1} parent=47 // pred_region
          %s435 = sand.u32 %s30, 1
          %s436 = scalar_lea.sflag [#allocation6], %s435
          %s437 = sand.u32 %s66, 1
          %s438 = scalar_lea.vmem [#allocation5], %s437
          %s440 = ssub.s32 16, 16
          %441 = vsyncadd %s436, %s440
          %s442 = smul.addr %s30, 16
          %s443 = scalar_lea.hbm %s1, %s442
          %s445 = sshll.u32 %s438, 4
          %s446 = int_to_ptr.vmem [resolvable:$true] %s445
          %448 = dma.hbm_to_vmem [thread:$0]  %s443, 16, %s446, %s436
        $region56: #{tpu_custom_call.1} parent=47 // pred_fallthru
          _
        // Predicated region
        $region57: #{tpu_custom_call.1} parent=47 // pred_check
          %p449 = pneg %p102
        $region58: #{tpu_custom_call.1} parent=47 // pred_check_branch
          %451 = sbr.rel (%p449) target = $region60
        $region59: #{tpu_custom_call.1} parent=47 // pred_region
          %s452 = sand.u32 %s30, 1
          %s453 = scalar_lea.sflag [#allocation6], %s452
          %s454 = sand.u32 %s92, 1
          %s455 = smul.addr %s454, 96
          %s456 = scalar_lea.vmem [#allocation7], %s455
          %s458 = ssub.s32 1536, 1536
          %459 = vsyncadd %s453, %s458
          %s460 = smul.addr %s30, 12
          %s461 = smul.addr %s460, 128
          %s462 = scalar_lea.hbm %s2, %s461
          %s463 = sshll.u32 %s456, 4
          %s464 = int_to_ptr.vmem [resolvable:$true] %s463
          %469 = dma.hbm_to_vmem [thread:$0]  %s462, 1536, %s464, %s453, 128, 128, 8
        $region60: #{tpu_custom_call.1} parent=47 // pred_fallthru
          _
      $region48: #{tpu_custom_call.1} parent=5 // pred_fallthru
        _
      %p470 = scmp.le.s32.totalorder 1, %s30
      %p471 = scmp.lt.s32.totalorder %s30, 3
      %p472 = pnand %p470, %p471
      %p473 = pneg %p472
      // Predicated region
      $region61: #{tpu_custom_call.1} parent=5 // pred_check
        _
      $region62: #{tpu_custom_call.1} parent=5 // pred_check_branch
        %475 = sbr.rel (%p472) target = $region64
      $region63: #{tpu_custom_call.1} parent=5 // pred_region
        %s476 = ssub.s32 %s30, 1
        %s477 = sand.u32 %s43, 1
        %s478 = scalar_lea.sflag [#allocation3], %s477
        %s479 = sand.u32 %s43, 1
        %s480 = smul.addr %s479, 64
        %s481 = scalar_lea.vmem [#allocation2], %s480
        // Predicated region
        $region65: #{tpu_custom_call.1} parent=63 // pred_check
          %p482 = pneg %p56
        $region66: #{tpu_custom_call.1} parent=63 // pred_check_branch
          %484 = sbr.rel (%p482) target = $region68
        $region67: #{tpu_custom_call.1} parent=63 // pred_region
          %485 = dma.done %s478, 1024
        $region68: #{tpu_custom_call.1} parent=63 // pred_fallthru
          _
        %s486 = sand.u32 %s35, 1
        %s487 = scalar_lea.sflag [#allocation6], %s486
        %s488 = sand.u32 %s69, 1
        %s489 = scalar_lea.vmem [#allocation5], %s488
        // Predicated region
        $region69: #{tpu_custom_call.1} parent=63 // pred_check
          %p490 = pneg %p82
        $region70: #{tpu_custom_call.1} parent=63 // pred_check_branch
          %492 = sbr.rel (%p490) target = $region72
        $region71: #{tpu_custom_call.1} parent=63 // pred_region
          %493 = dma.done %s487, 16
        $region72: #{tpu_custom_call.1} parent=63 // pred_fallthru
          _
        %s494 = sand.u32 %s35, 1
        %s495 = scalar_lea.sflag [#allocation6], %s494
        %s496 = sand.u32 %s95, 1
        %s497 = smul.addr %s496, 96
        %s498 = scalar_lea.vmem [#allocation7], %s497
        // Predicated region
        $region73: #{tpu_custom_call.1} parent=63 // pred_check
          %p499 = pneg %p108
        $region74: #{tpu_custom_call.1} parent=63 // pred_check_branch
          %501 = sbr.rel (%p499) target = $region76
        $region75: #{tpu_custom_call.1} parent=63 // pred_region
          %502 = dma.done %s495, 1536
        $region76: #{tpu_custom_call.1} parent=63 // pred_fallthru
          _
        // Predicated region
        $region77: #{tpu_custom_call.1} parent=63 // pred_check
          %p503 = pneg %p129
        $region78: #{tpu_custom_call.1} parent=63 // pred_check_branch
          %505 = sbr.rel (%p503) target = $region80
        $region79: #{tpu_custom_call.1} parent=63 // pred_region
          %506 = dma.done [#allocation9], 4096
        $region80: #{tpu_custom_call.1} parent=63 // pred_fallthru
          _
        // Predicated region
        $region81: #{tpu_custom_call.1} parent=63 // pred_check
          %p507 = pneg %p171
        $region82: #{tpu_custom_call.1} parent=63 // pred_check_branch
          %509 = sbr.rel (%p507) target = $region84
        $region83: #{tpu_custom_call.1} parent=63 // pred_region
          %510 = dma.done [#allocation9], 2048
        $region84: #{tpu_custom_call.1} parent=63 // pred_fallthru
          _
        // Predicated region
        $region85: #{tpu_custom_call.1} parent=63 // pred_check
          %p511 = pneg %p192
        $region86: #{tpu_custom_call.1} parent=63 // pred_check_branch
          %513 = sbr.rel (%p511) target = $region88
        $region87: #{tpu_custom_call.1} parent=63 // pred_region
          %514 = dma.done [#allocation12], 2048
        $region88: #{tpu_custom_call.1} parent=63 // pred_fallthru
          _
        // Predicated region
        $region89: #{tpu_custom_call.1} parent=63 // pred_check
          %p515 = pneg %p213
        $region90: #{tpu_custom_call.1} parent=63 // pred_check_branch
          %517 = sbr.rel (%p515) target = $region92
        $region91: #{tpu_custom_call.1} parent=63 // pred_region
          %518 = dma.done [#allocation12], 3072
        $region92: #{tpu_custom_call.1} parent=63 // pred_fallthru
          _
        %s519 = sand.u32 %s43, 1
        %s520 = scalar_lea.sflag [#allocation3], %s519
        %s521 = sand.u32 %s43, 1
        %s522 = smul.addr %s521, 64
        %s523 = scalar_lea.vmem [#allocation2], %s522
        %p524 = pneg %p56
        %p525 = pneg %p53
        %s526 = sand.u32 %s35, 1
        %s527 = scalar_lea.sflag [#allocation6], %s526
        %s528 = sand.u32 %s69, 1
        %s529 = scalar_lea.vmem [#allocation5], %s528
        %p530 = pneg %p82
        %p531 = pneg %p79
        %s532 = sand.u32 %s35, 1
        %s533 = scalar_lea.sflag [#allocation6], %s532
        %s534 = sand.u32 %s95, 1
        %s535 = smul.addr %s534, 96
        %s536 = scalar_lea.vmem [#allocation7], %s535
        %p537 = pneg %p108
        %p538 = pneg %p105
        %p539 = pneg %p129
        %p540 = pneg %p126
        %p541 = pneg %p150
        %p542 = pneg %p147
        %p543 = pneg %p171
        %p544 = pneg %p168
        %p545 = pneg %p192
        %p546 = pneg %p189
        %p547 = pneg %p213
        %p548 = pneg %p210
        %p549 = pneg %p234
        %p550 = pneg %p231
        %p551 = pneg %p255
        %p552 = pneg %p252
        %p553 = pneg %p276
        %p554 = pneg %p273
        %p555 = pneg %p302
        %p556 = pneg %p299
        %s557 = sand.u32 %s289, 1
        %s558 = scalar_lea.sflag [#allocation4], %s557
        %s559 = sand.u32 %s289, 1
        %s560 = smul.addr %s559, 384
        %s561 = scalar_lea.vmem [#allocation14], %s560
        %p562 = pneg %p328
        %p563 = pneg %p325
        %p564 = scmp.lt.s32.totalorder %s35, 1
        %s565 = scalar_select %p564, %s35, 1
        %s566 = smul.addr %s565, 3
        %s567 = scalar_lea.vmem %s12, %s566
        %p568 = scmp.lt.s32.totalorder %s35, 1
        %s569 = scalar_select %p568, %s35, 1
        %s570 = smul.addr %s569, 3
        %s571 = scalar_lea.vmem %s12, %s570
        %v573 = vld [vmem:[%s481] sm:$0xf]
        %v574 = vld [vmem:[%s481 + $0x4] sm:$0xf]
        %v575 = vld [vmem:[%s481 + $0x8] sm:$0xf]
        %v576 = vld [vmem:[%s481 + $0xc] sm:$0xf]
        %v577 = vld [vmem:[%s481 + $0x10] sm:$0xf]
        %v578 = vld [vmem:[%s481 + $0x14] sm:$0xf]
        %v579 = vld [vmem:[%s481 + $0x18] sm:$0xf]
        %v580 = vld [vmem:[%s481 + $0x1c] sm:$0xf]
        %v581 = vld [vmem:[%s481 + $0x20] sm:$0xf]
        %v582 = vld [vmem:[%s481 + $0x24] sm:$0xf]
        %v583 = vld [vmem:[%s481 + $0x28] sm:$0xf]
        %v584 = vld [vmem:[%s481 + $0x2c] sm:$0xf]
        %v585 = vld [vmem:[%s481 + $0x30] sm:$0xf]
        %v586 = vld [vmem:[%s481 + $0x34] sm:$0xf]
        %v587 = vld [vmem:[%s481 + $0x38] sm:$0xf]
        %v588 = vld [vmem:[%s481 + $0x3c] sm:$0xf]
        %v589 = vld [vmem:[#allocation8] sm:$0xff]
        %v590 = vld [vmem:[#allocation8 + $0x8] sm:$0xff]
        %v591 = vld [vmem:[#allocation8 + $0x10] sm:$0xff]
        %v592 = vld [vmem:[#allocation8 + $0x18] sm:$0xff]
        %v593 = vld [vmem:[#allocation8 + $0x20] sm:$0xff]
        %v594 = vld [vmem:[#allocation8 + $0x28] sm:$0xff]
        %v595 = vld [vmem:[#allocation8 + $0x30] sm:$0xff]
        %v596 = vld [vmem:[#allocation8 + $0x38] sm:$0xff]
        %v597 = vld [vmem:[#allocation8 + $0x40] sm:$0xff]
        %v598 = vld [vmem:[#allocation8 + $0x48] sm:$0xff]
        %v599 = vld [vmem:[#allocation8 + $0x50] sm:$0xff]
        %v600 = vld [vmem:[#allocation8 + $0x58] sm:$0xff]
        %v601 = vld [vmem:[#allocation8 + $0x60] sm:$0xff]
        %v602 = vld [vmem:[#allocation8 + $0x68] sm:$0xff]
        %v603 = vld [vmem:[#allocation8 + $0x70] sm:$0xff]
        %v604 = vld [vmem:[#allocation8 + $0x78] sm:$0xff]
        %v605 = vld [vmem:[#allocation8 + $0x80] sm:$0xff]
        %v606 = vld [vmem:[#allocation8 + $0x88] sm:$0xff]
        %v607 = vld [vmem:[#allocation8 + $0x90] sm:$0xff]
        %v608 = vld [vmem:[#allocation8 + $0x98] sm:$0xff]
        %v609 = vld [vmem:[#allocation8 + $0xa0] sm:$0xff]
        %v610 = vld [vmem:[#allocation8 + $0xa8] sm:$0xff]
        %v611 = vld [vmem:[#allocation8 + $0xb0] sm:$0xff]
        %v612 = vld [vmem:[#allocation8 + $0xb8] sm:$0xff]
        %v613 = vld [vmem:[#allocation8 + $0xc0] sm:$0xff]
        %v614 = vld [vmem:[#allocation8 + $0xc8] sm:$0xff]
        %v615 = vld [vmem:[#allocation8 + $0xd0] sm:$0xff]
        %v616 = vld [vmem:[#allocation8 + $0xd8] sm:$0xff]
        %v617 = vld [vmem:[#allocation8 + $0xe0] sm:$0xff]
        %v618 = vld [vmem:[#allocation8 + $0xe8] sm:$0xff]
        %v619 = vld [vmem:[#allocation8 + $0xf0] sm:$0xff]
        %v620 = vld [vmem:[#allocation8 + $0xf8] sm:$0xff]
        %v621 = vld [vmem:[%s4] sm:$0xf]
        %v623 = vlaneseq
        %v624 = vshrl.u32 %v623, 7
        %v625 = vsub.s32 0, %v624
        %v626 = vrot.slane %v621, %v625
        %v627 = vlaneseq
        %v628 = vshrl.u32 %v627, 7
        %v629 = vsub.s32 1, %v628
        %v630 = vrot.slane %v621, %v629
        %v631 = vlaneseq
        %v632 = vshrl.u32 %v631, 7
        %v633 = vsub.s32 2, %v632
        %v634 = vrot.slane %v621, %v633
        %v635 = vlaneseq
        %v636 = vshrl.u32 %v635, 7
        %v637 = vsub.s32 3, %v636
        %v638 = vrot.slane %v621, %v637
        %v659 = vunpack.c.l.b16 %v573
        %v660 = vunpack.c.l.b16 %v574
        %v661 = vunpack.c.l.b16 %v575
        %v662 = vunpack.c.l.b16 %v576
        %v663 = vunpack.c.l.b16 %v577
        %v664 = vunpack.c.l.b16 %v578
        %v665 = vunpack.c.l.b16 %v579
        %v666 = vunpack.c.l.b16 %v580
        %v667 = vunpack.c.l.b16 %v581
        %v668 = vunpack.c.l.b16 %v582
        %v669 = vunpack.c.l.b16 %v583
        %v670 = vunpack.c.l.b16 %v584
        %v671 = vunpack.c.l.b16 %v585
        %v672 = vunpack.c.l.b16 %v586
        %v673 = vunpack.c.l.b16 %v587
        %v674 = vunpack.c.l.b16 %v588
        %v675 = vpack.c.b16 %v660, %v659
        %v676 = vpack.c.b16 %v662, %v661
        %v677 = vpack.c.b16 %v664, %v663
        %v678 = vpack.c.b16 %v666, %v665
        %v679 = vpack.c.b16 %v668, %v667
        %v680 = vpack.c.b16 %v670, %v669
        %v681 = vpack.c.b16 %v672, %v671
        %v682 = vpack.c.b16 %v674, %v673
        %v723 = vunpack.c.l.b16 %v589
        %v724 = vunpack.c.h.b16 %v589
        %v725 = vunpack.c.l.b16 %v590
        %v726 = vunpack.c.h.b16 %v590
        %v727 = vunpack.c.l.b16 %v591
        %v728 = vunpack.c.h.b16 %v591
        %v729 = vunpack.c.l.b16 %v592
        %v730 = vunpack.c.h.b16 %v592
        %v731 = vunpack.c.l.b16 %v593
        %v732 = vunpack.c.h.b16 %v593
        %v733 = vunpack.c.l.b16 %v594
        %v734 = vunpack.c.h.b16 %v594
        %v735 = vunpack.c.l.b16 %v595
        %v736 = vunpack.c.h.b16 %v595
        %v737 = vunpack.c.l.b16 %v596
        %v738 = vunpack.c.h.b16 %v596
        %v739 = vunpack.c.l.b16 %v597
        %v740 = vunpack.c.h.b16 %v597
        %v741 = vunpack.c.l.b16 %v598
        %v742 = vunpack.c.h.b16 %v598
        %v743 = vunpack.c.l.b16 %v599
        %v744 = vunpack.c.h.b16 %v599
        %v745 = vunpack.c.l.b16 %v600
        %v746 = vunpack.c.h.b16 %v600
        %v747 = vunpack.c.l.b16 %v601
        %v748 = vunpack.c.h.b16 %v601
        %v749 = vunpack.c.l.b16 %v602
        %v750 = vunpack.c.h.b16 %v602
        %v751 = vunpack.c.l.b16 %v603
        %v752 = vunpack.c.h.b16 %v603
        %v753 = vunpack.c.l.b16 %v604
        %v754 = vunpack.c.h.b16 %v604
        %v755 = vunpack.c.l.b16 %v605
        %v756 = vunpack.c.h.b16 %v605
        %v757 = vunpack.c.l.b16 %v606
        %v758 = vunpack.c.h.b16 %v606
        %v759 = vunpack.c.l.b16 %v607
        %v760 = vunpack.c.h.b16 %v607
        %v761 = vunpack.c.l.b16 %v608
        %v762 = vunpack.c.h.b16 %v608
        %v763 = vunpack.c.l.b16 %v609
        %v764 = vunpack.c.h.b16 %v609
        %v765 = vunpack.c.l.b16 %v610
        %v766 = vunpack.c.h.b16 %v610
        %v767 = vunpack.c.l.b16 %v611
        %v768 = vunpack.c.h.b16 %v611
        %v769 = vunpack.c.l.b16 %v612
        %v770 = vunpack.c.h.b16 %v612
        %v771 = vunpack.c.l.b16 %v613
        %v772 = vunpack.c.h.b16 %v613
        %v773 = vunpack.c.l.b16 %v614
        %v774 = vunpack.c.h.b16 %v614
        %v775 = vunpack.c.l.b16 %v615
        %v776 = vunpack.c.h.b16 %v615
        %v777 = vunpack.c.l.b16 %v616
        %v778 = vunpack.c.h.b16 %v616
        %v779 = vunpack.c.l.b16 %v617
        %v780 = vunpack.c.h.b16 %v617
        %v781 = vunpack.c.l.b16 %v618
        %v782 = vunpack.c.h.b16 %v618
        %v783 = vunpack.c.l.b16 %v619
        %v784 = vunpack.c.h.b16 %v619
        %v785 = vunpack.c.l.b16 %v620
        %v786 = vunpack.c.h.b16 %v620
        %v787 = vpack.c.b16 %v727, %v723
        %v788 = vpack.c.b16 %v728, %v724
        %v789 = vpack.c.b16 %v729, %v725
        %v790 = vpack.c.b16 %v730, %v726
        %v791 = vpack.c.b16 %v735, %v731
        %v792 = vpack.c.b16 %v736, %v732
        %v793 = vpack.c.b16 %v737, %v733
        %v794 = vpack.c.b16 %v738, %v734
        %v795 = vpack.c.b16 %v743, %v739
        %v796 = vpack.c.b16 %v744, %v740
        %v797 = vpack.c.b16 %v745, %v741
        %v798 = vpack.c.b16 %v746, %v742
        %v799 = vpack.c.b16 %v751, %v747
        %v800 = vpack.c.b16 %v752, %v748
        %v801 = vpack.c.b16 %v753, %v749
        %v802 = vpack.c.b16 %v754, %v750
        %v803 = vpack.c.b16 %v759, %v755
        %v804 = vpack.c.b16 %v760, %v756
        %v805 = vpack.c.b16 %v761, %v757
        %v806 = vpack.c.b16 %v762, %v758
        %v807 = vpack.c.b16 %v767, %v763
        %v808 = vpack.c.b16 %v768, %v764
        %v809 = vpack.c.b16 %v769, %v765
        %v810 = vpack.c.b16 %v770, %v766
        %v811 = vpack.c.b16 %v775, %v771
        %v812 = vpack.c.b16 %v776, %v772
        %v813 = vpack.c.b16 %v777, %v773
        %v814 = vpack.c.b16 %v778, %v774
        %v815 = vpack.c.b16 %v783, %v779
        %v816 = vpack.c.b16 %v784, %v780
        %v817 = vpack.c.b16 %v785, %v781
        %v818 = vpack.c.b16 %v786, %v782
        %851 = vmatprep.subr.bf16.mxu0 %v788
        %852 = vmatpush1.bf16.msra.mxu0 %v787
        %853 = vmatprep.subr.bf16.mxu0 %v792
        %854 = vmatpush1.bf16.msra.mxu0 %v791
        %855 = vmatprep.subr.bf16.mxu0 %v796
        %856 = vmatpush1.bf16.msra.mxu0 %v795
        %857 = vmatprep.subr.bf16.mxu0 %v800
        %858 = vmatpush1.bf16.msra.mxu0 %v799
        %859 = vmatprep.subr.bf16.mxu0 %v804
        %860 = vmatpush1.bf16.msra.mxu0 %v803
        %861 = vmatprep.subr.bf16.mxu0 %v808
        %862 = vmatpush1.bf16.msra.mxu0 %v807
        %863 = vmatprep.subr.bf16.mxu0 %v812
        %864 = vmatpush1.bf16.msra.mxu0 %v811
        %865 = vmatprep.subr.bf16.mxu0 %v816
        %866 = vmatpush1.bf16.msra.mxu0 %v815
        %867 = vmatprep.subr.bf16.mxu0 0
        %868 = vmatpush1.bf16.msra.mxu0 0
        %869 = vmatprep.subr.bf16.mxu0 0
        %870 = vmatpush1.bf16.msra.mxu0 0
        %871 = vmatprep.subr.bf16.mxu0 0
        %872 = vmatpush1.bf16.msra.mxu0 0
        %873 = vmatprep.subr.bf16.mxu0 0
        %874 = vmatpush1.bf16.msra.mxu0 0
        %875 = vmatprep.subr.bf16.mxu0 0
        %876 = vmatpush1.bf16.msra.mxu0 0
        %877 = vmatprep.subr.bf16.mxu0 0
        %878 = vmatpush1.bf16.msra.mxu0 0
        %879 = vmatprep.subr.bf16.mxu0 0
        %880 = vmatpush1.bf16.msra.mxu0 0
        %881 = vmatprep.subr.bf16.mxu0 0
        %882 = vmatpush1.bf16.msra.mxu0 0
        %883 = vmatprep.mubr.bf16.mxu0 0
        %884 = vmatmul.mubr.bf16.gmra.mrb[0].mxu0 %v675
        %v885 = vpop.f32.mrb[0].mxu0
        %v886 = vadd.f32 %v626, %v885
        %v887 = vpop.f32.mrb[0].mxu0
        %v888 = vadd.f32 %v630, %v887
        %v889 = vpop.f32.mrb[0].mxu0
        %v890 = vadd.f32 %v626, %v889
        %v891 = vpop.f32.mrb[0].mxu0
        %v892 = vadd.f32 %v630, %v891
        %893 = vmatprep.mubr.bf16.mxu0 0
        %894 = vmatmul.mubr.bf16.gmra.mrb[0].mxu0 %v676
        %v895 = vpop.f32.mrb[0].mxu0
        %v896 = vadd.f32 %v626, %v895
        %v897 = vpop.f32.mrb[0].mxu0
        %v898 = vadd.f32 %v630, %v897
        %v899 = vpop.f32.mrb[0].mxu0
        %v900 = vadd.f32 %v626, %v899
        %v901 = vpop.f32.mrb[0].mxu0
        %v902 = vadd.f32 %v630, %v901
        %903 = vmatprep.mubr.bf16.mxu0 0
        %904 = vmatmul.mubr.bf16.gmra.mrb[0].mxu0 %v677
        %v905 = vpop.f32.mrb[0].mxu0
        %v906 = vadd.f32 %v626, %v905
        %v907 = vpop.f32.mrb[0].mxu0
        %v908 = vadd.f32 %v630, %v907
        %v909 = vpop.f32.mrb[0].mxu0
        %v910 = vadd.f32 %v626, %v909
        %v911 = vpop.f32.mrb[0].mxu0
        %v912 = vadd.f32 %v630, %v911
        %913 = vmatprep.mubr.bf16.mxu0 0
        %914 = vmatmul.mubr.bf16.gmra.mrb[0].mxu0 %v678
        %v915 = vpop.f32.mrb[0].mxu0
        %v916 = vadd.f32 %v626, %v915
        %v917 = vpop.f32.mrb[0].mxu0
        %v918 = vadd.f32 %v630, %v917
        %v919 = vpop.f32.mrb[0].mxu0
        %v920 = vadd.f32 %v626, %v919
        %v921 = vpop.f32.mrb[0].mxu0
        %v922 = vadd.f32 %v630, %v921
        %923 = vmatprep.mubr.bf16.mxu0 0
        %924 = vmatmul.mubr.bf16.gmra.mrb[0].mxu0 %v679
        %v925 = vpop.f32.mrb[0].mxu0
        %v926 = vadd.f32 %v626, %v925
        %v927 = vpop.f32.mrb[0].mxu0
        %v928 = vadd.f32 %v630, %v927
        %v929 = vpop.f32.mrb[0].mxu0
        %v930 = vadd.f32 %v626, %v929
        %v931 = vpop.f32.mrb[0].mxu0
        %v932 = vadd.f32 %v630, %v931
        %933 = vmatprep.mubr.bf16.mxu0 0
        %934 = vmatmul.mubr.bf16.gmra.mrb[0].mxu0 %v680
        %v935 = vpop.f32.mrb[0].mxu0
        %v936 = vadd.f32 %v626, %v935
        %v937 = vpop.f32.mrb[0].mxu0
        %v938 = vadd.f32 %v630, %v937
        %v939 = vpop.f32.mrb[0].mxu0
        %v940 = vadd.f32 %v626, %v939
        %v941 = vpop.f32.mrb[0].mxu0
        %v942 = vadd.f32 %v630, %v941
        %943 = vmatprep.mubr.bf16.mxu0 0
        %944 = vmatmul.mubr.bf16.gmra.mrb[0].mxu0 %v681
        %v945 = vpop.f32.mrb[0].mxu0
        %v946 = vadd.f32 %v626, %v945
        %v947 = vpop.f32.mrb[0].mxu0
        %v948 = vadd.f32 %v630, %v947
        %v949 = vpop.f32.mrb[0].mxu0
        %v950 = vadd.f32 %v626, %v949
        %v951 = vpop.f32.mrb[0].mxu0
        %v952 = vadd.f32 %v630, %v951
        %953 = vmatprep.mubr.bf16.mxu0 0
        %954 = vmatmul.mubr.bf16.gmra.mrb[0].mxu0 %v682
        %v955 = vpop.f32.mrb[0].mxu0
        %v956 = vadd.f32 %v626, %v955
        %v957 = vpop.f32.mrb[0].mxu0
        %v958 = vadd.f32 %v630, %v957
        %v959 = vpop.f32.mrb[0].mxu0
        %v960 = vadd.f32 %v626, %v959
        %v961 = vpop.f32.mrb[0].mxu0
        %v962 = vadd.f32 %v630, %v961
        %963 = vdwg.mxu0
        %964 = vmatprep.subr.bf16.mxu0 %v790
        %965 = vmatpush1.bf16.msra.mxu0 %v789
        %966 = vmatprep.subr.bf16.mxu0 %v794
        %967 = vmatpush1.bf16.msra.mxu0 %v793
        %968 = vmatprep.subr.bf16.mxu0 %v798
        %969 = vmatpush1.bf16.msra.mxu0 %v797
        %970 = vmatprep.subr.bf16.mxu0 %v802
        %971 = vmatpush1.bf16.msra.mxu0 %v801
        %972 = vmatprep.subr.bf16.mxu0 %v806
        %973 = vmatpush1.bf16.msra.mxu0 %v805
        %974 = vmatprep.subr.bf16.mxu0 %v810
        %975 = vmatpush1.bf16.msra.mxu0 %v809
        %976 = vmatprep.subr.bf16.mxu0 %v814
        %977 = vmatpush1.bf16.msra.mxu0 %v813
        %978 = vmatprep.subr.bf16.mxu0 %v818
        %979 = vmatpush1.bf16.msra.mxu0 %v817
        %980 = vmatprep.subr.bf16.mxu0 0
        %981 = vmatpush1.bf16.msra.mxu0 0
        %982 = vmatprep.subr.bf16.mxu0 0
        %983 = vmatpush1.bf16.msra.mxu0 0
        %984 = vmatprep.subr.bf16.mxu0 0
        %985 = vmatpush1.bf16.msra.mxu0 0
        %986 = vmatprep.subr.bf16.mxu0 0
        %987 = vmatpush1.bf16.msra.mxu0 0
        %988 = vmatprep.subr.bf16.mxu0 0
        %989 = vmatpush1.bf16.msra.mxu0 0
        %990 = vmatprep.subr.bf16.mxu0 0
        %991 = vmatpush1.bf16.msra.mxu0 0
        %992 = vmatprep.subr.bf16.mxu0 0
        %993 = vmatpush1.bf16.msra.mxu0 0
        %994 = vmatprep.subr.bf16.mxu0 0
        %995 = vmatpush1.bf16.msra.mxu0 0
        %996 = vmatprep.mubr.bf16.mxu0 0
        %997 = vmatmul.mubr.bf16.gmra.mrb[0].mxu0 %v675
        %v998 = vpop.f32.mrb[0].mxu0
        %v999 = vadd.f32 %v634, %v998
        %v1000 = vpop.f32.mrb[0].mxu0
        %v1001 = vadd.f32 %v638, %v1000
        %v1002 = vpop.f32.mrb[0].mxu0
        %v1003 = vadd.f32 %v634, %v1002
        %v1004 = vpop.f32.mrb[0].mxu0
        %v1005 = vadd.f32 %v638, %v1004
        %1006 = vmatprep.mubr.bf16.mxu0 0
        %1007 = vmatmul.mubr.bf16.gmra.mrb[0].mxu0 %v676
        %v1008 = vpop.f32.mrb[0].mxu0
        %v1009 = vadd.f32 %v634, %v1008
        %v1010 = vpop.f32.mrb[0].mxu0
        %v1011 = vadd.f32 %v638, %v1010
        %v1012 = vpop.f32.mrb[0].mxu0
        %v1013 = vadd.f32 %v634, %v1012
        %v1014 = vpop.f32.mrb[0].mxu0
        %v1015 = vadd.f32 %v638, %v1014
        %1016 = vmatprep.mubr.bf16.mxu0 0
        %1017 = vmatmul.mubr.bf16.gmra.mrb[0].mxu0 %v677
        %v1018 = vpop.f32.mrb[0].mxu0
        %v1019 = vadd.f32 %v634, %v1018
        %v1020 = vpop.f32.mrb[0].mxu0
        %v1021 = vadd.f32 %v638, %v1020
        %v1022 = vpop.f32.mrb[0].mxu0
        %v1023 = vadd.f32 %v634, %v1022
        %v1024 = vpop.f32.mrb[0].mxu0
        %v1025 = vadd.f32 %v638, %v1024
        %1026 = vmatprep.mubr.bf16.mxu0 0
        %1027 = vmatmul.mubr.bf16.gmra.mrb[0].mxu0 %v678
        %v1028 = vpop.f32.mrb[0].mxu0
        %v1029 = vadd.f32 %v634, %v1028
        %v1030 = vpop.f32.mrb[0].mxu0
        %v1031 = vadd.f32 %v638, %v1030
        %v1032 = vpop.f32.mrb[0].mxu0
        %v1033 = vadd.f32 %v634, %v1032
        %v1034 = vpop.f32.mrb[0].mxu0
        %v1035 = vadd.f32 %v638, %v1034
        %1036 = vmatprep.mubr.bf16.mxu0 0
        %1037 = vmatmul.mubr.bf16.gmra.mrb[0].mxu0 %v679
        %v1038 = vpop.f32.mrb[0].mxu0
        %v1039 = vadd.f32 %v634, %v1038
        %v1040 = vpop.f32.mrb[0].mxu0
        %v1041 = vadd.f32 %v638, %v1040
        %v1042 = vpop.f32.mrb[0].mxu0
        %v1043 = vadd.f32 %v634, %v1042
        %v1044 = vpop.f32.mrb[0].mxu0
        %v1045 = vadd.f32 %v638, %v1044
        %1046 = vmatprep.mubr.bf16.mxu0 0
        %1047 = vmatmul.mubr.bf16.gmra.mrb[0].mxu0 %v680
        %v1048 = vpop.f32.mrb[0].mxu0
        %v1049 = vadd.f32 %v634, %v1048
        %v1050 = vpop.f32.mrb[0].mxu0
        %v1051 = vadd.f32 %v638, %v1050
        %v1052 = vpop.f32.mrb[0].mxu0
        %v1053 = vadd.f32 %v634, %v1052
        %v1054 = vpop.f32.mrb[0].mxu0
        %v1055 = vadd.f32 %v638, %v1054
        %1056 = vmatprep.mubr.bf16.mxu0 0
        %1057 = vmatmul.mubr.bf16.gmra.mrb[0].mxu0 %v681
        %v1058 = vpop.f32.mrb[0].mxu0
        %v1059 = vadd.f32 %v634, %v1058
        %v1060 = vpop.f32.mrb[0].mxu0
        %v1061 = vadd.f32 %v638, %v1060
        %v1062 = vpop.f32.mrb[0].mxu0
        %v1063 = vadd.f32 %v634, %v1062
        %v1064 = vpop.f32.mrb[0].mxu0
        %v1065 = vadd.f32 %v638, %v1064
        %1066 = vmatprep.mubr.bf16.mxu0 0
        %1067 = vmatmul.mubr.bf16.gmra.mrb[0].mxu0 %v682
        %v1068 = vpop.f32.mrb[0].mxu0
        %v1069 = vadd.f32 %v634, %v1068
        %v1070 = vpop.f32.mrb[0].mxu0
        %v1071 = vadd.f32 %v638, %v1070
        %v1072 = vpop.f32.mrb[0].mxu0
        %v1073 = vadd.f32 %v634, %v1072
        %v1074 = vpop.f32.mrb[0].mxu0
        %v1075 = vadd.f32 %v638, %v1074
        %1076 = vdwg.mxu0
        %v1077 = vmul.f32 %v886, 0.5
        %v1078 = vmul.f32 %v888, 0.5
        %v1079 = vmul.f32 %v999, 0.5
        %v1080 = vmul.f32 %v1001, 0.5
        %v1081 = vmul.f32 %v890, 0.5
        %v1082 = vmul.f32 %v892, 0.5
        %v1083 = vmul.f32 %v1003, 0.5
        %v1084 = vmul.f32 %v1005, 0.5
        %v1085 = vmul.f32 %v896, 0.5
        %v1086 = vmul.f32 %v898, 0.5
        %v1087 = vmul.f32 %v1009, 0.5
        %v1088 = vmul.f32 %v1011, 0.5
        %v1089 = vmul.f32 %v900, 0.5
        %v1090 = vmul.f32 %v902, 0.5
        %v1091 = vmul.f32 %v1013, 0.5
        %v1092 = vmul.f32 %v1015, 0.5
        %v1093 = vmul.f32 %v906, 0.5
        %v1094 = vmul.f32 %v908, 0.5
        %v1095 = vmul.f32 %v1019, 0.5
        %v1096 = vmul.f32 %v1021, 0.5
        %v1097 = vmul.f32 %v910, 0.5
        %v1098 = vmul.f32 %v912, 0.5
        %v1099 = vmul.f32 %v1023, 0.5
        %v1100 = vmul.f32 %v1025, 0.5
        %v1101 = vmul.f32 %v916, 0.5
        %v1102 = vmul.f32 %v918, 0.5
        %v1103 = vmul.f32 %v1029, 0.5
        %v1104 = vmul.f32 %v1031, 0.5
        %v1105 = vmul.f32 %v920, 0.5
        %v1106 = vmul.f32 %v922, 0.5
        %v1107 = vmul.f32 %v1033, 0.5
        %v1108 = vmul.f32 %v1035, 0.5
        %v1109 = vmul.f32 %v926, 0.5
        %v1110 = vmul.f32 %v928, 0.5
        %v1111 = vmul.f32 %v1039, 0.5
        %v1112 = vmul.f32 %v1041, 0.5
        %v1113 = vmul.f32 %v930, 0.5
        %v1114 = vmul.f32 %v932, 0.5
        %v1115 = vmul.f32 %v1043, 0.5
        %v1116 = vmul.f32 %v1045, 0.5
        %v1117 = vmul.f32 %v936, 0.5
        %v1118 = vmul.f32 %v938, 0.5
        %v1119 = vmul.f32 %v1049, 0.5
        %v1120 = vmul.f32 %v1051, 0.5
        %v1121 = vmul.f32 %v940, 0.5
        %v1122 = vmul.f32 %v942, 0.5
        %v1123 = vmul.f32 %v1053, 0.5
        %v1124 = vmul.f32 %v1055, 0.5
        %v1125 = vmul.f32 %v946, 0.5
        %v1126 = vmul.f32 %v948, 0.5
        %v1127 = vmul.f32 %v1059, 0.5
        %v1128 = vmul.f32 %v1061, 0.5
        %v1129 = vmul.f32 %v950, 0.5
        %v1130 = vmul.f32 %v952, 0.5
        %v1131 = vmul.f32 %v1063, 0.5
        %v1132 = vmul.f32 %v1065, 0.5
        %v1133 = vmul.f32 %v956, 0.5
        %v1134 = vmul.f32 %v958, 0.5
        %v1135 = vmul.f32 %v1069, 0.5
        %v1136 = vmul.f32 %v1071, 0.5
        %v1137 = vmul.f32 %v960, 0.5
        %v1138 = vmul.f32 %v962, 0.5
        %v1139 = vmul.f32 %v1073, 0.5
        %v1140 = vmul.f32 %v1075, 0.5
        %v1141 = vmul.f32 %v886, 0.70710677
        %v1142 = vmul.f32 %v888, 0.70710677
        %v1143 = vmul.f32 %v999, 0.70710677
        %v1144 = vmul.f32 %v1001, 0.70710677
        %v1145 = vmul.f32 %v890, 0.70710677
        %v1146 = vmul.f32 %v892, 0.70710677
        %v1147 = vmul.f32 %v1003, 0.70710677
        %v1148 = vmul.f32 %v1005, 0.70710677
        %v1149 = vmul.f32 %v896, 0.70710677
        %v1150 = vmul.f32 %v898, 0.70710677
        %v1151 = vmul.f32 %v1009, 0.70710677
        %v1152 = vmul.f32 %v1011, 0.70710677
        %v1153 = vmul.f32 %v900, 0.70710677
        %v1154 = vmul.f32 %v902, 0.70710677
        %v1155 = vmul.f32 %v1013, 0.70710677
        %v1156 = vmul.f32 %v1015, 0.70710677
        %v1157 = vmul.f32 %v906, 0.70710677
        %v1158 = vmul.f32 %v908, 0.70710677
        %v1159 = vmul.f32 %v1019, 0.70710677
        %v1160 = vmul.f32 %v1021, 0.70710677
        %v1161 = vmul.f32 %v910, 0.70710677
        %v1162 = vmul.f32 %v912, 0.70710677
        %v1163 = vmul.f32 %v1023, 0.70710677
        %v1164 = vmul.f32 %v1025, 0.70710677
        %v1165 = vmul.f32 %v916, 0.70710677
        %v1166 = vmul.f32 %v918, 0.70710677
        %v1167 = vmul.f32 %v1029, 0.70710677
        %v1168 = vmul.f32 %v1031, 0.70710677
        %v1169 = vmul.f32 %v920, 0.70710677
        %v1170 = vmul.f32 %v922, 0.70710677
        %v1171 = vmul.f32 %v1033, 0.70710677
        %v1172 = vmul.f32 %v1035, 0.70710677
        %v1173 = vmul.f32 %v926, 0.70710677
        %v1174 = vmul.f32 %v928, 0.70710677
        %v1175 = vmul.f32 %v1039, 0.70710677
        %v1176 = vmul.f32 %v1041, 0.70710677
        %v1177 = vmul.f32 %v930, 0.70710677
        %v1178 = vmul.f32 %v932, 0.70710677
        %v1179 = vmul.f32 %v1043, 0.70710677
        %v1180 = vmul.f32 %v1045, 0.70710677
        %v1181 = vmul.f32 %v936, 0.70710677
        %v1182 = vmul.f32 %v938, 0.70710677
        %v1183 = vmul.f32 %v1049, 0.70710677
        %v1184 = vmul.f32 %v1051, 0.70710677
        %v1185 = vmul.f32 %v940, 0.70710677
        %v1186 = vmul.f32 %v942, 0.70710677
        %v1187 = vmul.f32 %v1053, 0.70710677
        %v1188 = vmul.f32 %v1055, 0.70710677
        %v1189 = vmul.f32 %v946, 0.70710677
        %v1190 = vmul.f32 %v948, 0.70710677
        %v1191 = vmul.f32 %v1059, 0.70710677
        %v1192 = vmul.f32 %v1061, 0.70710677
        %v1193 = vmul.f32 %v950, 0.70710677
        %v1194 = vmul.f32 %v952, 0.70710677
        %v1195 = vmul.f32 %v1063, 0.70710677
        %v1196 = vmul.f32 %v1065, 0.70710677
        %v1197 = vmul.f32 %v956, 0.70710677
        %v1198 = vmul.f32 %v958, 0.70710677
        %v1199 = vmul.f32 %v1069, 0.70710677
        %v1200 = vmul.f32 %v1071, 0.70710677
        %v1201 = vmul.f32 %v960, 0.70710677
        %v1202 = vmul.f32 %v962, 0.70710677
        %v1203 = vmul.f32 %v1073, 0.70710677
        %v1204 = vmul.f32 %v1075, 0.70710677
        %v1205 = verf.f32.pop %v1141
        %v1206 = verf.f32.pop %v1142
        %v1207 = verf.f32.pop %v1143
        %v1208 = verf.f32.pop %v1144
        %v1209 = verf.f32.pop %v1145
        %v1210 = verf.f32.pop %v1146
        %v1211 = verf.f32.pop %v1147
        %v1212 = verf.f32.pop %v1148
        %v1213 = verf.f32.pop %v1149
        %v1214 = verf.f32.pop %v1150
        %v1215 = verf.f32.pop %v1151
        %v1216 = verf.f32.pop %v1152
        %v1217 = verf.f32.pop %v1153
        %v1218 = verf.f32.pop %v1154
        %v1219 = verf.f32.pop %v1155
        %v1220 = verf.f32.pop %v1156
        %v1221 = verf.f32.pop %v1157
        %v1222 = verf.f32.pop %v1158
        %v1223 = verf.f32.pop %v1159
        %v1224 = verf.f32.pop %v1160
        %v1225 = verf.f32.pop %v1161
        %v1226 = verf.f32.pop %v1162
        %v1227 = verf.f32.pop %v1163
        %v1228 = verf.f32.pop %v1164
        %v1229 = verf.f32.pop %v1165
        %v1230 = verf.f32.pop %v1166
        %v1231 = verf.f32.pop %v1167
        %v1232 = verf.f32.pop %v1168
        %v1233 = verf.f32.pop %v1169
        %v1234 = verf.f32.pop %v1170
        %v1235 = verf.f32.pop %v1171
        %v1236 = verf.f32.pop %v1172
        %v1237 = verf.f32.pop %v1173
        %v1238 = verf.f32.pop %v1174
        %v1239 = verf.f32.pop %v1175
        %v1240 = verf.f32.pop %v1176
        %v1241 = verf.f32.pop %v1177
        %v1242 = verf.f32.pop %v1178
        %v1243 = verf.f32.pop %v1179
        %v1244 = verf.f32.pop %v1180
        %v1245 = verf.f32.pop %v1181
        %v1246 = verf.f32.pop %v1182
        %v1247 = verf.f32.pop %v1183
        %v1248 = verf.f32.pop %v1184
        %v1249 = verf.f32.pop %v1185
        %v1250 = verf.f32.pop %v1186
        %v1251 = verf.f32.pop %v1187
        %v1252 = verf.f32.pop %v1188
        %v1253 = verf.f32.pop %v1189
        %v1254 = verf.f32.pop %v1190
        %v1255 = verf.f32.pop %v1191
        %v1256 = verf.f32.pop %v1192
        %v1257 = verf.f32.pop %v1193
        %v1258 = verf.f32.pop %v1194
        %v1259 = verf.f32.pop %v1195
        %v1260 = verf.f32.pop %v1196
        %v1261 = verf.f32.pop %v1197
        %v1262 = verf.f32.pop %v1198
        %v1263 = verf.f32.pop %v1199
        %v1264 = verf.f32.pop %v1200
        %v1265 = verf.f32.pop %v1201
        %v1266 = verf.f32.pop %v1202
        %v1267 = verf.f32.pop %v1203
        %v1268 = verf.f32.pop %v1204
        %v1269 = vadd.f32 %v1205, 1.0
        %v1270 = vadd.f32 %v1206, 1.0
        %v1271 = vadd.f32 %v1207, 1.0
        %v1272 = vadd.f32 %v1208, 1.0
        %v1273 = vadd.f32 %v1209, 1.0
        %v1274 = vadd.f32 %v1210, 1.0
        %v1275 = vadd.f32 %v1211, 1.0
        %v1276 = vadd.f32 %v1212, 1.0
        %v1277 = vadd.f32 %v1213, 1.0
        %v1278 = vadd.f32 %v1214, 1.0
        %v1279 = vadd.f32 %v1215, 1.0
        %v1280 = vadd.f32 %v1216, 1.0
        %v1281 = vadd.f32 %v1217, 1.0
        %v1282 = vadd.f32 %v1218, 1.0
        %v1283 = vadd.f32 %v1219, 1.0
        %v1284 = vadd.f32 %v1220, 1.0
        %v1285 = vadd.f32 %v1221, 1.0
        %v1286 = vadd.f32 %v1222, 1.0
        %v1287 = vadd.f32 %v1223, 1.0
        %v1288 = vadd.f32 %v1224, 1.0
        %v1289 = vadd.f32 %v1225, 1.0
        %v1290 = vadd.f32 %v1226, 1.0
        %v1291 = vadd.f32 %v1227, 1.0
        %v1292 = vadd.f32 %v1228, 1.0
        %v1293 = vadd.f32 %v1229, 1.0
        %v1294 = vadd.f32 %v1230, 1.0
        %v1295 = vadd.f32 %v1231, 1.0
        %v1296 = vadd.f32 %v1232, 1.0
        %v1297 = vadd.f32 %v1233, 1.0
        %v1298 = vadd.f32 %v1234, 1.0
        %v1299 = vadd.f32 %v1235, 1.0
        %v1300 = vadd.f32 %v1236, 1.0
        %v1301 = vadd.f32 %v1237, 1.0
        %v1302 = vadd.f32 %v1238, 1.0
        %v1303 = vadd.f32 %v1239, 1.0
        %v1304 = vadd.f32 %v1240, 1.0
        %v1305 = vadd.f32 %v1241, 1.0
        %v1306 = vadd.f32 %v1242, 1.0
        %v1307 = vadd.f32 %v1243, 1.0
        %v1308 = vadd.f32 %v1244, 1.0
        %v1309 = vadd.f32 %v1245, 1.0
        %v1310 = vadd.f32 %v1246, 1.0
        %v1311 = vadd.f32 %v1247, 1.0
        %v1312 = vadd.f32 %v1248, 1.0
        %v1313 = vadd.f32 %v1249, 1.0
        %v1314 = vadd.f32 %v1250, 1.0
        %v1315 = vadd.f32 %v1251, 1.0
        %v1316 = vadd.f32 %v1252, 1.0
        %v1317 = vadd.f32 %v1253, 1.0
        %v1318 = vadd.f32 %v1254, 1.0
        %v1319 = vadd.f32 %v1255, 1.0
        %v1320 = vadd.f32 %v1256, 1.0
        %v1321 = vadd.f32 %v1257, 1.0
        %v1322 = vadd.f32 %v1258, 1.0
        %v1323 = vadd.f32 %v1259, 1.0
        %v1324 = vadd.f32 %v1260, 1.0
        %v1325 = vadd.f32 %v1261, 1.0
        %v1326 = vadd.f32 %v1262, 1.0
        %v1327 = vadd.f32 %v1263, 1.0
        %v1328 = vadd.f32 %v1264, 1.0
        %v1329 = vadd.f32 %v1265, 1.0
        %v1330 = vadd.f32 %v1266, 1.0
        %v1331 = vadd.f32 %v1267, 1.0
        %v1332 = vadd.f32 %v1268, 1.0
        %v1333 = vmul.f32 %v1077, %v1269
        %v1334 = vmul.f32 %v1078, %v1270
        %v1335 = vmul.f32 %v1079, %v1271
        %v1336 = vmul.f32 %v1080, %v1272
        %v1337 = vmul.f32 %v1081, %v1273
        %v1338 = vmul.f32 %v1082, %v1274
        %v1339 = vmul.f32 %v1083, %v1275
        %v1340 = vmul.f32 %v1084, %v1276
        %v1341 = vmul.f32 %v1085, %v1277
        %v1342 = vmul.f32 %v1086, %v1278
        %v1343 = vmul.f32 %v1087, %v1279
        %v1344 = vmul.f32 %v1088, %v1280
        %v1345 = vmul.f32 %v1089, %v1281
        %v1346 = vmul.f32 %v1090, %v1282
        %v1347 = vmul.f32 %v1091, %v1283
        %v1348 = vmul.f32 %v1092, %v1284
        %v1349 = vmul.f32 %v1093, %v1285
        %v1350 = vmul.f32 %v1094, %v1286
        %v1351 = vmul.f32 %v1095, %v1287
        %v1352 = vmul.f32 %v1096, %v1288
        %v1353 = vmul.f32 %v1097, %v1289
        %v1354 = vmul.f32 %v1098, %v1290
        %v1355 = vmul.f32 %v1099, %v1291
        %v1356 = vmul.f32 %v1100, %v1292
        %v1357 = vmul.f32 %v1101, %v1293
        %v1358 = vmul.f32 %v1102, %v1294
        %v1359 = vmul.f32 %v1103, %v1295
        %v1360 = vmul.f32 %v1104, %v1296
        %v1361 = vmul.f32 %v1105, %v1297
        %v1362 = vmul.f32 %v1106, %v1298
        %v1363 = vmul.f32 %v1107, %v1299
        %v1364 = vmul.f32 %v1108, %v1300
        %v1365 = vmul.f32 %v1109, %v1301
        %v1366 = vmul.f32 %v1110, %v1302
        %v1367 = vmul.f32 %v1111, %v1303
        %v1368 = vmul.f32 %v1112, %v1304
        %v1369 = vmul.f32 %v1113, %v1305
        %v1370 = vmul.f32 %v1114, %v1306
        %v1371 = vmul.f32 %v1115, %v1307
        %v1372 = vmul.f32 %v1116, %v1308
        %v1373 = vmul.f32 %v1117, %v1309
        %v1374 = vmul.f32 %v1118, %v1310
        %v1375 = vmul.f32 %v1119, %v1311
        %v1376 = vmul.f32 %v1120, %v1312
        %v1377 = vmul.f32 %v1121, %v1313
        %v1378 = vmul.f32 %v1122, %v1314
        %v1379 = vmul.f32 %v1123, %v1315
        %v1380 = vmul.f32 %v1124, %v1316
        %v1381 = vmul.f32 %v1125, %v1317
        %v1382 = vmul.f32 %v1126, %v1318
        %v1383 = vmul.f32 %v1127, %v1319
        %v1384 = vmul.f32 %v1128, %v1320
        %v1385 = vmul.f32 %v1129, %v1321
        %v1386 = vmul.f32 %v1130, %v1322
        %v1387 = vmul.f32 %v1131, %v1323
        %v1388 = vmul.f32 %v1132, %v1324
        %v1389 = vmul.f32 %v1133, %v1325
        %v1390 = vmul.f32 %v1134, %v1326
        %v1391 = vmul.f32 %v1135, %v1327
        %v1392 = vmul.f32 %v1136, %v1328
        %v1393 = vmul.f32 %v1137, %v1329
        %v1394 = vmul.f32 %v1138, %v1330
        %v1395 = vmul.f32 %v1139, %v1331
        %v1396 = vmul.f32 %v1140, %v1332
        %v1397 = vld [vmem:[#allocation10] sm:$0xff]
        %v1398 = vld [vmem:[#allocation10 + $0x8] sm:$0xff]
        %v1399 = vld [vmem:[#allocation10 + $0x10] sm:$0xff]
        %v1400 = vld [vmem:[#allocation10 + $0x18] sm:$0xff]
        %v1401 = vld [vmem:[#allocation10 + $0x20] sm:$0xff]
        %v1402 = vld [vmem:[#allocation10 + $0x28] sm:$0xff]
        %v1403 = vld [vmem:[#allocation10 + $0x30] sm:$0xff]
        %v1404 = vld [vmem:[#allocation10 + $0x38] sm:$0xff]
        %v1405 = vld [vmem:[#allocation10 + $0x40] sm:$0xff]
        %v1406 = vld [vmem:[#allocation10 + $0x48] sm:$0xff]
        %v1407 = vld [vmem:[#allocation10 + $0x50] sm:$0xff]
        %v1408 = vld [vmem:[#allocation10 + $0x58] sm:$0xff]
        %v1409 = vld [vmem:[#allocation10 + $0x60] sm:$0xff]
        %v1410 = vld [vmem:[#allocation10 + $0x68] sm:$0xff]
        %v1411 = vld [vmem:[#allocation10 + $0x70] sm:$0xff]
        %v1412 = vld [vmem:[#allocation10 + $0x78] sm:$0xff]
        %v1413 = vld [vmem:[#allocation11] sm:$0xff]
        %v1414 = vld [vmem:[#allocation11 + $0x8] sm:$0xff]
        %v1415 = vld [vmem:[#allocation11 + $0x10] sm:$0xff]
        %v1416 = vld [vmem:[#allocation11 + $0x18] sm:$0xff]
        %v1417 = vld [vmem:[#allocation11 + $0x20] sm:$0xff]
        %v1418 = vld [vmem:[#allocation11 + $0x28] sm:$0xff]
        %v1419 = vld [vmem:[#allocation11 + $0x30] sm:$0xff]
        %v1420 = vld [vmem:[#allocation11 + $0x38] sm:$0xff]
        %v1421 = vld [vmem:[#allocation11 + $0x40] sm:$0xff]
        %v1422 = vld [vmem:[#allocation11 + $0x48] sm:$0xff]
        %v1423 = vld [vmem:[#allocation11 + $0x50] sm:$0xff]
        %v1424 = vld [vmem:[#allocation11 + $0x58] sm:$0xff]
        %v1425 = vld [vmem:[#allocation11 + $0x60] sm:$0xff]
        %v1426 = vld [vmem:[#allocation11 + $0x68] sm:$0xff]
        %v1427 = vld [vmem:[#allocation11 + $0x70] sm:$0xff]
        %v1428 = vld [vmem:[#allocation11 + $0x78] sm:$0xff]
        %v1429 = vmul.f32 %v1333, %v1397
        %v1430 = vmul.f32 %v1337, %v1398
        %v1431 = vmul.f32 %v1341, %v1399
        %v1432 = vmul.f32 %v1345, %v1400
        %v1433 = vmul.f32 %v1349, %v1401
        %v1434 = vmul.f32 %v1353, %v1402
        %v1435 = vmul.f32 %v1357, %v1403
        %v1436 = vmul.f32 %v1361, %v1404
        %v1437 = vmul.f32 %v1365, %v1405
        %v1438 = vmul.f32 %v1369, %v1406
        %v1439 = vmul.f32 %v1373, %v1407
        %v1440 = vmul.f32 %v1377, %v1408
        %v1441 = vmul.f32 %v1381, %v1409
        %v1442 = vmul.f32 %v1385, %v1410
        %v1443 = vmul.f32 %v1389, %v1411
        %v1444 = vmul.f32 %v1393, %v1412
        %v1445 = vmul.f32 %v1334, %v1413
        %v1446 = vmul.f32 %v1338, %v1414
        %v1447 = vmul.f32 %v1342, %v1415
        %v1448 = vmul.f32 %v1346, %v1416
        %v1449 = vmul.f32 %v1350, %v1417
        %v1450 = vmul.f32 %v1354, %v1418
        %v1451 = vmul.f32 %v1358, %v1419
        %v1452 = vmul.f32 %v1362, %v1420
        %v1453 = vmul.f32 %v1366, %v1421
        %v1454 = vmul.f32 %v1370, %v1422
        %v1455 = vmul.f32 %v1374, %v1423
        %v1456 = vmul.f32 %v1378, %v1424
        %v1457 = vmul.f32 %v1382, %v1425
        %v1458 = vmul.f32 %v1386, %v1426
        %v1459 = vmul.f32 %v1390, %v1427
        %v1460 = vmul.f32 %v1394, %v1428
        %v1461 = vadd.f32 %v1429, %v1445
        %v1462 = vadd.f32 %v1430, %v1446
        %v1463 = vadd.f32 %v1431, %v1447
        %v1464 = vadd.f32 %v1432, %v1448
        %v1465 = vadd.f32 %v1433, %v1449
        %v1466 = vadd.f32 %v1434, %v1450
        %v1467 = vadd.f32 %v1435, %v1451
        %v1468 = vadd.f32 %v1436, %v1452
        %v1469 = vadd.f32 %v1437, %v1453
        %v1470 = vadd.f32 %v1438, %v1454
        %v1471 = vadd.f32 %v1439, %v1455
        %v1472 = vadd.f32 %v1440, %v1456
        %v1473 = vadd.f32 %v1441, %v1457
        %v1474 = vadd.f32 %v1442, %v1458
        %v1475 = vadd.f32 %v1443, %v1459
        %v1476 = vadd.f32 %v1444, %v1460
        %v1477 = vmul.f32 %v1335, %v1397
        %v1478 = vmul.f32 %v1339, %v1398
        %v1479 = vmul.f32 %v1343, %v1399
        %v1480 = vmul.f32 %v1347, %v1400
        %v1481 = vmul.f32 %v1351, %v1401
        %v1482 = vmul.f32 %v1355, %v1402
        %v1483 = vmul.f32 %v1359, %v1403
        %v1484 = vmul.f32 %v1363, %v1404
        %v1485 = vmul.f32 %v1367, %v1405
        %v1486 = vmul.f32 %v1371, %v1406
        %v1487 = vmul.f32 %v1375, %v1407
        %v1488 = vmul.f32 %v1379, %v1408
        %v1489 = vmul.f32 %v1383, %v1409
        %v1490 = vmul.f32 %v1387, %v1410
        %v1491 = vmul.f32 %v1391, %v1411
        %v1492 = vmul.f32 %v1395, %v1412
        %v1493 = vmul.f32 %v1336, %v1413
        %v1494 = vmul.f32 %v1340, %v1414
        %v1495 = vmul.f32 %v1344, %v1415
        %v1496 = vmul.f32 %v1348, %v1416
        %v1497 = vmul.f32 %v1352, %v1417
        %v1498 = vmul.f32 %v1356, %v1418
        %v1499 = vmul.f32 %v1360, %v1419
        %v1500 = vmul.f32 %v1364, %v1420
        %v1501 = vmul.f32 %v1368, %v1421
        %v1502 = vmul.f32 %v1372, %v1422
        %v1503 = vmul.f32 %v1376, %v1423
        %v1504 = vmul.f32 %v1380, %v1424
        %v1505 = vmul.f32 %v1384, %v1425
        %v1506 = vmul.f32 %v1388, %v1426
        %v1507 = vmul.f32 %v1392, %v1427
        %v1508 = vmul.f32 %v1396, %v1428
        %v1509 = vadd.f32 %v1477, %v1493
        %v1510 = vadd.f32 %v1478, %v1494
        %v1511 = vadd.f32 %v1479, %v1495
        %v1512 = vadd.f32 %v1480, %v1496
        %v1513 = vadd.f32 %v1481, %v1497
        %v1514 = vadd.f32 %v1482, %v1498
        %v1515 = vadd.f32 %v1483, %v1499
        %v1516 = vadd.f32 %v1484, %v1500
        %v1517 = vadd.f32 %v1485, %v1501
        %v1518 = vadd.f32 %v1486, %v1502
        %v1519 = vadd.f32 %v1487, %v1503
        %v1520 = vadd.f32 %v1488, %v1504
        %v1521 = vadd.f32 %v1489, %v1505
        %v1522 = vadd.f32 %v1490, %v1506
        %v1523 = vadd.f32 %v1491, %v1507
        %v1524 = vadd.f32 %v1492, %v1508
        %v1525 = vpack.c.bf16 %v1462, %v1461
        %v1526 = vpack.c.bf16 %v1464, %v1463
        %v1527 = vpack.c.bf16 %v1466, %v1465
        %v1528 = vpack.c.bf16 %v1468, %v1467
        %v1529 = vpack.c.bf16 %v1470, %v1469
        %v1530 = vpack.c.bf16 %v1472, %v1471
        %v1531 = vpack.c.bf16 %v1474, %v1473
        %v1532 = vpack.c.bf16 %v1476, %v1475
        %v1533 = vpack.c.bf16 %v1510, %v1509
        %v1534 = vpack.c.bf16 %v1512, %v1511
        %v1535 = vpack.c.bf16 %v1514, %v1513
        %v1536 = vpack.c.bf16 %v1516, %v1515
        %v1537 = vpack.c.bf16 %v1518, %v1517
        %v1538 = vpack.c.bf16 %v1520, %v1519
        %v1539 = vpack.c.bf16 %v1522, %v1521
        %v1540 = vpack.c.bf16 %v1524, %v1523
        %v1541 = vld [vmem:[#allocation13] sm:$0xff]
        %v1542 = vld [vmem:[#allocation13 + $0x8] sm:$0xf]
        %v1543 = vld [vmem:[#allocation13 + $0xc] sm:$0xff]
        %v1544 = vld [vmem:[#allocation13 + $0x14] sm:$0xf]
        %v1545 = vld [vmem:[#allocation13 + $0x18] sm:$0xff]
        %v1546 = vld [vmem:[#allocation13 + $0x20] sm:$0xf]
        %v1547 = vld [vmem:[#allocation13 + $0x24] sm:$0xff]
        %v1548 = vld [vmem:[#allocation13 + $0x2c] sm:$0xf]
        %v1549 = vld [vmem:[#allocation13 + $0x30] sm:$0xff]
        %v1550 = vld [vmem:[#allocation13 + $0x38] sm:$0xf]
        %v1551 = vld [vmem:[#allocation13 + $0x3c] sm:$0xff]
        %v1552 = vld [vmem:[#allocation13 + $0x44] sm:$0xf]
        %v1553 = vld [vmem:[#allocation13 + $0x48] sm:$0xff]
        %v1554 = vld [vmem:[#allocation13 + $0x50] sm:$0xf]
        %v1555 = vld [vmem:[#allocation13 + $0x54] sm:$0xff]
        %v1556 = vld [vmem:[#allocation13 + $0x5c] sm:$0xf]
        %v1557 = vld [vmem:[#allocation13 + $0x60] sm:$0xff]
        %v1558 = vld [vmem:[#allocation13 + $0x68] sm:$0xf]
        %v1559 = vld [vmem:[#allocation13 + $0x6c] sm:$0xff]
        %v1560 = vld [vmem:[#allocation13 + $0x74] sm:$0xf]
        %v1561 = vld [vmem:[#allocation13 + $0x78] sm:$0xff]
        %v1562 = vld [vmem:[#allocation13 + $0x80] sm:$0xf]
        %v1563 = vld [vmem:[#allocation13 + $0x84] sm:$0xff]
        %v1564 = vld [vmem:[#allocation13 + $0x8c] sm:$0xf]
        %v1565 = vld [vmem:[#allocation13 + $0x90] sm:$0xff]
        %v1566 = vld [vmem:[#allocation13 + $0x98] sm:$0xf]
        %v1567 = vld [vmem:[#allocation13 + $0x9c] sm:$0xff]
        %v1568 = vld [vmem:[#allocation13 + $0xa4] sm:$0xf]
        %v1569 = vld [vmem:[#allocation13 + $0xa8] sm:$0xff]
        %v1570 = vld [vmem:[#allocation13 + $0xb0] sm:$0xf]
        %v1571 = vld [vmem:[#allocation13 + $0xb4] sm:$0xff]
        %v1572 = vld [vmem:[#allocation13 + $0xbc] sm:$0xf]
        %v1573 = vld [vmem:[%s8] sm:$0x7]
        %v1575 = vlaneseq
        %v1576 = vshrl.u32 %v1575, 7
        %v1577 = vsub.s32 0, %v1576
        %v1578 = vrot.slane %v1573, %v1577
        %v1579 = vlaneseq
        %v1580 = vshrl.u32 %v1579, 7
        %v1581 = vsub.s32 1, %v1580
        %v1582 = vrot.slane %v1573, %v1581
        %v1583 = vlaneseq
        %v1584 = vshrl.u32 %v1583, 7
        %v1585 = vsub.s32 2, %v1584
        %v1586 = vrot.slane %v1573, %v1585
        %v1622 = vunpack.c.l.b16 %v1541
        %v1623 = vunpack.c.h.b16 %v1541
        %v1624 = vunpack.c.l.b16 %v1542
        %v1625 = vunpack.c.l.b16 %v1543
        %v1626 = vunpack.c.h.b16 %v1543
        %v1627 = vunpack.c.l.b16 %v1544
        %v1628 = vunpack.c.l.b16 %v1545
        %v1629 = vunpack.c.h.b16 %v1545
        %v1630 = vunpack.c.l.b16 %v1546
        %v1631 = vunpack.c.l.b16 %v1547
        %v1632 = vunpack.c.h.b16 %v1547
        %v1633 = vunpack.c.l.b16 %v1548
        %v1634 = vunpack.c.l.b16 %v1549
        %v1635 = vunpack.c.h.b16 %v1549
        %v1636 = vunpack.c.l.b16 %v1550
        %v1637 = vunpack.c.l.b16 %v1551
        %v1638 = vunpack.c.h.b16 %v1551
        %v1639 = vunpack.c.l.b16 %v1552
        %v1640 = vunpack.c.l.b16 %v1553
        %v1641 = vunpack.c.h.b16 %v1553
        %v1642 = vunpack.c.l.b16 %v1554
        %v1643 = vunpack.c.l.b16 %v1555
        %v1644 = vunpack.c.h.b16 %v1555
        %v1645 = vunpack.c.l.b16 %v1556
        %v1646 = vunpack.c.l.b16 %v1557
        %v1647 = vunpack.c.h.b16 %v1557
        %v1648 = vunpack.c.l.b16 %v1558
        %v1649 = vunpack.c.l.b16 %v1559
        %v1650 = vunpack.c.h.b16 %v1559
        %v1651 = vunpack.c.l.b16 %v1560
        %v1652 = vunpack.c.l.b16 %v1561
        %v1653 = vunpack.c.h.b16 %v1561
        %v1654 = vunpack.c.l.b16 %v1562
        %v1655 = vunpack.c.l.b16 %v1563
        %v1656 = vunpack.c.h.b16 %v1563
        %v1657 = vunpack.c.l.b16 %v1564
        %v1658 = vunpack.c.l.b16 %v1565
        %v1659 = vunpack.c.h.b16 %v1565
        %v1660 = vunpack.c.l.b16 %v1566
        %v1661 = vunpack.c.l.b16 %v1567
        %v1662 = vunpack.c.h.b16 %v1567
        %v1663 = vunpack.c.l.b16 %v1568
        %v1664 = vunpack.c.l.b16 %v1569
        %v1665 = vunpack.c.h.b16 %v1569
        %v1666 = vunpack.c.l.b16 %v1570
        %v1667 = vunpack.c.l.b16 %v1571
        %v1668 = vunpack.c.h.b16 %v1571
        %v1669 = vunpack.c.l.b16 %v1572
        %v1670 = vpack.c.b16 %v1625, %v1622
        %v1671 = vpack.c.b16 %v1626, %v1623
        %v1672 = vpack.c.b16 %v1627, %v1624
        %v1673 = vpack.c.b16 %v1631, %v1628
        %v1674 = vpack.c.b16 %v1632, %v1629
        %v1675 = vpack.c.b16 %v1633, %v1630
        %v1676 = vpack.c.b16 %v1637, %v1634
        %v1677 = vpack.c.b16 %v1638, %v1635
        %v1678 = vpack.c.b16 %v1639, %v1636
        %v1679 = vpack.c.b16 %v1643, %v1640
        %v1680 = vpack.c.b16 %v1644, %v1641
        %v1681 = vpack.c.b16 %v1645, %v1642
        %v1682 = vpack.c.b16 %v1649, %v1646
        %v1683 = vpack.c.b16 %v1650, %v1647
        %v1684 = vpack.c.b16 %v1651, %v1648
        %v1685 = vpack.c.b16 %v1655, %v1652
        %v1686 = vpack.c.b16 %v1656, %v1653
        %v1687 = vpack.c.b16 %v1657, %v1654
        %v1688 = vpack.c.b16 %v1661, %v1658
        %v1689 = vpack.c.b16 %v1662, %v1659
        %v1690 = vpack.c.b16 %v1663, %v1660
        %v1691 = vpack.c.b16 %v1667, %v1664
        %v1692 = vpack.c.b16 %v1668, %v1665
        %v1693 = vpack.c.b16 %v1669, %v1666
        %1718 = vmatprep.subr.bf16.mxu0 %v1671
        %1719 = vmatpush1.bf16.msra.mxu0 %v1670
        %1720 = vmatprep.subr.bf16.mxu0 %v1674
        %1721 = vmatpush1.bf16.msra.mxu0 %v1673
        %1722 = vmatprep.subr.bf16.mxu0 %v1677
        %1723 = vmatpush1.bf16.msra.mxu0 %v1676
        %1724 = vmatprep.subr.bf16.mxu0 %v1680
        %1725 = vmatpush1.bf16.msra.mxu0 %v1679
        %1726 = vmatprep.subr.bf16.mxu0 %v1683
        %1727 = vmatpush1.bf16.msra.mxu0 %v1682
        %1728 = vmatprep.subr.bf16.mxu0 %v1686
        %1729 = vmatpush1.bf16.msra.mxu0 %v1685
        %1730 = vmatprep.subr.bf16.mxu0 %v1689
        %1731 = vmatpush1.bf16.msra.mxu0 %v1688
        %1732 = vmatprep.subr.bf16.mxu0 %v1692
        %1733 = vmatpush1.bf16.msra.mxu0 %v1691
        %1734 = vmatprep.subr.bf16.mxu0 0
        %1735 = vmatpush1.bf16.msra.mxu0 0
        %1736 = vmatprep.subr.bf16.mxu0 0
        %1737 = vmatpush1.bf16.msra.mxu0 0
        %1738 = vmatprep.subr.bf16.mxu0 0
        %1739 = vmatpush1.bf16.msra.mxu0 0
        %1740 = vmatprep.subr.bf16.mxu0 0
        %1741 = vmatpush1.bf16.msra.mxu0 0
        %1742 = vmatprep.subr.bf16.mxu0 0
        %1743 = vmatpush1.bf16.msra.mxu0 0
        %1744 = vmatprep.subr.bf16.mxu0 0
        %1745 = vmatpush1.bf16.msra.mxu0 0
        %1746 = vmatprep.subr.bf16.mxu0 0
        %1747 = vmatpush1.bf16.msra.mxu0 0
        %1748 = vmatprep.subr.bf16.mxu0 0
        %1749 = vmatpush1.bf16.msra.mxu0 0
        %1750 = vmatprep.mubr.bf16.mxu0 0
        %1751 = vmatmul.mubr.bf16.gmra.mrb[0].mxu0 %v1525
        %v1752 = vpop.f32.mrb[0].mxu0
        %v1753 = vadd.f32 %v1578, %v1752
        %v1754 = vpop.f32.mrb[0].mxu0
        %v1755 = vadd.f32 %v1582, %v1754
        %v1756 = vpop.f32.mrb[0].mxu0
        %v1757 = vadd.f32 %v1578, %v1756
        %v1758 = vpop.f32.mrb[0].mxu0
        %v1759 = vadd.f32 %v1582, %v1758
        %1760 = vmatprep.mubr.bf16.mxu0 0
        %1761 = vmatmul.mubr.bf16.gmra.mrb[0].mxu0 %v1526
        %v1762 = vpop.f32.mrb[0].mxu0
        %v1763 = vadd.f32 %v1578, %v1762
        %v1764 = vpop.f32.mrb[0].mxu0
        %v1765 = vadd.f32 %v1582, %v1764
        %v1766 = vpop.f32.mrb[0].mxu0
        %v1767 = vadd.f32 %v1578, %v1766
        %v1768 = vpop.f32.mrb[0].mxu0
        %v1769 = vadd.f32 %v1582, %v1768
        %1770 = vmatprep.mubr.bf16.mxu0 0
        %1771 = vmatmul.mubr.bf16.gmra.mrb[0].mxu0 %v1527
        %v1772 = vpop.f32.mrb[0].mxu0
        %v1773 = vadd.f32 %v1578, %v1772
        %v1774 = vpop.f32.mrb[0].mxu0
        %v1775 = vadd.f32 %v1582, %v1774
        %v1776 = vpop.f32.mrb[0].mxu0
        %v1777 = vadd.f32 %v1578, %v1776
        %v1778 = vpop.f32.mrb[0].mxu0
        %v1779 = vadd.f32 %v1582, %v1778
        %1780 = vmatprep.mubr.bf16.mxu0 0
        %1781 = vmatmul.mubr.bf16.gmra.mrb[0].mxu0 %v1528
        %v1782 = vpop.f32.mrb[0].mxu0
        %v1783 = vadd.f32 %v1578, %v1782
        %v1784 = vpop.f32.mrb[0].mxu0
        %v1785 = vadd.f32 %v1582, %v1784
        %v1786 = vpop.f32.mrb[0].mxu0
        %v1787 = vadd.f32 %v1578, %v1786
        %v1788 = vpop.f32.mrb[0].mxu0
        %v1789 = vadd.f32 %v1582, %v1788
        %1790 = vmatprep.mubr.bf16.mxu0 0
        %1791 = vmatmul.mubr.bf16.gmra.mrb[0].mxu0 %v1529
        %v1792 = vpop.f32.mrb[0].mxu0
        %v1793 = vadd.f32 %v1578, %v1792
        %v1794 = vpop.f32.mrb[0].mxu0
        %v1795 = vadd.f32 %v1582, %v1794
        %v1796 = vpop.f32.mrb[0].mxu0
        %v1797 = vadd.f32 %v1578, %v1796
        %v1798 = vpop.f32.mrb[0].mxu0
        %v1799 = vadd.f32 %v1582, %v1798
        %1800 = vmatprep.mubr.bf16.mxu0 0
        %1801 = vmatmul.mubr.bf16.gmra.mrb[0].mxu0 %v1530
        %v1802 = vpop.f32.mrb[0].mxu0
        %v1803 = vadd.f32 %v1578, %v1802
        %v1804 = vpop.f32.mrb[0].mxu0
        %v1805 = vadd.f32 %v1582, %v1804
        %v1806 = vpop.f32.mrb[0].mxu0
        %v1807 = vadd.f32 %v1578, %v1806
        %v1808 = vpop.f32.mrb[0].mxu0
        %v1809 = vadd.f32 %v1582, %v1808
        %1810 = vmatprep.mubr.bf16.mxu0 0
        %1811 = vmatmul.mubr.bf16.gmra.mrb[0].mxu0 %v1531
        %v1812 = vpop.f32.mrb[0].mxu0
        %v1813 = vadd.f32 %v1578, %v1812
        %v1814 = vpop.f32.mrb[0].mxu0
        %v1815 = vadd.f32 %v1582, %v1814
        %v1816 = vpop.f32.mrb[0].mxu0
        %v1817 = vadd.f32 %v1578, %v1816
        %v1818 = vpop.f32.mrb[0].mxu0
        %v1819 = vadd.f32 %v1582, %v1818
        %1820 = vmatprep.mubr.bf16.mxu0 0
        %1821 = vmatmul.mubr.bf16.gmra.mrb[0].mxu0 %v1532
        %v1822 = vpop.f32.mrb[0].mxu0
        %v1823 = vadd.f32 %v1578, %v1822
        %v1824 = vpop.f32.mrb[0].mxu0
        %v1825 = vadd.f32 %v1582, %v1824
        %v1826 = vpop.f32.mrb[0].mxu0
        %v1827 = vadd.f32 %v1578, %v1826
        %v1828 = vpop.f32.mrb[0].mxu0
        %v1829 = vadd.f32 %v1582, %v1828
        %1830 = vdwg.mxu0
        %1831 = vmatprep.subr.bf16.mxu0 0
        %1832 = vmatpush1.bf16.msra.mxu0 %v1672
        %1833 = vmatprep.subr.bf16.mxu0 0
        %1834 = vmatpush1.bf16.msra.mxu0 %v1675
        %1835 = vmatprep.subr.bf16.mxu0 0
        %1836 = vmatpush1.bf16.msra.mxu0 %v1678
        %1837 = vmatprep.subr.bf16.mxu0 0
        %1838 = vmatpush1.bf16.msra.mxu0 %v1681
        %1839 = vmatprep.subr.bf16.mxu0 0
        %1840 = vmatpush1.bf16.msra.mxu0 %v1684
        %1841 = vmatprep.subr.bf16.mxu0 0
        %1842 = vmatpush1.bf16.msra.mxu0 %v1687
        %1843 = vmatprep.subr.bf16.mxu0 0
        %1844 = vmatpush1.bf16.msra.mxu0 %v1690
        %1845 = vmatprep.subr.bf16.mxu0 0
        %1846 = vmatpush1.bf16.msra.mxu0 %v1693
        %1847 = vmatprep.subr.bf16.mxu0 0
        %1848 = vmatpush1.bf16.msra.mxu0 0
        %1849 = vmatprep.subr.bf16.mxu0 0
        %1850 = vmatpush1.bf16.msra.mxu0 0
        %1851 = vmatprep.subr.bf16.mxu0 0
        %1852 = vmatpush1.bf16.msra.mxu0 0
        %1853 = vmatprep.subr.bf16.mxu0 0
        %1854 = vmatpush1.bf16.msra.mxu0 0
        %1855 = vmatprep.subr.bf16.mxu0 0
        %1856 = vmatpush1.bf16.msra.mxu0 0
        %1857 = vmatprep.subr.bf16.mxu0 0
        %1858 = vmatpush1.bf16.msra.mxu0 0
        %1859 = vmatprep.subr.bf16.mxu0 0
        %1860 = vmatpush1.bf16.msra.mxu0 0
        %1861 = vmatprep.subr.bf16.mxu0 0
        %1862 = vmatpush1.bf16.msra.mxu0 0
        %1863 = vmatprep.mubr.bf16.mxu0 0
        %1864 = vmatmul.mubr.bf16.gmra.mrb[0].mxu0 %v1525
        %v1865 = vpop.f32.mrb[0].mxu0
        %v1866 = vadd.f32 %v1586, %v1865
        %v1867 = vpop.f32.mrb[0].mxu0
        %v1868 = vpop.f32.mrb[0].mxu0
        %v1869 = vadd.f32 %v1586, %v1868
        %v1870 = vpop.f32.mrb[0].mxu0
        %1871 = vmatprep.mubr.bf16.mxu0 0
        %1872 = vmatmul.mubr.bf16.gmra.mrb[0].mxu0 %v1526
        %v1873 = vpop.f32.mrb[0].mxu0
        %v1874 = vadd.f32 %v1586, %v1873
        %v1875 = vpop.f32.mrb[0].mxu0
        %v1876 = vpop.f32.mrb[0].mxu0
        %v1877 = vadd.f32 %v1586, %v1876
        %v1878 = vpop.f32.mrb[0].mxu0
        %1879 = vmatprep.mubr.bf16.mxu0 0
        %1880 = vmatmul.mubr.bf16.gmra.mrb[0].mxu0 %v1527
        %v1881 = vpop.f32.mrb[0].mxu0
        %v1882 = vadd.f32 %v1586, %v1881
        %v1883 = vpop.f32.mrb[0].mxu0
        %v1884 = vpop.f32.mrb[0].mxu0
        %v1885 = vadd.f32 %v1586, %v1884
        %v1886 = vpop.f32.mrb[0].mxu0
        %1887 = vmatprep.mubr.bf16.mxu0 0
        %1888 = vmatmul.mubr.bf16.gmra.mrb[0].mxu0 %v1528
        %v1889 = vpop.f32.mrb[0].mxu0
        %v1890 = vadd.f32 %v1586, %v1889
        %v1891 = vpop.f32.mrb[0].mxu0
        %v1892 = vpop.f32.mrb[0].mxu0
        %v1893 = vadd.f32 %v1586, %v1892
        %v1894 = vpop.f32.mrb[0].mxu0
        %1895 = vmatprep.mubr.bf16.mxu0 0
        %1896 = vmatmul.mubr.bf16.gmra.mrb[0].mxu0 %v1529
        %v1897 = vpop.f32.mrb[0].mxu0
        %v1898 = vadd.f32 %v1586, %v1897
        %v1899 = vpop.f32.mrb[0].mxu0
        %v1900 = vpop.f32.mrb[0].mxu0
        %v1901 = vadd.f32 %v1586, %v1900
        %v1902 = vpop.f32.mrb[0].mxu0
        %1903 = vmatprep.mubr.bf16.mxu0 0
        %1904 = vmatmul.mubr.bf16.gmra.mrb[0].mxu0 %v1530
        %v1905 = vpop.f32.mrb[0].mxu0
        %v1906 = vadd.f32 %v1586, %v1905
        %v1907 = vpop.f32.mrb[0].mxu0
        %v1908 = vpop.f32.mrb[0].mxu0
        %v1909 = vadd.f32 %v1586, %v1908
        %v1910 = vpop.f32.mrb[0].mxu0
        %1911 = vmatprep.mubr.bf16.mxu0 0
        %1912 = vmatmul.mubr.bf16.gmra.mrb[0].mxu0 %v1531
        %v1913 = vpop.f32.mrb[0].mxu0
        %v1914 = vadd.f32 %v1586, %v1913
        %v1915 = vpop.f32.mrb[0].mxu0
        %v1916 = vpop.f32.mrb[0].mxu0
        %v1917 = vadd.f32 %v1586, %v1916
        %v1918 = vpop.f32.mrb[0].mxu0
        %1919 = vmatprep.mubr.bf16.mxu0 0
        %1920 = vmatmul.mubr.bf16.gmra.mrb[0].mxu0 %v1532
        %v1921 = vpop.f32.mrb[0].mxu0
        %v1922 = vadd.f32 %v1586, %v1921
        %v1923 = vpop.f32.mrb[0].mxu0
        %v1924 = vpop.f32.mrb[0].mxu0
        %v1925 = vadd.f32 %v1586, %v1924
        %v1926 = vpop.f32.mrb[0].mxu0
        %1927 = vdwg.mxu0
        %v1928 = vpack.c.bf16 %v1757, %v1753
        %v1929 = vpack.c.bf16 %v1759, %v1755
        %v1930 = vpack.c.bf16 %v1869, %v1866
        %v1931 = vpack.c.bf16 %v1767, %v1763
        %v1932 = vpack.c.bf16 %v1769, %v1765
        %v1933 = vpack.c.bf16 %v1877, %v1874
        %v1934 = vpack.c.bf16 %v1777, %v1773
        %v1935 = vpack.c.bf16 %v1779, %v1775
        %v1936 = vpack.c.bf16 %v1885, %v1882
        %v1937 = vpack.c.bf16 %v1787, %v1783
        %v1938 = vpack.c.bf16 %v1789, %v1785
        %v1939 = vpack.c.bf16 %v1893, %v1890
        %v1940 = vpack.c.bf16 %v1797, %v1793
        %v1941 = vpack.c.bf16 %v1799, %v1795
        %v1942 = vpack.c.bf16 %v1901, %v1898
        %v1943 = vpack.c.bf16 %v1807, %v1803
        %v1944 = vpack.c.bf16 %v1809, %v1805
        %v1945 = vpack.c.bf16 %v1909, %v1906
        %v1946 = vpack.c.bf16 %v1817, %v1813
        %v1947 = vpack.c.bf16 %v1819, %v1815
        %v1948 = vpack.c.bf16 %v1917, %v1914
        %v1949 = vpack.c.bf16 %v1827, %v1823
        %v1950 = vpack.c.bf16 %v1829, %v1825
        %v1951 = vpack.c.bf16 %v1925, %v1922
        %v1952 = vld [vmem:[%s489] sm:$0x1]
        %v1954 = vlaneseq
        %v1955 = vshrl.u32 %v1954, 7
        %v1956 = vsub.s32 0, %v1955
        %v1957 = vrot.slane %v1952, %v1956
        %v1959 = vsub.f32 1.0, %v1952
        %v1960 = vmul.f32 %v1959, 8.8388346e+10
        %v1962 = vlaneseq
        %v1963 = vshrl.u32 %v1962, 7
        %v1964 = vsub.s32 0, %v1963
        %v1965 = vrot.slane %v1960, %v1964
        %v1967 = vld [vmem:[%s9] sm:$0x1]
        %v1969 = vlaneseq
        %v1970 = vshrl.u32 %v1969, 7
        %v1971 = vsub.s32 0, %v1970
        %v1972 = vrot.slane %v1967, %v1971
        %v1974 = vmul.f32 %v1461, %v1972
        %v1975 = vmul.f32 %v1462, %v1972
        %v1976 = vmul.f32 %v1463, %v1972
        %v1977 = vmul.f32 %v1464, %v1972
        %v1978 = vmul.f32 %v1465, %v1972
        %v1979 = vmul.f32 %v1466, %v1972
        %v1980 = vmul.f32 %v1467, %v1972
        %v1981 = vmul.f32 %v1468, %v1972
        %v1982 = vmul.f32 %v1469, %v1972
        %v1983 = vmul.f32 %v1470, %v1972
        %v1984 = vmul.f32 %v1471, %v1972
        %v1985 = vmul.f32 %v1472, %v1972
        %v1986 = vmul.f32 %v1473, %v1972
        %v1987 = vmul.f32 %v1474, %v1972
        %v1988 = vmul.f32 %v1475, %v1972
        %v1989 = vmul.f32 %v1476, %v1972
        %1990 = vadd.xlane.f32.xlu0 %v1974
        %v1991 = vpop.xlane.xlu0 %1990
        %1992 = vadd.xlane.f32.xlu0 %v1975
        %v1993 = vpop.xlane.xlu0 %1992
        %1994 = vadd.xlane.f32.xlu0 %v1976
        %v1995 = vpop.xlane.xlu0 %1994
        %1996 = vadd.xlane.f32.xlu0 %v1977
        %v1997 = vpop.xlane.xlu0 %1996
        %1998 = vadd.xlane.f32.xlu0 %v1978
        %v1999 = vpop.xlane.xlu0 %1998
        %2000 = vadd.xlane.f32.xlu0 %v1979
        %v2001 = vpop.xlane.xlu0 %2000
        %2002 = vadd.xlane.f32.xlu0 %v1980
        %v2003 = vpop.xlane.xlu0 %2002
        %2004 = vadd.xlane.f32.xlu0 %v1981
        %v2005 = vpop.xlane.xlu0 %2004
        %2006 = vadd.xlane.f32.xlu0 %v1982
        %v2007 = vpop.xlane.xlu0 %2006
        %2008 = vadd.xlane.f32.xlu0 %v1983
        %v2009 = vpop.xlane.xlu0 %2008
        %2010 = vadd.xlane.f32.xlu0 %v1984
        %v2011 = vpop.xlane.xlu0 %2010
        %2012 = vadd.xlane.f32.xlu0 %v1985
        %v2013 = vpop.xlane.xlu0 %2012
        %2014 = vadd.xlane.f32.xlu0 %v1986
        %v2015 = vpop.xlane.xlu0 %2014
        %2016 = vadd.xlane.f32.xlu0 %v1987
        %v2017 = vpop.xlane.xlu0 %2016
        %2018 = vadd.xlane.f32.xlu0 %v1988
        %v2019 = vpop.xlane.xlu0 %2018
        %2020 = vadd.xlane.f32.xlu0 %v1989
        %v2021 = vpop.xlane.xlu0 %2020
        %v2022 = vld [vmem:[%s10] sm:$0x1]
        %v2024 = vlaneseq
        %v2025 = vshrl.u32 %v2024, 7
        %v2026 = vsub.s32 0, %v2025
        %v2027 = vrot.slane %v2022, %v2026
        %v2029 = vadd.f32 %v1991, %v2027
        %v2030 = vadd.f32 %v1993, %v2027
        %v2031 = vadd.f32 %v1995, %v2027
        %v2032 = vadd.f32 %v1997, %v2027
        %v2033 = vadd.f32 %v1999, %v2027
        %v2034 = vadd.f32 %v2001, %v2027
        %v2035 = vadd.f32 %v2003, %v2027
        %v2036 = vadd.f32 %v2005, %v2027
        %v2037 = vadd.f32 %v2007, %v2027
        %v2038 = vadd.f32 %v2009, %v2027
        %v2039 = vadd.f32 %v2011, %v2027
        %v2040 = vadd.f32 %v2013, %v2027
        %v2041 = vadd.f32 %v2015, %v2027
        %v2042 = vadd.f32 %v2017, %v2027
        %v2043 = vadd.f32 %v2019, %v2027
        %v2044 = vadd.f32 %v2021, %v2027
        %2046 = vset.pattern.permute.xlu0 0
        %2047 = vperm.xlu0 %2046, %v2029
        %v2048 = vpop.permute.xlu0 %2047
        %2051 = vset.pattern.permute.xlu0 0
        %2052 = vperm.xlu0 %2051, %v2030
        %v2053 = vpop.permute.xlu0 %2052
        %2056 = vset.pattern.permute.xlu0 0
        %2057 = vperm.xlu0 %2056, %v2031
        %v2058 = vpop.permute.xlu0 %2057
        %2061 = vset.pattern.permute.xlu0 0
        %2062 = vperm.xlu0 %2061, %v2032
        %v2063 = vpop.permute.xlu0 %2062
        %2066 = vset.pattern.permute.xlu0 0
        %2067 = vperm.xlu0 %2066, %v2033
        %v2068 = vpop.permute.xlu0 %2067
        %2071 = vset.pattern.permute.xlu0 0
        %2072 = vperm.xlu0 %2071, %v2034
        %v2073 = vpop.permute.xlu0 %2072
        %2076 = vset.pattern.permute.xlu0 0
        %2077 = vperm.xlu0 %2076, %v2035
        %v2078 = vpop.permute.xlu0 %2077
        %2081 = vset.pattern.permute.xlu0 0
        %2082 = vperm.xlu0 %2081, %v2036
        %v2083 = vpop.permute.xlu0 %2082
        %2086 = vset.pattern.permute.xlu0 0
        %2087 = vperm.xlu0 %2086, %v2037
        %v2088 = vpop.permute.xlu0 %2087
        %2091 = vset.pattern.permute.xlu0 0
        %2092 = vperm.xlu0 %2091, %v2038
        %v2093 = vpop.permute.xlu0 %2092
        %2096 = vset.pattern.permute.xlu0 0
        %2097 = vperm.xlu0 %2096, %v2039
        %v2098 = vpop.permute.xlu0 %2097
        %2101 = vset.pattern.permute.xlu0 0
        %2102 = vperm.xlu0 %2101, %v2040
        %v2103 = vpop.permute.xlu0 %2102
        %2106 = vset.pattern.permute.xlu0 0
        %2107 = vperm.xlu0 %2106, %v2041
        %v2108 = vpop.permute.xlu0 %2107
        %2111 = vset.pattern.permute.xlu0 0
        %2112 = vperm.xlu0 %2111, %v2042
        %v2113 = vpop.permute.xlu0 %2112
        %2116 = vset.pattern.permute.xlu0 0
        %2117 = vperm.xlu0 %2116, %v2043
        %v2118 = vpop.permute.xlu0 %2117
        %2121 = vset.pattern.permute.xlu0 0
        %2122 = vperm.xlu0 %2121, %v2044
        %v2123 = vpop.permute.xlu0 %2122
        %2125 = vmatprep.subr.bf16.mxu0 0
        %2126 = vmatpush1.bf16.xpose.msra.mxu0 %v1533
        %2127 = vmatprep.subr.bf16.mxu0 0
        %2128 = vmatpush1.bf16.xpose.msra.mxu0 %v1534
        %2129 = vmatprep.subr.bf16.mxu0 0
        %2130 = vmatpush1.bf16.xpose.msra.mxu0 %v1535
        %2131 = vmatprep.subr.bf16.mxu0 0
        %2132 = vmatpush1.bf16.xpose.msra.mxu0 %v1536
        %2133 = vmatprep.subr.bf16.mxu0 0
        %2134 = vmatpush1.bf16.xpose.msra.mxu0 %v1537
        %2135 = vmatprep.subr.bf16.mxu0 0
        %2136 = vmatpush1.bf16.xpose.msra.mxu0 %v1538
        %2137 = vmatprep.subr.bf16.mxu0 0
        %2138 = vmatpush1.bf16.xpose.msra.mxu0 %v1539
        %2139 = vmatprep.subr.bf16.mxu0 0
        %2140 = vmatpush1.bf16.xpose.msra.mxu0 %v1540
        %2141 = vmatprep.subr.bf16.mxu0 0
        %2142 = vmatpush1.bf16.xpose.msra.mxu0 0
        %2143 = vmatprep.subr.bf16.mxu0 0
        %2144 = vmatpush1.bf16.xpose.msra.mxu0 0
        %2145 = vmatprep.subr.bf16.mxu0 0
        %2146 = vmatpush1.bf16.xpose.msra.mxu0 0
        %2147 = vmatprep.subr.bf16.mxu0 0
        %2148 = vmatpush1.bf16.xpose.msra.mxu0 0
        %2149 = vmatprep.subr.bf16.mxu0 0
        %2150 = vmatpush1.bf16.xpose.msra.mxu0 0
        %2151 = vmatprep.subr.bf16.mxu0 0
        %2152 = vmatpush1.bf16.xpose.msra.mxu0 0
        %2153 = vmatprep.subr.bf16.mxu0 0
        %2154 = vmatpush1.bf16.xpose.msra.mxu0 0
        %2155 = vmatprep.subr.bf16.mxu0 0
        %2156 = vmatpush1.bf16.xpose.msra.mxu0 0
        %2157 = vmatprep.mubr.bf16.mxu0 0
        %2158 = vmatmul.mubr.bf16.gmra.mrb[0].mxu0 %v1928
        %v2159 = vpop.f32.mrb[0].mxu0
        %v2160 = vadd.f32 %v2048, %v2159
        %v2161 = vpop.f32.mrb[0].mxu0
        %v2162 = vpop.f32.mrb[0].mxu0
        %v2163 = vadd.f32 %v2053, %v2162
        %v2164 = vpop.f32.mrb[0].mxu0
        %2165 = vmatprep.mubr.bf16.mxu0 0
        %2166 = vmatmul.mubr.bf16.gmra.mrb[0].mxu0 %v1931
        %v2167 = vpop.f32.mrb[0].mxu0
        %v2168 = vadd.f32 %v2058, %v2167
        %v2169 = vpop.f32.mrb[0].mxu0
        %v2170 = vpop.f32.mrb[0].mxu0
        %v2171 = vadd.f32 %v2063, %v2170
        %v2172 = vpop.f32.mrb[0].mxu0
        %2173 = vmatprep.mubr.bf16.mxu0 0
        %2174 = vmatmul.mubr.bf16.gmra.mrb[0].mxu0 %v1934
        %v2175 = vpop.f32.mrb[0].mxu0
        %v2176 = vadd.f32 %v2068, %v2175
        %v2177 = vpop.f32.mrb[0].mxu0
        %v2178 = vpop.f32.mrb[0].mxu0
        %v2179 = vadd.f32 %v2073, %v2178
        %v2180 = vpop.f32.mrb[0].mxu0
        %2181 = vmatprep.mubr.bf16.mxu0 0
        %2182 = vmatmul.mubr.bf16.gmra.mrb[0].mxu0 %v1937
        %v2183 = vpop.f32.mrb[0].mxu0
        %v2184 = vadd.f32 %v2078, %v2183
        %v2185 = vpop.f32.mrb[0].mxu0
        %v2186 = vpop.f32.mrb[0].mxu0
        %v2187 = vadd.f32 %v2083, %v2186
        %v2188 = vpop.f32.mrb[0].mxu0
        %2189 = vmatprep.mubr.bf16.mxu0 0
        %2190 = vmatmul.mubr.bf16.gmra.mrb[0].mxu0 %v1940
        %v2191 = vpop.f32.mrb[0].mxu0
        %v2192 = vadd.f32 %v2088, %v2191
        %v2193 = vpop.f32.mrb[0].mxu0
        %v2194 = vpop.f32.mrb[0].mxu0
        %v2195 = vadd.f32 %v2093, %v2194
        %v2196 = vpop.f32.mrb[0].mxu0
        %2197 = vmatprep.mubr.bf16.mxu0 0
        %2198 = vmatmul.mubr.bf16.gmra.mrb[0].mxu0 %v1943
        %v2199 = vpop.f32.mrb[0].mxu0
        %v2200 = vadd.f32 %v2098, %v2199
        %v2201 = vpop.f32.mrb[0].mxu0
        %v2202 = vpop.f32.mrb[0].mxu0
        %v2203 = vadd.f32 %v2103, %v2202
        %v2204 = vpop.f32.mrb[0].mxu0
        %2205 = vmatprep.mubr.bf16.mxu0 0
        %2206 = vmatmul.mubr.bf16.gmra.mrb[0].mxu0 %v1946
        %v2207 = vpop.f32.mrb[0].mxu0
        %v2208 = vadd.f32 %v2108, %v2207
        %v2209 = vpop.f32.mrb[0].mxu0
        %v2210 = vpop.f32.mrb[0].mxu0
        %v2211 = vadd.f32 %v2113, %v2210
        %v2212 = vpop.f32.mrb[0].mxu0
        %2213 = vmatprep.mubr.bf16.mxu0 0
        %2214 = vmatmul.mubr.bf16.gmra.mrb[0].mxu0 %v1949
        %v2215 = vpop.f32.mrb[0].mxu0
        %v2216 = vadd.f32 %v2118, %v2215
        %v2217 = vpop.f32.mrb[0].mxu0
        %v2218 = vpop.f32.mrb[0].mxu0
        %v2219 = vadd.f32 %v2123, %v2218
        %v2220 = vpop.f32.mrb[0].mxu0
        %2221 = vdwg.mxu0
        %v2222 = vmul.f32 %v2160, %v1957
        %v2223 = vmul.f32 %v2163, %v1957
        %v2224 = vmul.f32 %v2168, %v1957
        %v2225 = vmul.f32 %v2171, %v1957
        %v2226 = vmul.f32 %v2176, %v1957
        %v2227 = vmul.f32 %v2179, %v1957
        %v2228 = vmul.f32 %v2184, %v1957
        %v2229 = vmul.f32 %v2187, %v1957
        %v2230 = vmul.f32 %v2192, %v1957
        %v2231 = vmul.f32 %v2195, %v1957
        %v2232 = vmul.f32 %v2200, %v1957
        %v2233 = vmul.f32 %v2203, %v1957
        %v2234 = vmul.f32 %v2208, %v1957
        %v2235 = vmul.f32 %v2211, %v1957
        %v2236 = vmul.f32 %v2216, %v1957
        %v2237 = vmul.f32 %v2219, %v1957
        %v2238 = vsub.f32 %v2222, %v1965
        %v2239 = vsub.f32 %v2223, %v1965
        %v2240 = vsub.f32 %v2224, %v1965
        %v2241 = vsub.f32 %v2225, %v1965
        %v2242 = vsub.f32 %v2226, %v1965
        %v2243 = vsub.f32 %v2227, %v1965
        %v2244 = vsub.f32 %v2228, %v1965
        %v2245 = vsub.f32 %v2229, %v1965
        %v2246 = vsub.f32 %v2230, %v1965
        %v2247 = vsub.f32 %v2231, %v1965
        %v2248 = vsub.f32 %v2232, %v1965
        %v2249 = vsub.f32 %v2233, %v1965
        %v2250 = vsub.f32 %v2234, %v1965
        %v2251 = vsub.f32 %v2235, %v1965
        %v2252 = vsub.f32 %v2236, %v1965
        %v2253 = vsub.f32 %v2237, %v1965
        %2254 = vst [vmem:[%s561] sm:$0xff] %v2238
        %2255 = vst [vmem:[%s561 + $0x8] sm:$0xff] %v2239
        %2256 = vst [vmem:[%s561 + $0x10] sm:$0xff] %v2240
        %2257 = vst [vmem:[%s561 + $0x18] sm:$0xff] %v2241
        %2258 = vst [vmem:[%s561 + $0x20] sm:$0xff] %v2242
        %2259 = vst [vmem:[%s561 + $0x28] sm:$0xff] %v2243
        %2260 = vst [vmem:[%s561 + $0x30] sm:$0xff] %v2244
        %2261 = vst [vmem:[%s561 + $0x38] sm:$0xff] %v2245
        %2262 = vst [vmem:[%s561 + $0x40] sm:$0xff] %v2246
        %2263 = vst [vmem:[%s561 + $0x48] sm:$0xff] %v2247
        %2264 = vst [vmem:[%s561 + $0x50] sm:$0xff] %v2248
        %2265 = vst [vmem:[%s561 + $0x58] sm:$0xff] %v2249
        %2266 = vst [vmem:[%s561 + $0x60] sm:$0xff] %v2250
        %2267 = vst [vmem:[%s561 + $0x68] sm:$0xff] %v2251
        %2268 = vst [vmem:[%s561 + $0x70] sm:$0xff] %v2252
        %2269 = vst [vmem:[%s561 + $0x78] sm:$0xff] %v2253
        %v2270 = vld [vmem:[%s498] sm:$0xff]
        %v2271 = vld [vmem:[%s498 + $0x8] sm:$0xff]
        %v2272 = vld [vmem:[%s498 + $0x10] sm:$0xff]
        %v2273 = vld [vmem:[%s498 + $0x18] sm:$0xff]
        %v2274 = vunpack.c.0.s8 %v2270
        %v2275 = vunpack.c.1.s8 %v2270
        %v2276 = vunpack.c.2.s8 %v2270
        %v2277 = vunpack.c.3.s8 %v2270
        %v2278 = vunpack.c.0.s8 %v2271
        %v2279 = vunpack.c.1.s8 %v2271
        %v2280 = vunpack.c.2.s8 %v2271
        %v2281 = vunpack.c.3.s8 %v2271
        %v2282 = vunpack.c.0.s8 %v2272
        %v2283 = vunpack.c.1.s8 %v2272
        %v2284 = vunpack.c.2.s8 %v2272
        %v2285 = vunpack.c.3.s8 %v2272
        %v2286 = vunpack.c.0.s8 %v2273
        %v2287 = vunpack.c.1.s8 %v2273
        %v2288 = vunpack.c.2.s8 %v2273
        %v2289 = vunpack.c.3.s8 %v2273
        %v2290 = vcvt.s32.f32 %v2274
        %v2291 = vcvt.s32.f32 %v2275
        %v2292 = vcvt.s32.f32 %v2276
        %v2293 = vcvt.s32.f32 %v2277
        %v2294 = vcvt.s32.f32 %v2278
        %v2295 = vcvt.s32.f32 %v2279
        %v2296 = vcvt.s32.f32 %v2280
        %v2297 = vcvt.s32.f32 %v2281
        %v2298 = vcvt.s32.f32 %v2282
        %v2299 = vcvt.s32.f32 %v2283
        %v2300 = vcvt.s32.f32 %v2284
        %v2301 = vcvt.s32.f32 %v2285
        %v2302 = vcvt.s32.f32 %v2286
        %v2303 = vcvt.s32.f32 %v2287
        %v2304 = vcvt.s32.f32 %v2288
        %v2305 = vcvt.s32.f32 %v2289
        %v2306 = vmul.f32 %v2290, 2.0
        %v2307 = vmul.f32 %v2291, 2.0
        %v2308 = vmul.f32 %v2292, 2.0
        %v2309 = vmul.f32 %v2293, 2.0
        %v2310 = vmul.f32 %v2294, 2.0
        %v2311 = vmul.f32 %v2295, 2.0
        %v2312 = vmul.f32 %v2296, 2.0
        %v2313 = vmul.f32 %v2297, 2.0
        %v2314 = vmul.f32 %v2298, 2.0
        %v2315 = vmul.f32 %v2299, 2.0
        %v2316 = vmul.f32 %v2300, 2.0
        %v2317 = vmul.f32 %v2301, 2.0
        %v2318 = vmul.f32 %v2302, 2.0
        %v2319 = vmul.f32 %v2303, 2.0
        %v2320 = vmul.f32 %v2304, 2.0
        %v2321 = vmul.f32 %v2305, 2.0
        %v2322 = vsub.f32 1.0, %v2306
        %v2323 = vsub.f32 1.0, %v2307
        %v2324 = vsub.f32 1.0, %v2308
        %v2325 = vsub.f32 1.0, %v2309
        %v2326 = vsub.f32 1.0, %v2310
        %v2327 = vsub.f32 1.0, %v2311
        %v2328 = vsub.f32 1.0, %v2312
        %v2329 = vsub.f32 1.0, %v2313
        %v2330 = vsub.f32 1.0, %v2314
        %v2331 = vsub.f32 1.0, %v2315
        %v2332 = vsub.f32 1.0, %v2316
        %v2333 = vsub.f32 1.0, %v2317
        %v2334 = vsub.f32 1.0, %v2318
        %v2335 = vsub.f32 1.0, %v2319
        %v2336 = vsub.f32 1.0, %v2320
        %v2337 = vsub.f32 1.0, %v2321
        %v2338 = vmul.f32 %v2322, %v2238
        %v2339 = vmul.f32 %v2323, %v2239
        %v2340 = vmul.f32 %v2324, %v2240
        %v2341 = vmul.f32 %v2325, %v2241
        %v2342 = vmul.f32 %v2326, %v2242
        %v2343 = vmul.f32 %v2327, %v2243
        %v2344 = vmul.f32 %v2328, %v2244
        %v2345 = vmul.f32 %v2329, %v2245
        %v2346 = vmul.f32 %v2330, %v2246
        %v2347 = vmul.f32 %v2331, %v2247
        %v2348 = vmul.f32 %v2332, %v2248
        %v2349 = vmul.f32 %v2333, %v2249
        %v2350 = vmul.f32 %v2334, %v2250
        %v2351 = vmul.f32 %v2335, %v2251
        %v2352 = vmul.f32 %v2336, %v2252
        %v2353 = vmul.f32 %v2337, %v2253
        %v2354 = vmul.f32 %v2290, 1e+12
        %v2355 = vmul.f32 %v2291, 1e+12
        %v2356 = vmul.f32 %v2292, 1e+12
        %v2357 = vmul.f32 %v2293, 1e+12
        %v2358 = vmul.f32 %v2294, 1e+12
        %v2359 = vmul.f32 %v2295, 1e+12
        %v2360 = vmul.f32 %v2296, 1e+12
        %v2361 = vmul.f32 %v2297, 1e+12
        %v2362 = vmul.f32 %v2298, 1e+12
        %v2363 = vmul.f32 %v2299, 1e+12
        %v2364 = vmul.f32 %v2300, 1e+12
        %v2365 = vmul.f32 %v2301, 1e+12
        %v2366 = vmul.f32 %v2302, 1e+12
        %v2367 = vmul.f32 %v2303, 1e+12
        %v2368 = vmul.f32 %v2304, 1e+12
        %v2369 = vmul.f32 %v2305, 1e+12
        %v2370 = vsub.f32 %v2338, %v2354
        %v2371 = vsub.f32 %v2339, %v2355
        %v2372 = vsub.f32 %v2340, %v2356
        %v2373 = vsub.f32 %v2341, %v2357
        %v2374 = vsub.f32 %v2342, %v2358
        %v2375 = vsub.f32 %v2343, %v2359
        %v2376 = vsub.f32 %v2344, %v2360
        %v2377 = vsub.f32 %v2345, %v2361
        %v2378 = vsub.f32 %v2346, %v2362
        %v2379 = vsub.f32 %v2347, %v2363
        %v2380 = vsub.f32 %v2348, %v2364
        %v2381 = vsub.f32 %v2349, %v2365
        %v2382 = vsub.f32 %v2350, %v2366
        %v2383 = vsub.f32 %v2351, %v2367
        %v2384 = vsub.f32 %v2352, %v2368
        %v2385 = vsub.f32 %v2353, %v2369
        %v2386 = vsub.f32 1.0, %v2290
        %v2387 = vsub.f32 1.0, %v2291
        %v2388 = vsub.f32 1.0, %v2292
        %v2389 = vsub.f32 1.0, %v2293
        %v2390 = vsub.f32 1.0, %v2294
        %v2391 = vsub.f32 1.0, %v2295
        %v2392 = vsub.f32 1.0, %v2296
        %v2393 = vsub.f32 1.0, %v2297
        %v2394 = vsub.f32 1.0, %v2298
        %v2395 = vsub.f32 1.0, %v2299
        %v2396 = vsub.f32 1.0, %v2300
        %v2397 = vsub.f32 1.0, %v2301
        %v2398 = vsub.f32 1.0, %v2302
        %v2399 = vsub.f32 1.0, %v2303
        %v2400 = vsub.f32 1.0, %v2304
        %v2401 = vsub.f32 1.0, %v2305
        %v2402 = vmul.f32 %v2386, 1e+12
        %v2403 = vmul.f32 %v2387, 1e+12
        %v2404 = vmul.f32 %v2388, 1e+12
        %v2405 = vmul.f32 %v2389, 1e+12
        %v2406 = vmul.f32 %v2390, 1e+12
        %v2407 = vmul.f32 %v2391, 1e+12
        %v2408 = vmul.f32 %v2392, 1e+12
        %v2409 = vmul.f32 %v2393, 1e+12
        %v2410 = vmul.f32 %v2394, 1e+12
        %v2411 = vmul.f32 %v2395, 1e+12
        %v2412 = vmul.f32 %v2396, 1e+12
        %v2413 = vmul.f32 %v2397, 1e+12
        %v2414 = vmul.f32 %v2398, 1e+12
        %v2415 = vmul.f32 %v2399, 1e+12
        %v2416 = vmul.f32 %v2400, 1e+12
        %v2417 = vmul.f32 %v2401, 1e+12
        %v2418 = vsub.f32 %v2338, %v2402
        %v2419 = vsub.f32 %v2339, %v2403
        %v2420 = vsub.f32 %v2340, %v2404
        %v2421 = vsub.f32 %v2341, %v2405
        %v2422 = vsub.f32 %v2342, %v2406
        %v2423 = vsub.f32 %v2343, %v2407
        %v2424 = vsub.f32 %v2344, %v2408
        %v2425 = vsub.f32 %v2345, %v2409
        %v2426 = vsub.f32 %v2346, %v2410
        %v2427 = vsub.f32 %v2347, %v2411
        %v2428 = vsub.f32 %v2348, %v2412
        %v2429 = vsub.f32 %v2349, %v2413
        %v2430 = vsub.f32 %v2350, %v2414
        %v2431 = vsub.f32 %v2351, %v2415
        %v2432 = vsub.f32 %v2352, %v2416
        %v2433 = vsub.f32 %v2353, %v2417
        %2434 = vmax.xlane.f32.xlu0 %v2370
        %v2435 = vpop.xlane.xlu0 %2434
        %2436 = vmax.xlane.f32.xlu0 %v2371
        %v2437 = vpop.xlane.xlu0 %2436
        %2438 = vmax.xlane.f32.xlu0 %v2372
        %v2439 = vpop.xlane.xlu0 %2438
        %2440 = vmax.xlane.f32.xlu0 %v2373
        %v2441 = vpop.xlane.xlu0 %2440
        %2442 = vmax.xlane.f32.xlu0 %v2374
        %v2443 = vpop.xlane.xlu0 %2442
        %2444 = vmax.xlane.f32.xlu0 %v2375
        %v2445 = vpop.xlane.xlu0 %2444
        %2446 = vmax.xlane.f32.xlu0 %v2376
        %v2447 = vpop.xlane.xlu0 %2446
        %2448 = vmax.xlane.f32.xlu0 %v2377
        %v2449 = vpop.xlane.xlu0 %2448
        %2450 = vmax.xlane.f32.xlu0 %v2378
        %v2451 = vpop.xlane.xlu0 %2450
        %2452 = vmax.xlane.f32.xlu0 %v2379
        %v2453 = vpop.xlane.xlu0 %2452
        %2454 = vmax.xlane.f32.xlu0 %v2380
        %v2455 = vpop.xlane.xlu0 %2454
        %2456 = vmax.xlane.f32.xlu0 %v2381
        %v2457 = vpop.xlane.xlu0 %2456
        %2458 = vmax.xlane.f32.xlu0 %v2382
        %v2459 = vpop.xlane.xlu0 %2458
        %2460 = vmax.xlane.f32.xlu0 %v2383
        %v2461 = vpop.xlane.xlu0 %2460
        %2462 = vmax.xlane.f32.xlu0 %v2384
        %v2463 = vpop.xlane.xlu0 %2462
        %2464 = vmax.xlane.f32.xlu0 %v2385
        %v2465 = vpop.xlane.xlu0 %2464
        %v2466 = vmax.f32 %v2435, %v2443
        %v2467 = vmax.f32 %v2437, %v2445
        %v2468 = vmax.f32 %v2439, %v2447
        %v2469 = vmax.f32 %v2441, %v2449
        %v2470 = vmax.f32 %v2466, %v2451
        %v2471 = vmax.f32 %v2467, %v2453
        %v2472 = vmax.f32 %v2468, %v2455
        %v2473 = vmax.f32 %v2469, %v2457
        %v2474 = vmax.f32 %v2470, %v2459
        %v2475 = vmax.f32 %v2471, %v2461
        %v2476 = vmax.f32 %v2472, %v2463
        %v2477 = vmax.f32 %v2473, %v2465
        %v2478 = vmax.f32 %v2474, %v2475
        %v2479 = vmax.f32 %v2476, %v2477
        %v2480 = vmax.f32 %v2478, %v2479
        %v2481 = vrot.slane %v2480, 4
        %v2482 = vmax.f32 %v2480, %v2481
        %v2483 = vrot.slane %v2482, 2
        %v2484 = vmax.f32 %v2482, %v2483
        %v2485 = vrot.slane %v2484, 1
        %v2486 = vmax.f32 %v2484, %v2485
        %v2487 = vmax.f32 %v2486, 0.0
        %v2488 = vsub.f32 %v2370, %v2487
        %v2489 = vsub.f32 %v2371, %v2487
        %v2490 = vsub.f32 %v2372, %v2487
        %v2491 = vsub.f32 %v2373, %v2487
        %v2492 = vsub.f32 %v2374, %v2487
        %v2493 = vsub.f32 %v2375, %v2487
        %v2494 = vsub.f32 %v2376, %v2487
        %v2495 = vsub.f32 %v2377, %v2487
        %v2496 = vsub.f32 %v2378, %v2487
        %v2497 = vsub.f32 %v2379, %v2487
        %v2498 = vsub.f32 %v2380, %v2487
        %v2499 = vsub.f32 %v2381, %v2487
        %v2500 = vsub.f32 %v2382, %v2487
        %v2501 = vsub.f32 %v2383, %v2487
        %v2502 = vsub.f32 %v2384, %v2487
        %v2503 = vsub.f32 %v2385, %v2487
        %v2504 = vmul.f32 %v2488, 1.442695
        %v2505 = vpow.pop %v2504
        %v2506 = vmul.f32 %v2489, 1.442695
        %v2507 = vpow.pop %v2506
        %v2508 = vmul.f32 %v2490, 1.442695
        %v2509 = vpow.pop %v2508
        %v2510 = vmul.f32 %v2491, 1.442695
        %v2511 = vpow.pop %v2510
        %v2512 = vmul.f32 %v2492, 1.442695
        %v2513 = vpow.pop %v2512
        %v2514 = vmul.f32 %v2493, 1.442695
        %v2515 = vpow.pop %v2514
        %v2516 = vmul.f32 %v2494, 1.442695
        %v2517 = vpow.pop %v2516
        %v2518 = vmul.f32 %v2495, 1.442695
        %v2519 = vpow.pop %v2518
        %v2520 = vmul.f32 %v2496, 1.442695
        %v2521 = vpow.pop %v2520
        %v2522 = vmul.f32 %v2497, 1.442695
        %v2523 = vpow.pop %v2522
        %v2524 = vmul.f32 %v2498, 1.442695
        %v2525 = vpow.pop %v2524
        %v2526 = vmul.f32 %v2499, 1.442695
        %v2527 = vpow.pop %v2526
        %v2528 = vmul.f32 %v2500, 1.442695
        %v2529 = vpow.pop %v2528
        %v2530 = vmul.f32 %v2501, 1.442695
        %v2531 = vpow.pop %v2530
        %v2532 = vmul.f32 %v2502, 1.442695
        %v2533 = vpow.pop %v2532
        %v2534 = vmul.f32 %v2503, 1.442695
        %v2535 = vpow.pop %v2534
        %2536 = vadd.xlane.f32.xlu0 %v2505
        %v2537 = vpop.xlane.xlu0 %2536
        %2538 = vadd.xlane.f32.xlu0 %v2507
        %v2539 = vpop.xlane.xlu0 %2538
        %2540 = vadd.xlane.f32.xlu0 %v2509
        %v2541 = vpop.xlane.xlu0 %2540
        %2542 = vadd.xlane.f32.xlu0 %v2511
        %v2543 = vpop.xlane.xlu0 %2542
        %2544 = vadd.xlane.f32.xlu0 %v2513
        %v2545 = vpop.xlane.xlu0 %2544
        %2546 = vadd.xlane.f32.xlu0 %v2515
        %v2547 = vpop.xlane.xlu0 %2546
        %2548 = vadd.xlane.f32.xlu0 %v2517
        %v2549 = vpop.xlane.xlu0 %2548
        %2550 = vadd.xlane.f32.xlu0 %v2519
        %v2551 = vpop.xlane.xlu0 %2550
        %2552 = vadd.xlane.f32.xlu0 %v2521
        %v2553 = vpop.xlane.xlu0 %2552
        %2554 = vadd.xlane.f32.xlu0 %v2523
        %v2555 = vpop.xlane.xlu0 %2554
        %2556 = vadd.xlane.f32.xlu0 %v2525
        %v2557 = vpop.xlane.xlu0 %2556
        %2558 = vadd.xlane.f32.xlu0 %v2527
        %v2559 = vpop.xlane.xlu0 %2558
        %2560 = vadd.xlane.f32.xlu0 %v2529
        %v2561 = vpop.xlane.xlu0 %2560
        %2562 = vadd.xlane.f32.xlu0 %v2531
        %v2563 = vpop.xlane.xlu0 %2562
        %2564 = vadd.xlane.f32.xlu0 %v2533
        %v2565 = vpop.xlane.xlu0 %2564
        %2566 = vadd.xlane.f32.xlu0 %v2535
        %v2567 = vpop.xlane.xlu0 %2566
        %v2568 = vadd.f32 %v2537, %v2539
        %v2569 = vadd.f32 %v2568, %v2541
        %v2570 = vadd.f32 %v2569, %v2543
        %v2571 = vadd.f32 %v2570, %v2545
        %v2572 = vadd.f32 %v2571, %v2547
        %v2573 = vadd.f32 %v2572, %v2549
        %v2574 = vadd.f32 %v2573, %v2551
        %v2575 = vadd.f32 %v2574, %v2553
        %v2576 = vadd.f32 %v2575, %v2555
        %v2577 = vadd.f32 %v2576, %v2557
        %v2578 = vadd.f32 %v2577, %v2559
        %v2579 = vadd.f32 %v2578, %v2561
        %v2580 = vadd.f32 %v2579, %v2563
        %v2581 = vadd.f32 %v2580, %v2565
        %v2582 = vadd.f32 %v2581, %v2567
        %v2583 = vrot.slane %v2582, 4
        %v2584 = vadd.f32 %v2582, %v2583
        %v2585 = vrot.slane %v2584, 2
        %v2586 = vadd.f32 %v2584, %v2585
        %v2587 = vrot.slane %v2586, 1
        %v2588 = vadd.f32 %v2586, %v2587
        %v2589 = vsub.f32 0.0, %v2487
        %v2590 = vmul.f32 %v2589, 1.442695
        %v2591 = vpow.pop %v2590
        %v2592 = vadd.f32 %v2588, %v2591
        %v2593 = vlog2.pop %v2592
        %v2594 = vmul.f32 %v2593, 0.6931472
        %v2595 = vadd.f32 %v2487, %v2594
        %2596 = vmax.xlane.f32.xlu0 %v2418
        %v2597 = vpop.xlane.xlu0 %2596
        %2598 = vmax.xlane.f32.xlu0 %v2419
        %v2599 = vpop.xlane.xlu0 %2598
        %2600 = vmax.xlane.f32.xlu0 %v2420
        %v2601 = vpop.xlane.xlu0 %2600
        %2602 = vmax.xlane.f32.xlu0 %v2421
        %v2603 = vpop.xlane.xlu0 %2602
        %2604 = vmax.xlane.f32.xlu0 %v2422
        %v2605 = vpop.xlane.xlu0 %2604
        %2606 = vmax.xlane.f32.xlu0 %v2423
        %v2607 = vpop.xlane.xlu0 %2606
        %2608 = vmax.xlane.f32.xlu0 %v2424
        %v2609 = vpop.xlane.xlu0 %2608
        %2610 = vmax.xlane.f32.xlu0 %v2425
        %v2611 = vpop.xlane.xlu0 %2610
        %2612 = vmax.xlane.f32.xlu0 %v2426
        %v2613 = vpop.xlane.xlu0 %2612
        %2614 = vmax.xlane.f32.xlu0 %v2427
        %v2615 = vpop.xlane.xlu0 %2614
        %2616 = vmax.xlane.f32.xlu0 %v2428
        %v2617 = vpop.xlane.xlu0 %2616
        %2618 = vmax.xlane.f32.xlu0 %v2429
        %v2619 = vpop.xlane.xlu0 %2618
        %2620 = vmax.xlane.f32.xlu0 %v2430
        %v2621 = vpop.xlane.xlu0 %2620
        %2622 = vmax.xlane.f32.xlu0 %v2431
        %v2623 = vpop.xlane.xlu0 %2622
        %2624 = vmax.xlane.f32.xlu0 %v2432
        %v2625 = vpop.xlane.xlu0 %2624
        %2626 = vmax.xlane.f32.xlu0 %v2433
        %v2627 = vpop.xlane.xlu0 %2626
        %v2628 = vmax.f32 %v2597, %v2605
        %v2629 = vmax.f32 %v2599, %v2607
        %v2630 = vmax.f32 %v2601, %v2609
        %v2631 = vmax.f32 %v2603, %v2611
        %v2632 = vmax.f32 %v2628, %v2613
        %v2633 = vmax.f32 %v2629, %v2615
        %v2634 = vmax.f32 %v2630, %v2617
        %v2635 = vmax.f32 %v2631, %v2619
        %v2636 = vmax.f32 %v2632, %v2621
        %v2637 = vmax.f32 %v2633, %v2623
        %v2638 = vmax.f32 %v2634, %v2625
        %v2639 = vmax.f32 %v2635, %v2627
        %v2640 = vmax.f32 %v2636, %v2637
        %v2641 = vmax.f32 %v2638, %v2639
        %v2642 = vmax.f32 %v2640, %v2641
        %v2643 = vrot.slane %v2642, 4
        %v2644 = vmax.f32 %v2642, %v2643
        %v2645 = vrot.slane %v2644, 2
        %v2646 = vmax.f32 %v2644, %v2645
        %v2647 = vrot.slane %v2646, 1
        %v2648 = vmax.f32 %v2646, %v2647
        %v2649 = vmax.f32 %v2648, 0.0
        %v2650 = vsub.f32 %v2418, %v2649
        %v2651 = vsub.f32 %v2419, %v2649
        %v2652 = vsub.f32 %v2420, %v2649
        %v2653 = vsub.f32 %v2421, %v2649
        %v2654 = vsub.f32 %v2422, %v2649
        %v2655 = vsub.f32 %v2423, %v2649
        %v2656 = vsub.f32 %v2424, %v2649
        %v2657 = vsub.f32 %v2425, %v2649
        %v2658 = vsub.f32 %v2426, %v2649
        %v2659 = vsub.f32 %v2427, %v2649
        %v2660 = vsub.f32 %v2428, %v2649
        %v2661 = vsub.f32 %v2429, %v2649
        %v2662 = vsub.f32 %v2430, %v2649
        %v2663 = vsub.f32 %v2431, %v2649
        %v2664 = vsub.f32 %v2432, %v2649
        %v2665 = vsub.f32 %v2433, %v2649
        %v2666 = vmul.f32 %v2650, 1.442695
        %v2667 = vpow.pop %v2666
        %v2668 = vmul.f32 %v2651, 1.442695
        %v2669 = vpow.pop %v2668
        %v2670 = vmul.f32 %v2652, 1.442695
        %v2671 = vpow.pop %v2670
        %v2672 = vmul.f32 %v2653, 1.442695
        %v2673 = vpow.pop %v2672
        %v2674 = vmul.f32 %v2654, 1.442695
        %v2675 = vpow.pop %v2674
        %v2676 = vmul.f32 %v2655, 1.442695
        %v2677 = vpow.pop %v2676
        %v2678 = vmul.f32 %v2656, 1.442695
        %v2679 = vpow.pop %v2678
        %v2680 = vmul.f32 %v2657, 1.442695
        %v2681 = vpow.pop %v2680
        %v2682 = vmul.f32 %v2658, 1.442695
        %v2683 = vpow.pop %v2682
        %v2684 = vmul.f32 %v2659, 1.442695
        %v2685 = vpow.pop %v2684
        %v2686 = vmul.f32 %v2660, 1.442695
        %v2687 = vpow.pop %v2686
        %v2688 = vmul.f32 %v2661, 1.442695
        %v2689 = vpow.pop %v2688
        %v2690 = vmul.f32 %v2662, 1.442695
        %v2691 = vpow.pop %v2690
        %v2692 = vmul.f32 %v2663, 1.442695
        %v2693 = vpow.pop %v2692
        %v2694 = vmul.f32 %v2664, 1.442695
        %v2695 = vpow.pop %v2694
        %v2696 = vmul.f32 %v2665, 1.442695
        %v2697 = vpow.pop %v2696
        %2698 = vadd.xlane.f32.xlu0 %v2667
        %v2699 = vpop.xlane.xlu0 %2698
        %2700 = vadd.xlane.f32.xlu0 %v2669
        %v2701 = vpop.xlane.xlu0 %2700
        %2702 = vadd.xlane.f32.xlu0 %v2671
        %v2703 = vpop.xlane.xlu0 %2702
        %2704 = vadd.xlane.f32.xlu0 %v2673
        %v2705 = vpop.xlane.xlu0 %2704
        %2706 = vadd.xlane.f32.xlu0 %v2675
        %v2707 = vpop.xlane.xlu0 %2706
        %2708 = vadd.xlane.f32.xlu0 %v2677
        %v2709 = vpop.xlane.xlu0 %2708
        %2710 = vadd.xlane.f32.xlu0 %v2679
        %v2711 = vpop.xlane.xlu0 %2710
        %2712 = vadd.xlane.f32.xlu0 %v2681
        %v2713 = vpop.xlane.xlu0 %2712
        %2714 = vadd.xlane.f32.xlu0 %v2683
        %v2715 = vpop.xlane.xlu0 %2714
        %2716 = vadd.xlane.f32.xlu0 %v2685
        %v2717 = vpop.xlane.xlu0 %2716
        %2718 = vadd.xlane.f32.xlu0 %v2687
        %v2719 = vpop.xlane.xlu0 %2718
        %2720 = vadd.xlane.f32.xlu0 %v2689
        %v2721 = vpop.xlane.xlu0 %2720
        %2722 = vadd.xlane.f32.xlu0 %v2691
        %v2723 = vpop.xlane.xlu0 %2722
        %2724 = vadd.xlane.f32.xlu0 %v2693
        %v2725 = vpop.xlane.xlu0 %2724
        %2726 = vadd.xlane.f32.xlu0 %v2695
        %v2727 = vpop.xlane.xlu0 %2726
        %2728 = vadd.xlane.f32.xlu0 %v2697
        %v2729 = vpop.xlane.xlu0 %2728
        %v2730 = vadd.f32 %v2699, %v2701
        %v2731 = vadd.f32 %v2730, %v2703
        %v2732 = vadd.f32 %v2731, %v2705
        %v2733 = vadd.f32 %v2732, %v2707
        %v2734 = vadd.f32 %v2733, %v2709
        %v2735 = vadd.f32 %v2734, %v2711
        %v2736 = vadd.f32 %v2735, %v2713
        %v2737 = vadd.f32 %v2736, %v2715
        %v2738 = vadd.f32 %v2737, %v2717
        %v2739 = vadd.f32 %v2738, %v2719
        %v2740 = vadd.f32 %v2739, %v2721
        %v2741 = vadd.f32 %v2740, %v2723
        %v2742 = vadd.f32 %v2741, %v2725
        %v2743 = vadd.f32 %v2742, %v2727
        %v2744 = vadd.f32 %v2743, %v2729
        %v2745 = vrot.slane %v2744, 4
        %v2746 = vadd.f32 %v2744, %v2745
        %v2747 = vrot.slane %v2746, 2
        %v2748 = vadd.f32 %v2746, %v2747
        %v2749 = vrot.slane %v2748, 1
        %v2750 = vadd.f32 %v2748, %v2749
        %v2751 = vsub.f32 0.0, %v2649
        %v2752 = vmul.f32 %v2751, 1.442695
        %v2753 = vpow.pop %v2752
        %v2754 = vadd.f32 %v2750, %v2753
        %v2755 = vlog2.pop %v2754
        %v2756 = vmul.f32 %v2755, 0.6931472
        %v2757 = vadd.f32 %v2649, %v2756
        %v2758 = vadd.f32 %v2595, %v2757
        %vm2759 = vcmask 0
        %2760 = vst.msk [vmem:[%s571] sm:$0x1] %vm2759, %v2758
        %s2761 = scalar_lea.vmem %s9, 1
        %v2762 = vld [vmem:[%s2761] sm:$0x1]
        %v2764 = vlaneseq
        %v2765 = vshrl.u32 %v2764, 7
        %v2766 = vsub.s32 0, %v2765
        %v2767 = vrot.slane %v2762, %v2766
        %v2769 = vmul.f32 %v1461, %v2767
        %v2770 = vmul.f32 %v1462, %v2767
        %v2771 = vmul.f32 %v1463, %v2767
        %v2772 = vmul.f32 %v1464, %v2767
        %v2773 = vmul.f32 %v1465, %v2767
        %v2774 = vmul.f32 %v1466, %v2767
        %v2775 = vmul.f32 %v1467, %v2767
        %v2776 = vmul.f32 %v1468, %v2767
        %v2777 = vmul.f32 %v1469, %v2767
        %v2778 = vmul.f32 %v1470, %v2767
        %v2779 = vmul.f32 %v1471, %v2767
        %v2780 = vmul.f32 %v1472, %v2767
        %v2781 = vmul.f32 %v1473, %v2767
        %v2782 = vmul.f32 %v1474, %v2767
        %v2783 = vmul.f32 %v1475, %v2767
        %v2784 = vmul.f32 %v1476, %v2767
        %2785 = vadd.xlane.f32.xlu0 %v2769
        %v2786 = vpop.xlane.xlu0 %2785
        %2787 = vadd.xlane.f32.xlu0 %v2770
        %v2788 = vpop.xlane.xlu0 %2787
        %2789 = vadd.xlane.f32.xlu0 %v2771
        %v2790 = vpop.xlane.xlu0 %2789
        %2791 = vadd.xlane.f32.xlu0 %v2772
        %v2792 = vpop.xlane.xlu0 %2791
        %2793 = vadd.xlane.f32.xlu0 %v2773
        %v2794 = vpop.xlane.xlu0 %2793
        %2795 = vadd.xlane.f32.xlu0 %v2774
        %v2796 = vpop.xlane.xlu0 %2795
        %2797 = vadd.xlane.f32.xlu0 %v2775
        %v2798 = vpop.xlane.xlu0 %2797
        %2799 = vadd.xlane.f32.xlu0 %v2776
        %v2800 = vpop.xlane.xlu0 %2799
        %2801 = vadd.xlane.f32.xlu0 %v2777
        %v2802 = vpop.xlane.xlu0 %2801
        %2803 = vadd.xlane.f32.xlu0 %v2778
        %v2804 = vpop.xlane.xlu0 %2803
        %2805 = vadd.xlane.f32.xlu0 %v2779
        %v2806 = vpop.xlane.xlu0 %2805
        %2807 = vadd.xlane.f32.xlu0 %v2780
        %v2808 = vpop.xlane.xlu0 %2807
        %2809 = vadd.xlane.f32.xlu0 %v2781
        %v2810 = vpop.xlane.xlu0 %2809
        %2811 = vadd.xlane.f32.xlu0 %v2782
        %v2812 = vpop.xlane.xlu0 %2811
        %2813 = vadd.xlane.f32.xlu0 %v2783
        %v2814 = vpop.xlane.xlu0 %2813
        %2815 = vadd.xlane.f32.xlu0 %v2784
        %v2816 = vpop.xlane.xlu0 %2815
        %s2817 = scalar_lea.vmem %s10, 1
        %v2818 = vld [vmem:[%s2817] sm:$0x1]
        %v2820 = vlaneseq
        %v2821 = vshrl.u32 %v2820, 7
        %v2822 = vsub.s32 0, %v2821
        %v2823 = vrot.slane %v2818, %v2822
        %v2825 = vadd.f32 %v2786, %v2823
        %v2826 = vadd.f32 %v2788, %v2823
        %v2827 = vadd.f32 %v2790, %v2823
        %v2828 = vadd.f32 %v2792, %v2823
        %v2829 = vadd.f32 %v2794, %v2823
        %v2830 = vadd.f32 %v2796, %v2823
        %v2831 = vadd.f32 %v2798, %v2823
        %v2832 = vadd.f32 %v2800, %v2823
        %v2833 = vadd.f32 %v2802, %v2823
        %v2834 = vadd.f32 %v2804, %v2823
        %v2835 = vadd.f32 %v2806, %v2823
        %v2836 = vadd.f32 %v2808, %v2823
        %v2837 = vadd.f32 %v2810, %v2823
        %v2838 = vadd.f32 %v2812, %v2823
        %v2839 = vadd.f32 %v2814, %v2823
        %v2840 = vadd.f32 %v2816, %v2823
        %2842 = vset.pattern.permute.xlu0 0
        %2843 = vperm.xlu0 %2842, %v2825
        %v2844 = vpop.permute.xlu0 %2843
        %2847 = vset.pattern.permute.xlu0 0
        %2848 = vperm.xlu0 %2847, %v2826
        %v2849 = vpop.permute.xlu0 %2848
        %2852 = vset.pattern.permute.xlu0 0
        %2853 = vperm.xlu0 %2852, %v2827
        %v2854 = vpop.permute.xlu0 %2853
        %2857 = vset.pattern.permute.xlu0 0
        %2858 = vperm.xlu0 %2857, %v2828
        %v2859 = vpop.permute.xlu0 %2858
        %2862 = vset.pattern.permute.xlu0 0
        %2863 = vperm.xlu0 %2862, %v2829
        %v2864 = vpop.permute.xlu0 %2863
        %2867 = vset.pattern.permute.xlu0 0
        %2868 = vperm.xlu0 %2867, %v2830
        %v2869 = vpop.permute.xlu0 %2868
        %2872 = vset.pattern.permute.xlu0 0
        %2873 = vperm.xlu0 %2872, %v2831
        %v2874 = vpop.permute.xlu0 %2873
        %2877 = vset.pattern.permute.xlu0 0
        %2878 = vperm.xlu0 %2877, %v2832
        %v2879 = vpop.permute.xlu0 %2878
        %2882 = vset.pattern.permute.xlu0 0
        %2883 = vperm.xlu0 %2882, %v2833
        %v2884 = vpop.permute.xlu0 %2883
        %2887 = vset.pattern.permute.xlu0 0
        %2888 = vperm.xlu0 %2887, %v2834
        %v2889 = vpop.permute.xlu0 %2888
        %2892 = vset.pattern.permute.xlu0 0
        %2893 = vperm.xlu0 %2892, %v2835
        %v2894 = vpop.permute.xlu0 %2893
        %2897 = vset.pattern.permute.xlu0 0
        %2898 = vperm.xlu0 %2897, %v2836
        %v2899 = vpop.permute.xlu0 %2898
        %2902 = vset.pattern.permute.xlu0 0
        %2903 = vperm.xlu0 %2902, %v2837
        %v2904 = vpop.permute.xlu0 %2903
        %2907 = vset.pattern.permute.xlu0 0
        %2908 = vperm.xlu0 %2907, %v2838
        %v2909 = vpop.permute.xlu0 %2908
        %2912 = vset.pattern.permute.xlu0 0
        %2913 = vperm.xlu0 %2912, %v2839
        %v2914 = vpop.permute.xlu0 %2913
        %2917 = vset.pattern.permute.xlu0 0
        %2918 = vperm.xlu0 %2917, %v2840
        %v2919 = vpop.permute.xlu0 %2918
        %2921 = vmatprep.subr.bf16.mxu0 0
        %2922 = vmatpush1.bf16.xpose.msra.mxu0 %v1533
        %2923 = vmatprep.subr.bf16.mxu0 0
        %2924 = vmatpush1.bf16.xpose.msra.mxu0 %v1534
        %2925 = vmatprep.subr.bf16.mxu0 0
        %2926 = vmatpush1.bf16.xpose.msra.mxu0 %v1535
        %2927 = vmatprep.subr.bf16.mxu0 0
        %2928 = vmatpush1.bf16.xpose.msra.mxu0 %v1536
        %2929 = vmatprep.subr.bf16.mxu0 0
        %2930 = vmatpush1.bf16.xpose.msra.mxu0 %v1537
        %2931 = vmatprep.subr.bf16.mxu0 0
        %2932 = vmatpush1.bf16.xpose.msra.mxu0 %v1538
        %2933 = vmatprep.subr.bf16.mxu0 0
        %2934 = vmatpush1.bf16.xpose.msra.mxu0 %v1539
        %2935 = vmatprep.subr.bf16.mxu0 0
        %2936 = vmatpush1.bf16.xpose.msra.mxu0 %v1540
        %2937 = vmatprep.subr.bf16.mxu0 0
        %2938 = vmatpush1.bf16.xpose.msra.mxu0 0
        %2939 = vmatprep.subr.bf16.mxu0 0
        %2940 = vmatpush1.bf16.xpose.msra.mxu0 0
        %2941 = vmatprep.subr.bf16.mxu0 0
        %2942 = vmatpush1.bf16.xpose.msra.mxu0 0
        %2943 = vmatprep.subr.bf16.mxu0 0
        %2944 = vmatpush1.bf16.xpose.msra.mxu0 0
        %2945 = vmatprep.subr.bf16.mxu0 0
        %2946 = vmatpush1.bf16.xpose.msra.mxu0 0
        %2947 = vmatprep.subr.bf16.mxu0 0
        %2948 = vmatpush1.bf16.xpose.msra.mxu0 0
        %2949 = vmatprep.subr.bf16.mxu0 0
        %2950 = vmatpush1.bf16.xpose.msra.mxu0 0
        %2951 = vmatprep.subr.bf16.mxu0 0
        %2952 = vmatpush1.bf16.xpose.msra.mxu0 0
        %2953 = vmatprep.mubr.bf16.mxu0 0
        %2954 = vmatmul.mubr.bf16.gmra.mrb[0].mxu0 %v1929
        %v2955 = vpop.f32.mrb[0].mxu0
        %v2956 = vadd.f32 %v2844, %v2955
        %v2957 = vpop.f32.mrb[0].mxu0
        %v2958 = vpop.f32.mrb[0].mxu0
        %v2959 = vadd.f32 %v2849, %v2958
        %v2960 = vpop.f32.mrb[0].mxu0
        %2961 = vmatprep.mubr.bf16.mxu0 0
        %2962 = vmatmul.mubr.bf16.gmra.mrb[0].mxu0 %v1932
        %v2963 = vpop.f32.mrb[0].mxu0
        %v2964 = vadd.f32 %v2854, %v2963
        %v2965 = vpop.f32.mrb[0].mxu0
        %v2966 = vpop.f32.mrb[0].mxu0
        %v2967 = vadd.f32 %v2859, %v2966
        %v2968 = vpop.f32.mrb[0].mxu0
        %2969 = vmatprep.mubr.bf16.mxu0 0
        %2970 = vmatmul.mubr.bf16.gmra.mrb[0].mxu0 %v1935
        %v2971 = vpop.f32.mrb[0].mxu0
        %v2972 = vadd.f32 %v2864, %v2971
        %v2973 = vpop.f32.mrb[0].mxu0
        %v2974 = vpop.f32.mrb[0].mxu0
        %v2975 = vadd.f32 %v2869, %v2974
        %v2976 = vpop.f32.mrb[0].mxu0
        %2977 = vmatprep.mubr.bf16.mxu0 0
        %2978 = vmatmul.mubr.bf16.gmra.mrb[0].mxu0 %v1938
        %v2979 = vpop.f32.mrb[0].mxu0
        %v2980 = vadd.f32 %v2874, %v2979
        %v2981 = vpop.f32.mrb[0].mxu0
        %v2982 = vpop.f32.mrb[0].mxu0
        %v2983 = vadd.f32 %v2879, %v2982
        %v2984 = vpop.f32.mrb[0].mxu0
        %2985 = vmatprep.mubr.bf16.mxu0 0
        %2986 = vmatmul.mubr.bf16.gmra.mrb[0].mxu0 %v1941
        %v2987 = vpop.f32.mrb[0].mxu0
        %v2988 = vadd.f32 %v2884, %v2987
        %v2989 = vpop.f32.mrb[0].mxu0
        %v2990 = vpop.f32.mrb[0].mxu0
        %v2991 = vadd.f32 %v2889, %v2990
        %v2992 = vpop.f32.mrb[0].mxu0
        %2993 = vmatprep.mubr.bf16.mxu0 0
        %2994 = vmatmul.mubr.bf16.gmra.mrb[0].mxu0 %v1944
        %v2995 = vpop.f32.mrb[0].mxu0
        %v2996 = vadd.f32 %v2894, %v2995
        %v2997 = vpop.f32.mrb[0].mxu0
        %v2998 = vpop.f32.mrb[0].mxu0
        %v2999 = vadd.f32 %v2899, %v2998
        %v3000 = vpop.f32.mrb[0].mxu0
        %3001 = vmatprep.mubr.bf16.mxu0 0
        %3002 = vmatmul.mubr.bf16.gmra.mrb[0].mxu0 %v1947
        %v3003 = vpop.f32.mrb[0].mxu0
        %v3004 = vadd.f32 %v2904, %v3003
        %v3005 = vpop.f32.mrb[0].mxu0
        %v3006 = vpop.f32.mrb[0].mxu0
        %v3007 = vadd.f32 %v2909, %v3006
        %v3008 = vpop.f32.mrb[0].mxu0
        %3009 = vmatprep.mubr.bf16.mxu0 0
        %3010 = vmatmul.mubr.bf16.gmra.mrb[0].mxu0 %v1950
        %v3011 = vpop.f32.mrb[0].mxu0
        %v3012 = vadd.f32 %v2914, %v3011
        %v3013 = vpop.f32.mrb[0].mxu0
        %v3014 = vpop.f32.mrb[0].mxu0
        %v3015 = vadd.f32 %v2919, %v3014
        %v3016 = vpop.f32.mrb[0].mxu0
        %3017 = vdwg.mxu0
        %v3018 = vmul.f32 %v2956, %v1957
        %v3019 = vmul.f32 %v2959, %v1957
        %v3020 = vmul.f32 %v2964, %v1957
        %v3021 = vmul.f32 %v2967, %v1957
        %v3022 = vmul.f32 %v2972, %v1957
        %v3023 = vmul.f32 %v2975, %v1957
        %v3024 = vmul.f32 %v2980, %v1957
        %v3025 = vmul.f32 %v2983, %v1957
        %v3026 = vmul.f32 %v2988, %v1957
        %v3027 = vmul.f32 %v2991, %v1957
        %v3028 = vmul.f32 %v2996, %v1957
        %v3029 = vmul.f32 %v2999, %v1957
        %v3030 = vmul.f32 %v3004, %v1957
        %v3031 = vmul.f32 %v3007, %v1957
        %v3032 = vmul.f32 %v3012, %v1957
        %v3033 = vmul.f32 %v3015, %v1957
        %v3034 = vsub.f32 %v3018, %v1965
        %v3035 = vsub.f32 %v3019, %v1965
        %v3036 = vsub.f32 %v3020, %v1965
        %v3037 = vsub.f32 %v3021, %v1965
        %v3038 = vsub.f32 %v3022, %v1965
        %v3039 = vsub.f32 %v3023, %v1965
        %v3040 = vsub.f32 %v3024, %v1965
        %v3041 = vsub.f32 %v3025, %v1965
        %v3042 = vsub.f32 %v3026, %v1965
        %v3043 = vsub.f32 %v3027, %v1965
        %v3044 = vsub.f32 %v3028, %v1965
        %v3045 = vsub.f32 %v3029, %v1965
        %v3046 = vsub.f32 %v3030, %v1965
        %v3047 = vsub.f32 %v3031, %v1965
        %v3048 = vsub.f32 %v3032, %v1965
        %v3049 = vsub.f32 %v3033, %v1965
        %s3050 = scalar_lea.vmem %s561, 128 [#allocation14]
        %3051 = vst [vmem:[%s3050] sm:$0xff] %v3034
        %3052 = vst [vmem:[%s3050 + $0x8] sm:$0xff] %v3035
        %3053 = vst [vmem:[%s3050 + $0x10] sm:$0xff] %v3036
        %3054 = vst [vmem:[%s3050 + $0x18] sm:$0xff] %v3037
        %3055 = vst [vmem:[%s3050 + $0x20] sm:$0xff] %v3038
        %3056 = vst [vmem:[%s3050 + $0x28] sm:$0xff] %v3039
        %3057 = vst [vmem:[%s3050 + $0x30] sm:$0xff] %v3040
        %3058 = vst [vmem:[%s3050 + $0x38] sm:$0xff] %v3041
        %3059 = vst [vmem:[%s3050 + $0x40] sm:$0xff] %v3042
        %3060 = vst [vmem:[%s3050 + $0x48] sm:$0xff] %v3043
        %3061 = vst [vmem:[%s3050 + $0x50] sm:$0xff] %v3044
        %3062 = vst [vmem:[%s3050 + $0x58] sm:$0xff] %v3045
        %3063 = vst [vmem:[%s3050 + $0x60] sm:$0xff] %v3046
        %3064 = vst [vmem:[%s3050 + $0x68] sm:$0xff] %v3047
        %3065 = vst [vmem:[%s3050 + $0x70] sm:$0xff] %v3048
        %3066 = vst [vmem:[%s3050 + $0x78] sm:$0xff] %v3049
        %s3067 = scalar_lea.vmem %s498, 32 [#allocation7]
        %v3068 = vld [vmem:[%s3067] sm:$0xff]
        %v3069 = vld [vmem:[%s3067 + $0x8] sm:$0xff]
        %v3070 = vld [vmem:[%s3067 + $0x10] sm:$0xff]
        %v3071 = vld [vmem:[%s3067 + $0x18] sm:$0xff]
        %v3072 = vunpack.c.0.s8 %v3068
        %v3073 = vunpack.c.1.s8 %v3068
        %v3074 = vunpack.c.2.s8 %v3068
        %v3075 = vunpack.c.3.s8 %v3068
        %v3076 = vunpack.c.0.s8 %v3069
        %v3077 = vunpack.c.1.s8 %v3069
        %v3078 = vunpack.c.2.s8 %v3069
        %v3079 = vunpack.c.3.s8 %v3069
        %v3080 = vunpack.c.0.s8 %v3070
        %v3081 = vunpack.c.1.s8 %v3070
        %v3082 = vunpack.c.2.s8 %v3070
        %v3083 = vunpack.c.3.s8 %v3070
        %v3084 = vunpack.c.0.s8 %v3071
        %v3085 = vunpack.c.1.s8 %v3071
        %v3086 = vunpack.c.2.s8 %v3071
        %v3087 = vunpack.c.3.s8 %v3071
        %v3088 = vcvt.s32.f32 %v3072
        %v3089 = vcvt.s32.f32 %v3073
        %v3090 = vcvt.s32.f32 %v3074
        %v3091 = vcvt.s32.f32 %v3075
        %v3092 = vcvt.s32.f32 %v3076
        %v3093 = vcvt.s32.f32 %v3077
        %v3094 = vcvt.s32.f32 %v3078
        %v3095 = vcvt.s32.f32 %v3079
        %v3096 = vcvt.s32.f32 %v3080
        %v3097 = vcvt.s32.f32 %v3081
        %v3098 = vcvt.s32.f32 %v3082
        %v3099 = vcvt.s32.f32 %v3083
        %v3100 = vcvt.s32.f32 %v3084
        %v3101 = vcvt.s32.f32 %v3085
        %v3102 = vcvt.s32.f32 %v3086
        %v3103 = vcvt.s32.f32 %v3087
        %v3104 = vmul.f32 %v3088, 2.0
        %v3105 = vmul.f32 %v3089, 2.0
        %v3106 = vmul.f32 %v3090, 2.0
        %v3107 = vmul.f32 %v3091, 2.0
        %v3108 = vmul.f32 %v3092, 2.0
        %v3109 = vmul.f32 %v3093, 2.0
        %v3110 = vmul.f32 %v3094, 2.0
        %v3111 = vmul.f32 %v3095, 2.0
        %v3112 = vmul.f32 %v3096, 2.0
        %v3113 = vmul.f32 %v3097, 2.0
        %v3114 = vmul.f32 %v3098, 2.0
        %v3115 = vmul.f32 %v3099, 2.0
        %v3116 = vmul.f32 %v3100, 2.0
        %v3117 = vmul.f32 %v3101, 2.0
        %v3118 = vmul.f32 %v3102, 2.0
        %v3119 = vmul.f32 %v3103, 2.0
        %v3120 = vsub.f32 1.0, %v3104
        %v3121 = vsub.f32 1.0, %v3105
        %v3122 = vsub.f32 1.0, %v3106
        %v3123 = vsub.f32 1.0, %v3107
        %v3124 = vsub.f32 1.0, %v3108
        %v3125 = vsub.f32 1.0, %v3109
        %v3126 = vsub.f32 1.0, %v3110
        %v3127 = vsub.f32 1.0, %v3111
        %v3128 = vsub.f32 1.0, %v3112
        %v3129 = vsub.f32 1.0, %v3113
        %v3130 = vsub.f32 1.0, %v3114
        %v3131 = vsub.f32 1.0, %v3115
        %v3132 = vsub.f32 1.0, %v3116
        %v3133 = vsub.f32 1.0, %v3117
        %v3134 = vsub.f32 1.0, %v3118
        %v3135 = vsub.f32 1.0, %v3119
        %v3136 = vmul.f32 %v3120, %v3034
        %v3137 = vmul.f32 %v3121, %v3035
        %v3138 = vmul.f32 %v3122, %v3036
        %v3139 = vmul.f32 %v3123, %v3037
        %v3140 = vmul.f32 %v3124, %v3038
        %v3141 = vmul.f32 %v3125, %v3039
        %v3142 = vmul.f32 %v3126, %v3040
        %v3143 = vmul.f32 %v3127, %v3041
        %v3144 = vmul.f32 %v3128, %v3042
        %v3145 = vmul.f32 %v3129, %v3043
        %v3146 = vmul.f32 %v3130, %v3044
        %v3147 = vmul.f32 %v3131, %v3045
        %v3148 = vmul.f32 %v3132, %v3046
        %v3149 = vmul.f32 %v3133, %v3047
        %v3150 = vmul.f32 %v3134, %v3048
        %v3151 = vmul.f32 %v3135, %v3049
        %v3152 = vmul.f32 %v3088, 1e+12
        %v3153 = vmul.f32 %v3089, 1e+12
        %v3154 = vmul.f32 %v3090, 1e+12
        %v3155 = vmul.f32 %v3091, 1e+12
        %v3156 = vmul.f32 %v3092, 1e+12
        %v3157 = vmul.f32 %v3093, 1e+12
        %v3158 = vmul.f32 %v3094, 1e+12
        %v3159 = vmul.f32 %v3095, 1e+12
        %v3160 = vmul.f32 %v3096, 1e+12
        %v3161 = vmul.f32 %v3097, 1e+12
        %v3162 = vmul.f32 %v3098, 1e+12
        %v3163 = vmul.f32 %v3099, 1e+12
        %v3164 = vmul.f32 %v3100, 1e+12
        %v3165 = vmul.f32 %v3101, 1e+12
        %v3166 = vmul.f32 %v3102, 1e+12
        %v3167 = vmul.f32 %v3103, 1e+12
        %v3168 = vsub.f32 %v3136, %v3152
        %v3169 = vsub.f32 %v3137, %v3153
        %v3170 = vsub.f32 %v3138, %v3154
        %v3171 = vsub.f32 %v3139, %v3155
        %v3172 = vsub.f32 %v3140, %v3156
        %v3173 = vsub.f32 %v3141, %v3157
        %v3174 = vsub.f32 %v3142, %v3158
        %v3175 = vsub.f32 %v3143, %v3159
        %v3176 = vsub.f32 %v3144, %v3160
        %v3177 = vsub.f32 %v3145, %v3161
        %v3178 = vsub.f32 %v3146, %v3162
        %v3179 = vsub.f32 %v3147, %v3163
        %v3180 = vsub.f32 %v3148, %v3164
        %v3181 = vsub.f32 %v3149, %v3165
        %v3182 = vsub.f32 %v3150, %v3166
        %v3183 = vsub.f32 %v3151, %v3167
        %v3184 = vsub.f32 1.0, %v3088
        %v3185 = vsub.f32 1.0, %v3089
        %v3186 = vsub.f32 1.0, %v3090
        %v3187 = vsub.f32 1.0, %v3091
        %v3188 = vsub.f32 1.0, %v3092
        %v3189 = vsub.f32 1.0, %v3093
        %v3190 = vsub.f32 1.0, %v3094
        %v3191 = vsub.f32 1.0, %v3095
        %v3192 = vsub.f32 1.0, %v3096
        %v3193 = vsub.f32 1.0, %v3097
        %v3194 = vsub.f32 1.0, %v3098
        %v3195 = vsub.f32 1.0, %v3099
        %v3196 = vsub.f32 1.0, %v3100
        %v3197 = vsub.f32 1.0, %v3101
        %v3198 = vsub.f32 1.0, %v3102
        %v3199 = vsub.f32 1.0, %v3103
        %v3200 = vmul.f32 %v3184, 1e+12
        %v3201 = vmul.f32 %v3185, 1e+12
        %v3202 = vmul.f32 %v3186, 1e+12
        %v3203 = vmul.f32 %v3187, 1e+12
        %v3204 = vmul.f32 %v3188, 1e+12
        %v3205 = vmul.f32 %v3189, 1e+12
        %v3206 = vmul.f32 %v3190, 1e+12
        %v3207 = vmul.f32 %v3191, 1e+12
        %v3208 = vmul.f32 %v3192, 1e+12
        %v3209 = vmul.f32 %v3193, 1e+12
        %v3210 = vmul.f32 %v3194, 1e+12
        %v3211 = vmul.f32 %v3195, 1e+12
        %v3212 = vmul.f32 %v3196, 1e+12
        %v3213 = vmul.f32 %v3197, 1e+12
        %v3214 = vmul.f32 %v3198, 1e+12
        %v3215 = vmul.f32 %v3199, 1e+12
        %v3216 = vsub.f32 %v3136, %v3200
        %v3217 = vsub.f32 %v3137, %v3201
        %v3218 = vsub.f32 %v3138, %v3202
        %v3219 = vsub.f32 %v3139, %v3203
        %v3220 = vsub.f32 %v3140, %v3204
        %v3221 = vsub.f32 %v3141, %v3205
        %v3222 = vsub.f32 %v3142, %v3206
        %v3223 = vsub.f32 %v3143, %v3207
        %v3224 = vsub.f32 %v3144, %v3208
        %v3225 = vsub.f32 %v3145, %v3209
        %v3226 = vsub.f32 %v3146, %v3210
        %v3227 = vsub.f32 %v3147, %v3211
        %v3228 = vsub.f32 %v3148, %v3212
        %v3229 = vsub.f32 %v3149, %v3213
        %v3230 = vsub.f32 %v3150, %v3214
        %v3231 = vsub.f32 %v3151, %v3215
        %3232 = vmax.xlane.f32.xlu0 %v3168
        %v3233 = vpop.xlane.xlu0 %3232
        %3234 = vmax.xlane.f32.xlu0 %v3169
        %v3235 = vpop.xlane.xlu0 %3234
        %3236 = vmax.xlane.f32.xlu0 %v3170
        %v3237 = vpop.xlane.xlu0 %3236
        %3238 = vmax.xlane.f32.xlu0 %v3171
        %v3239 = vpop.xlane.xlu0 %3238
        %3240 = vmax.xlane.f32.xlu0 %v3172
        %v3241 = vpop.xlane.xlu0 %3240
        %3242 = vmax.xlane.f32.xlu0 %v3173
        %v3243 = vpop.xlane.xlu0 %3242
        %3244 = vmax.xlane.f32.xlu0 %v3174
        %v3245 = vpop.xlane.xlu0 %3244
        %3246 = vmax.xlane.f32.xlu0 %v3175
        %v3247 = vpop.xlane.xlu0 %3246
        %3248 = vmax.xlane.f32.xlu0 %v3176
        %v3249 = vpop.xlane.xlu0 %3248
        %3250 = vmax.xlane.f32.xlu0 %v3177
        %v3251 = vpop.xlane.xlu0 %3250
        %3252 = vmax.xlane.f32.xlu0 %v3178
        %v3253 = vpop.xlane.xlu0 %3252
        %3254 = vmax.xlane.f32.xlu0 %v3179
        %v3255 = vpop.xlane.xlu0 %3254
        %3256 = vmax.xlane.f32.xlu0 %v3180
        %v3257 = vpop.xlane.xlu0 %3256
        %3258 = vmax.xlane.f32.xlu0 %v3181
        %v3259 = vpop.xlane.xlu0 %3258
        %3260 = vmax.xlane.f32.xlu0 %v3182
        %v3261 = vpop.xlane.xlu0 %3260
        %3262 = vmax.xlane.f32.xlu0 %v3183
        %v3263 = vpop.xlane.xlu0 %3262
        %v3264 = vmax.f32 %v3233, %v3241
        %v3265 = vmax.f32 %v3235, %v3243
        %v3266 = vmax.f32 %v3237, %v3245
        %v3267 = vmax.f32 %v3239, %v3247
        %v3268 = vmax.f32 %v3264, %v3249
        %v3269 = vmax.f32 %v3265, %v3251
        %v3270 = vmax.f32 %v3266, %v3253
        %v3271 = vmax.f32 %v3267, %v3255
        %v3272 = vmax.f32 %v3268, %v3257
        %v3273 = vmax.f32 %v3269, %v3259
        %v3274 = vmax.f32 %v3270, %v3261
        %v3275 = vmax.f32 %v3271, %v3263
        %v3276 = vmax.f32 %v3272, %v3273
        %v3277 = vmax.f32 %v3274, %v3275
        %v3278 = vmax.f32 %v3276, %v3277
        %v3279 = vrot.slane %v3278, 4
        %v3280 = vmax.f32 %v3278, %v3279
        %v3281 = vrot.slane %v3280, 2
        %v3282 = vmax.f32 %v3280, %v3281
        %v3283 = vrot.slane %v3282, 1
        %v3284 = vmax.f32 %v3282, %v3283
        %v3285 = vmax.f32 %v3284, 0.0
        %v3286 = vsub.f32 %v3168, %v3285
        %v3287 = vsub.f32 %v3169, %v3285
        %v3288 = vsub.f32 %v3170, %v3285
        %v3289 = vsub.f32 %v3171, %v3285
        %v3290 = vsub.f32 %v3172, %v3285
        %v3291 = vsub.f32 %v3173, %v3285
        %v3292 = vsub.f32 %v3174, %v3285
        %v3293 = vsub.f32 %v3175, %v3285
        %v3294 = vsub.f32 %v3176, %v3285
        %v3295 = vsub.f32 %v3177, %v3285
        %v3296 = vsub.f32 %v3178, %v3285
        %v3297 = vsub.f32 %v3179, %v3285
        %v3298 = vsub.f32 %v3180, %v3285
        %v3299 = vsub.f32 %v3181, %v3285
        %v3300 = vsub.f32 %v3182, %v3285
        %v3301 = vsub.f32 %v3183, %v3285
        %v3302 = vmul.f32 %v3286, 1.442695
        %v3303 = vpow.pop %v3302
        %v3304 = vmul.f32 %v3287, 1.442695
        %v3305 = vpow.pop %v3304
        %v3306 = vmul.f32 %v3288, 1.442695
        %v3307 = vpow.pop %v3306
        %v3308 = vmul.f32 %v3289, 1.442695
        %v3309 = vpow.pop %v3308
        %v3310 = vmul.f32 %v3290, 1.442695
        %v3311 = vpow.pop %v3310
        %v3312 = vmul.f32 %v3291, 1.442695
        %v3313 = vpow.pop %v3312
        %v3314 = vmul.f32 %v3292, 1.442695
        %v3315 = vpow.pop %v3314
        %v3316 = vmul.f32 %v3293, 1.442695
        %v3317 = vpow.pop %v3316
        %v3318 = vmul.f32 %v3294, 1.442695
        %v3319 = vpow.pop %v3318
        %v3320 = vmul.f32 %v3295, 1.442695
        %v3321 = vpow.pop %v3320
        %v3322 = vmul.f32 %v3296, 1.442695
        %v3323 = vpow.pop %v3322
        %v3324 = vmul.f32 %v3297, 1.442695
        %v3325 = vpow.pop %v3324
        %v3326 = vmul.f32 %v3298, 1.442695
        %v3327 = vpow.pop %v3326
        %v3328 = vmul.f32 %v3299, 1.442695
        %v3329 = vpow.pop %v3328
        %v3330 = vmul.f32 %v3300, 1.442695
        %v3331 = vpow.pop %v3330
        %v3332 = vmul.f32 %v3301, 1.442695
        %v3333 = vpow.pop %v3332
        %3334 = vadd.xlane.f32.xlu0 %v3303
        %v3335 = vpop.xlane.xlu0 %3334
        %3336 = vadd.xlane.f32.xlu0 %v3305
        %v3337 = vpop.xlane.xlu0 %3336
        %3338 = vadd.xlane.f32.xlu0 %v3307
        %v3339 = vpop.xlane.xlu0 %3338
        %3340 = vadd.xlane.f32.xlu0 %v3309
        %v3341 = vpop.xlane.xlu0 %3340
        %3342 = vadd.xlane.f32.xlu0 %v3311
        %v3343 = vpop.xlane.xlu0 %3342
        %3344 = vadd.xlane.f32.xlu0 %v3313
        %v3345 = vpop.xlane.xlu0 %3344
        %3346 = vadd.xlane.f32.xlu0 %v3315
        %v3347 = vpop.xlane.xlu0 %3346
        %3348 = vadd.xlane.f32.xlu0 %v3317
        %v3349 = vpop.xlane.xlu0 %3348
        %3350 = vadd.xlane.f32.xlu0 %v3319
        %v3351 = vpop.xlane.xlu0 %3350
        %3352 = vadd.xlane.f32.xlu0 %v3321
        %v3353 = vpop.xlane.xlu0 %3352
        %3354 = vadd.xlane.f32.xlu0 %v3323
        %v3355 = vpop.xlane.xlu0 %3354
        %3356 = vadd.xlane.f32.xlu0 %v3325
        %v3357 = vpop.xlane.xlu0 %3356
        %3358 = vadd.xlane.f32.xlu0 %v3327
        %v3359 = vpop.xlane.xlu0 %3358
        %3360 = vadd.xlane.f32.xlu0 %v3329
        %v3361 = vpop.xlane.xlu0 %3360
        %3362 = vadd.xlane.f32.xlu0 %v3331
        %v3363 = vpop.xlane.xlu0 %3362
        %3364 = vadd.xlane.f32.xlu0 %v3333
        %v3365 = vpop.xlane.xlu0 %3364
        %v3366 = vadd.f32 %v3335, %v3337
        %v3367 = vadd.f32 %v3366, %v3339
        %v3368 = vadd.f32 %v3367, %v3341
        %v3369 = vadd.f32 %v3368, %v3343
        %v3370 = vadd.f32 %v3369, %v3345
        %v3371 = vadd.f32 %v3370, %v3347
        %v3372 = vadd.f32 %v3371, %v3349
        %v3373 = vadd.f32 %v3372, %v3351
        %v3374 = vadd.f32 %v3373, %v3353
        %v3375 = vadd.f32 %v3374, %v3355
        %v3376 = vadd.f32 %v3375, %v3357
        %v3377 = vadd.f32 %v3376, %v3359
        %v3378 = vadd.f32 %v3377, %v3361
        %v3379 = vadd.f32 %v3378, %v3363
        %v3380 = vadd.f32 %v3379, %v3365
        %v3381 = vrot.slane %v3380, 4
        %v3382 = vadd.f32 %v3380, %v3381
        %v3383 = vrot.slane %v3382, 2
        %v3384 = vadd.f32 %v3382, %v3383
        %v3385 = vrot.slane %v3384, 1
        %v3386 = vadd.f32 %v3384, %v3385
        %v3387 = vsub.f32 0.0, %v3285
        %v3388 = vmul.f32 %v3387, 1.442695
        %v3389 = vpow.pop %v3388
        %v3390 = vadd.f32 %v3386, %v3389
        %v3391 = vlog2.pop %v3390
        %v3392 = vmul.f32 %v3391, 0.6931472
        %v3393 = vadd.f32 %v3285, %v3392
        %3394 = vmax.xlane.f32.xlu0 %v3216
        %v3395 = vpop.xlane.xlu0 %3394
        %3396 = vmax.xlane.f32.xlu0 %v3217
        %v3397 = vpop.xlane.xlu0 %3396
        %3398 = vmax.xlane.f32.xlu0 %v3218
        %v3399 = vpop.xlane.xlu0 %3398
        %3400 = vmax.xlane.f32.xlu0 %v3219
        %v3401 = vpop.xlane.xlu0 %3400
        %3402 = vmax.xlane.f32.xlu0 %v3220
        %v3403 = vpop.xlane.xlu0 %3402
        %3404 = vmax.xlane.f32.xlu0 %v3221
        %v3405 = vpop.xlane.xlu0 %3404
        %3406 = vmax.xlane.f32.xlu0 %v3222
        %v3407 = vpop.xlane.xlu0 %3406
        %3408 = vmax.xlane.f32.xlu0 %v3223
        %v3409 = vpop.xlane.xlu0 %3408
        %3410 = vmax.xlane.f32.xlu0 %v3224
        %v3411 = vpop.xlane.xlu0 %3410
        %3412 = vmax.xlane.f32.xlu0 %v3225
        %v3413 = vpop.xlane.xlu0 %3412
        %3414 = vmax.xlane.f32.xlu0 %v3226
        %v3415 = vpop.xlane.xlu0 %3414
        %3416 = vmax.xlane.f32.xlu0 %v3227
        %v3417 = vpop.xlane.xlu0 %3416
        %3418 = vmax.xlane.f32.xlu0 %v3228
        %v3419 = vpop.xlane.xlu0 %3418
        %3420 = vmax.xlane.f32.xlu0 %v3229
        %v3421 = vpop.xlane.xlu0 %3420
        %3422 = vmax.xlane.f32.xlu0 %v3230
        %v3423 = vpop.xlane.xlu0 %3422
        %3424 = vmax.xlane.f32.xlu0 %v3231
        %v3425 = vpop.xlane.xlu0 %3424
        %v3426 = vmax.f32 %v3395, %v3403
        %v3427 = vmax.f32 %v3397, %v3405
        %v3428 = vmax.f32 %v3399, %v3407
        %v3429 = vmax.f32 %v3401, %v3409
        %v3430 = vmax.f32 %v3426, %v3411
        %v3431 = vmax.f32 %v3427, %v3413
        %v3432 = vmax.f32 %v3428, %v3415
        %v3433 = vmax.f32 %v3429, %v3417
        %v3434 = vmax.f32 %v3430, %v3419
        %v3435 = vmax.f32 %v3431, %v3421
        %v3436 = vmax.f32 %v3432, %v3423
        %v3437 = vmax.f32 %v3433, %v3425
        %v3438 = vmax.f32 %v3434, %v3435
        %v3439 = vmax.f32 %v3436, %v3437
        %v3440 = vmax.f32 %v3438, %v3439
        %v3441 = vrot.slane %v3440, 4
        %v3442 = vmax.f32 %v3440, %v3441
        %v3443 = vrot.slane %v3442, 2
        %v3444 = vmax.f32 %v3442, %v3443
        %v3445 = vrot.slane %v3444, 1
        %v3446 = vmax.f32 %v3444, %v3445
        %v3447 = vmax.f32 %v3446, 0.0
        %v3448 = vsub.f32 %v3216, %v3447
        %v3449 = vsub.f32 %v3217, %v3447
        %v3450 = vsub.f32 %v3218, %v3447
        %v3451 = vsub.f32 %v3219, %v3447
        %v3452 = vsub.f32 %v3220, %v3447
        %v3453 = vsub.f32 %v3221, %v3447
        %v3454 = vsub.f32 %v3222, %v3447
        %v3455 = vsub.f32 %v3223, %v3447
        %v3456 = vsub.f32 %v3224, %v3447
        %v3457 = vsub.f32 %v3225, %v3447
        %v3458 = vsub.f32 %v3226, %v3447
        %v3459 = vsub.f32 %v3227, %v3447
        %v3460 = vsub.f32 %v3228, %v3447
        %v3461 = vsub.f32 %v3229, %v3447
        %v3462 = vsub.f32 %v3230, %v3447
        %v3463 = vsub.f32 %v3231, %v3447
        %v3464 = vmul.f32 %v3448, 1.442695
        %v3465 = vpow.pop %v3464
        %v3466 = vmul.f32 %v3449, 1.442695
        %v3467 = vpow.pop %v3466
        %v3468 = vmul.f32 %v3450, 1.442695
        %v3469 = vpow.pop %v3468
        %v3470 = vmul.f32 %v3451, 1.442695
        %v3471 = vpow.pop %v3470
        %v3472 = vmul.f32 %v3452, 1.442695
        %v3473 = vpow.pop %v3472
        %v3474 = vmul.f32 %v3453, 1.442695
        %v3475 = vpow.pop %v3474
        %v3476 = vmul.f32 %v3454, 1.442695
        %v3477 = vpow.pop %v3476
        %v3478 = vmul.f32 %v3455, 1.442695
        %v3479 = vpow.pop %v3478
        %v3480 = vmul.f32 %v3456, 1.442695
        %v3481 = vpow.pop %v3480
        %v3482 = vmul.f32 %v3457, 1.442695
        %v3483 = vpow.pop %v3482
        %v3484 = vmul.f32 %v3458, 1.442695
        %v3485 = vpow.pop %v3484
        %v3486 = vmul.f32 %v3459, 1.442695
        %v3487 = vpow.pop %v3486
        %v3488 = vmul.f32 %v3460, 1.442695
        %v3489 = vpow.pop %v3488
        %v3490 = vmul.f32 %v3461, 1.442695
        %v3491 = vpow.pop %v3490
        %v3492 = vmul.f32 %v3462, 1.442695
        %v3493 = vpow.pop %v3492
        %v3494 = vmul.f32 %v3463, 1.442695
        %v3495 = vpow.pop %v3494
        %3496 = vadd.xlane.f32.xlu0 %v3465
        %v3497 = vpop.xlane.xlu0 %3496
        %3498 = vadd.xlane.f32.xlu0 %v3467
        %v3499 = vpop.xlane.xlu0 %3498
        %3500 = vadd.xlane.f32.xlu0 %v3469
        %v3501 = vpop.xlane.xlu0 %3500
        %3502 = vadd.xlane.f32.xlu0 %v3471
        %v3503 = vpop.xlane.xlu0 %3502
        %3504 = vadd.xlane.f32.xlu0 %v3473
        %v3505 = vpop.xlane.xlu0 %3504
        %3506 = vadd.xlane.f32.xlu0 %v3475
        %v3507 = vpop.xlane.xlu0 %3506
        %3508 = vadd.xlane.f32.xlu0 %v3477
        %v3509 = vpop.xlane.xlu0 %3508
        %3510 = vadd.xlane.f32.xlu0 %v3479
        %v3511 = vpop.xlane.xlu0 %3510
        %3512 = vadd.xlane.f32.xlu0 %v3481
        %v3513 = vpop.xlane.xlu0 %3512
        %3514 = vadd.xlane.f32.xlu0 %v3483
        %v3515 = vpop.xlane.xlu0 %3514
        %3516 = vadd.xlane.f32.xlu0 %v3485
        %v3517 = vpop.xlane.xlu0 %3516
        %3518 = vadd.xlane.f32.xlu0 %v3487
        %v3519 = vpop.xlane.xlu0 %3518
        %3520 = vadd.xlane.f32.xlu0 %v3489
        %v3521 = vpop.xlane.xlu0 %3520
        %3522 = vadd.xlane.f32.xlu0 %v3491
        %v3523 = vpop.xlane.xlu0 %3522
        %3524 = vadd.xlane.f32.xlu0 %v3493
        %v3525 = vpop.xlane.xlu0 %3524
        %3526 = vadd.xlane.f32.xlu0 %v3495
        %v3527 = vpop.xlane.xlu0 %3526
        %v3528 = vadd.f32 %v3497, %v3499
        %v3529 = vadd.f32 %v3528, %v3501
        %v3530 = vadd.f32 %v3529, %v3503
        %v3531 = vadd.f32 %v3530, %v3505
        %v3532 = vadd.f32 %v3531, %v3507
        %v3533 = vadd.f32 %v3532, %v3509
        %v3534 = vadd.f32 %v3533, %v3511
        %v3535 = vadd.f32 %v3534, %v3513
        %v3536 = vadd.f32 %v3535, %v3515
        %v3537 = vadd.f32 %v3536, %v3517
        %v3538 = vadd.f32 %v3537, %v3519
        %v3539 = vadd.f32 %v3538, %v3521
        %v3540 = vadd.f32 %v3539, %v3523
        %v3541 = vadd.f32 %v3540, %v3525
        %v3542 = vadd.f32 %v3541, %v3527
        %v3543 = vrot.slane %v3542, 4
        %v3544 = vadd.f32 %v3542, %v3543
        %v3545 = vrot.slane %v3544, 2
        %v3546 = vadd.f32 %v3544, %v3545
        %v3547 = vrot.slane %v3546, 1
        %v3548 = vadd.f32 %v3546, %v3547
        %v3549 = vsub.f32 0.0, %v3447
        %v3550 = vmul.f32 %v3549, 1.442695
        %v3551 = vpow.pop %v3550
        %v3552 = vadd.f32 %v3548, %v3551
        %v3553 = vlog2.pop %v3552
        %v3554 = vmul.f32 %v3553, 0.6931472
        %v3555 = vadd.f32 %v3447, %v3554
        %v3556 = vadd.f32 %v3393, %v3555
        %s3557 = scalar_lea.vmem %s571, 1
        %3558 = vst.msk [vmem:[%s3557] sm:$0x1] %vm2759, %v3556
        %s3559 = scalar_lea.vmem %s9, 2
        %v3560 = vld [vmem:[%s3559] sm:$0x1]
        %v3562 = vlaneseq
        %v3563 = vshrl.u32 %v3562, 7
        %v3564 = vsub.s32 0, %v3563
        %v3565 = vrot.slane %v3560, %v3564
        %v3567 = vmul.f32 %v1461, %v3565
        %v3568 = vmul.f32 %v1462, %v3565
        %v3569 = vmul.f32 %v1463, %v3565
        %v3570 = vmul.f32 %v1464, %v3565
        %v3571 = vmul.f32 %v1465, %v3565
        %v3572 = vmul.f32 %v1466, %v3565
        %v3573 = vmul.f32 %v1467, %v3565
        %v3574 = vmul.f32 %v1468, %v3565
        %v3575 = vmul.f32 %v1469, %v3565
        %v3576 = vmul.f32 %v1470, %v3565
        %v3577 = vmul.f32 %v1471, %v3565
        %v3578 = vmul.f32 %v1472, %v3565
        %v3579 = vmul.f32 %v1473, %v3565
        %v3580 = vmul.f32 %v1474, %v3565
        %v3581 = vmul.f32 %v1475, %v3565
        %v3582 = vmul.f32 %v1476, %v3565
        %3583 = vadd.xlane.f32.xlu0 %v3567
        %v3584 = vpop.xlane.xlu0 %3583
        %3585 = vadd.xlane.f32.xlu0 %v3568
        %v3586 = vpop.xlane.xlu0 %3585
        %3587 = vadd.xlane.f32.xlu0 %v3569
        %v3588 = vpop.xlane.xlu0 %3587
        %3589 = vadd.xlane.f32.xlu0 %v3570
        %v3590 = vpop.xlane.xlu0 %3589
        %3591 = vadd.xlane.f32.xlu0 %v3571
        %v3592 = vpop.xlane.xlu0 %3591
        %3593 = vadd.xlane.f32.xlu0 %v3572
        %v3594 = vpop.xlane.xlu0 %3593
        %3595 = vadd.xlane.f32.xlu0 %v3573
        %v3596 = vpop.xlane.xlu0 %3595
        %3597 = vadd.xlane.f32.xlu0 %v3574
        %v3598 = vpop.xlane.xlu0 %3597
        %3599 = vadd.xlane.f32.xlu0 %v3575
        %v3600 = vpop.xlane.xlu0 %3599
        %3601 = vadd.xlane.f32.xlu0 %v3576
        %v3602 = vpop.xlane.xlu0 %3601
        %3603 = vadd.xlane.f32.xlu0 %v3577
        %v3604 = vpop.xlane.xlu0 %3603
        %3605 = vadd.xlane.f32.xlu0 %v3578
        %v3606 = vpop.xlane.xlu0 %3605
        %3607 = vadd.xlane.f32.xlu0 %v3579
        %v3608 = vpop.xlane.xlu0 %3607
        %3609 = vadd.xlane.f32.xlu0 %v3580
        %v3610 = vpop.xlane.xlu0 %3609
        %3611 = vadd.xlane.f32.xlu0 %v3581
        %v3612 = vpop.xlane.xlu0 %3611
        %3613 = vadd.xlane.f32.xlu0 %v3582
        %v3614 = vpop.xlane.xlu0 %3613
        %s3615 = scalar_lea.vmem %s10, 2
        %v3616 = vld [vmem:[%s3615] sm:$0x1]
        %v3618 = vlaneseq
        %v3619 = vshrl.u32 %v3618, 7
        %v3620 = vsub.s32 0, %v3619
        %v3621 = vrot.slane %v3616, %v3620
        %v3623 = vadd.f32 %v3584, %v3621
        %v3624 = vadd.f32 %v3586, %v3621
        %v3625 = vadd.f32 %v3588, %v3621
        %v3626 = vadd.f32 %v3590, %v3621
        %v3627 = vadd.f32 %v3592, %v3621
        %v3628 = vadd.f32 %v3594, %v3621
        %v3629 = vadd.f32 %v3596, %v3621
        %v3630 = vadd.f32 %v3598, %v3621
        %v3631 = vadd.f32 %v3600, %v3621
        %v3632 = vadd.f32 %v3602, %v3621
        %v3633 = vadd.f32 %v3604, %v3621
        %v3634 = vadd.f32 %v3606, %v3621
        %v3635 = vadd.f32 %v3608, %v3621
        %v3636 = vadd.f32 %v3610, %v3621
        %v3637 = vadd.f32 %v3612, %v3621
        %v3638 = vadd.f32 %v3614, %v3621
        %3640 = vset.pattern.permute.xlu0 0
        %3641 = vperm.xlu0 %3640, %v3623
        %v3642 = vpop.permute.xlu0 %3641
        %3645 = vset.pattern.permute.xlu0 0
        %3646 = vperm.xlu0 %3645, %v3624
        %v3647 = vpop.permute.xlu0 %3646
        %3650 = vset.pattern.permute.xlu0 0
        %3651 = vperm.xlu0 %3650, %v3625
        %v3652 = vpop.permute.xlu0 %3651
        %3655 = vset.pattern.permute.xlu0 0
        %3656 = vperm.xlu0 %3655, %v3626
        %v3657 = vpop.permute.xlu0 %3656
        %3660 = vset.pattern.permute.xlu0 0
        %3661 = vperm.xlu0 %3660, %v3627
        %v3662 = vpop.permute.xlu0 %3661
        %3665 = vset.pattern.permute.xlu0 0
        %3666 = vperm.xlu0 %3665, %v3628
        %v3667 = vpop.permute.xlu0 %3666
        %3670 = vset.pattern.permute.xlu0 0
        %3671 = vperm.xlu0 %3670, %v3629
        %v3672 = vpop.permute.xlu0 %3671
        %3675 = vset.pattern.permute.xlu0 0
        %3676 = vperm.xlu0 %3675, %v3630
        %v3677 = vpop.permute.xlu0 %3676
        %3680 = vset.pattern.permute.xlu0 0
        %3681 = vperm.xlu0 %3680, %v3631
        %v3682 = vpop.permute.xlu0 %3681
        %3685 = vset.pattern.permute.xlu0 0
        %3686 = vperm.xlu0 %3685, %v3632
        %v3687 = vpop.permute.xlu0 %3686
        %3690 = vset.pattern.permute.xlu0 0
        %3691 = vperm.xlu0 %3690, %v3633
        %v3692 = vpop.permute.xlu0 %3691
        %3695 = vset.pattern.permute.xlu0 0
        %3696 = vperm.xlu0 %3695, %v3634
        %v3697 = vpop.permute.xlu0 %3696
        %3700 = vset.pattern.permute.xlu0 0
        %3701 = vperm.xlu0 %3700, %v3635
        %v3702 = vpop.permute.xlu0 %3701
        %3705 = vset.pattern.permute.xlu0 0
        %3706 = vperm.xlu0 %3705, %v3636
        %v3707 = vpop.permute.xlu0 %3706
        %3710 = vset.pattern.permute.xlu0 0
        %3711 = vperm.xlu0 %3710, %v3637
        %v3712 = vpop.permute.xlu0 %3711
        %3715 = vset.pattern.permute.xlu0 0
        %3716 = vperm.xlu0 %3715, %v3638
        %v3717 = vpop.permute.xlu0 %3716
        %3719 = vmatprep.subr.bf16.mxu0 0
        %3720 = vmatpush1.bf16.xpose.msra.mxu0 %v1533
        %3721 = vmatprep.subr.bf16.mxu0 0
        %3722 = vmatpush1.bf16.xpose.msra.mxu0 %v1534
        %3723 = vmatprep.subr.bf16.mxu0 0
        %3724 = vmatpush1.bf16.xpose.msra.mxu0 %v1535
        %3725 = vmatprep.subr.bf16.mxu0 0
        %3726 = vmatpush1.bf16.xpose.msra.mxu0 %v1536
        %3727 = vmatprep.subr.bf16.mxu0 0
        %3728 = vmatpush1.bf16.xpose.msra.mxu0 %v1537
        %3729 = vmatprep.subr.bf16.mxu0 0
        %3730 = vmatpush1.bf16.xpose.msra.mxu0 %v1538
        %3731 = vmatprep.subr.bf16.mxu0 0
        %3732 = vmatpush1.bf16.xpose.msra.mxu0 %v1539
        %3733 = vmatprep.subr.bf16.mxu0 0
        %3734 = vmatpush1.bf16.xpose.msra.mxu0 %v1540
        %3735 = vmatprep.subr.bf16.mxu0 0
        %3736 = vmatpush1.bf16.xpose.msra.mxu0 0
        %3737 = vmatprep.subr.bf16.mxu0 0
        %3738 = vmatpush1.bf16.xpose.msra.mxu0 0
        %3739 = vmatprep.subr.bf16.mxu0 0
        %3740 = vmatpush1.bf16.xpose.msra.mxu0 0
        %3741 = vmatprep.subr.bf16.mxu0 0
        %3742 = vmatpush1.bf16.xpose.msra.mxu0 0
        %3743 = vmatprep.subr.bf16.mxu0 0
        %3744 = vmatpush1.bf16.xpose.msra.mxu0 0
        %3745 = vmatprep.subr.bf16.mxu0 0
        %3746 = vmatpush1.bf16.xpose.msra.mxu0 0
        %3747 = vmatprep.subr.bf16.mxu0 0
        %3748 = vmatpush1.bf16.xpose.msra.mxu0 0
        %3749 = vmatprep.subr.bf16.mxu0 0
        %3750 = vmatpush1.bf16.xpose.msra.mxu0 0
        %3751 = vmatprep.mubr.bf16.mxu0 0
        %3752 = vmatmul.mubr.bf16.gmra.mrb[0].mxu0 %v1930
        %v3753 = vpop.f32.mrb[0].mxu0
        %v3754 = vadd.f32 %v3642, %v3753
        %v3755 = vpop.f32.mrb[0].mxu0
        %v3756 = vpop.f32.mrb[0].mxu0
        %v3757 = vadd.f32 %v3647, %v3756
        %v3758 = vpop.f32.mrb[0].mxu0
        %3759 = vmatprep.mubr.bf16.mxu0 0
        %3760 = vmatmul.mubr.bf16.gmra.mrb[0].mxu0 %v1933
        %v3761 = vpop.f32.mrb[0].mxu0
        %v3762 = vadd.f32 %v3652, %v3761
        %v3763 = vpop.f32.mrb[0].mxu0
        %v3764 = vpop.f32.mrb[0].mxu0
        %v3765 = vadd.f32 %v3657, %v3764
        %v3766 = vpop.f32.mrb[0].mxu0
        %3767 = vmatprep.mubr.bf16.mxu0 0
        %3768 = vmatmul.mubr.bf16.gmra.mrb[0].mxu0 %v1936
        %v3769 = vpop.f32.mrb[0].mxu0
        %v3770 = vadd.f32 %v3662, %v3769
        %v3771 = vpop.f32.mrb[0].mxu0
        %v3772 = vpop.f32.mrb[0].mxu0
        %v3773 = vadd.f32 %v3667, %v3772
        %v3774 = vpop.f32.mrb[0].mxu0
        %3775 = vmatprep.mubr.bf16.mxu0 0
        %3776 = vmatmul.mubr.bf16.gmra.mrb[0].mxu0 %v1939
        %v3777 = vpop.f32.mrb[0].mxu0
        %v3778 = vadd.f32 %v3672, %v3777
        %v3779 = vpop.f32.mrb[0].mxu0
        %v3780 = vpop.f32.mrb[0].mxu0
        %v3781 = vadd.f32 %v3677, %v3780
        %v3782 = vpop.f32.mrb[0].mxu0
        %3783 = vmatprep.mubr.bf16.mxu0 0
        %3784 = vmatmul.mubr.bf16.gmra.mrb[0].mxu0 %v1942
        %v3785 = vpop.f32.mrb[0].mxu0
        %v3786 = vadd.f32 %v3682, %v3785
        %v3787 = vpop.f32.mrb[0].mxu0
        %v3788 = vpop.f32.mrb[0].mxu0
        %v3789 = vadd.f32 %v3687, %v3788
        %v3790 = vpop.f32.mrb[0].mxu0
        %3791 = vmatprep.mubr.bf16.mxu0 0
        %3792 = vmatmul.mubr.bf16.gmra.mrb[0].mxu0 %v1945
        %v3793 = vpop.f32.mrb[0].mxu0
        %v3794 = vadd.f32 %v3692, %v3793
        %v3795 = vpop.f32.mrb[0].mxu0
        %v3796 = vpop.f32.mrb[0].mxu0
        %v3797 = vadd.f32 %v3697, %v3796
        %v3798 = vpop.f32.mrb[0].mxu0
        %3799 = vmatprep.mubr.bf16.mxu0 0
        %3800 = vmatmul.mubr.bf16.gmra.mrb[0].mxu0 %v1948
        %v3801 = vpop.f32.mrb[0].mxu0
        %v3802 = vadd.f32 %v3702, %v3801
        %v3803 = vpop.f32.mrb[0].mxu0
        %v3804 = vpop.f32.mrb[0].mxu0
        %v3805 = vadd.f32 %v3707, %v3804
        %v3806 = vpop.f32.mrb[0].mxu0
        %3807 = vmatprep.mubr.bf16.mxu0 0
        %3808 = vmatmul.mubr.bf16.gmra.mrb[0].mxu0 %v1951
        %v3809 = vpop.f32.mrb[0].mxu0
        %v3810 = vadd.f32 %v3712, %v3809
        %v3811 = vpop.f32.mrb[0].mxu0
        %v3812 = vpop.f32.mrb[0].mxu0
        %v3813 = vadd.f32 %v3717, %v3812
        %v3814 = vpop.f32.mrb[0].mxu0
        %3815 = vdwg.mxu0
        %v3816 = vmul.f32 %v3754, %v1957
        %v3817 = vmul.f32 %v3757, %v1957
        %v3818 = vmul.f32 %v3762, %v1957
        %v3819 = vmul.f32 %v3765, %v1957
        %v3820 = vmul.f32 %v3770, %v1957
        %v3821 = vmul.f32 %v3773, %v1957
        %v3822 = vmul.f32 %v3778, %v1957
        %v3823 = vmul.f32 %v3781, %v1957
        %v3824 = vmul.f32 %v3786, %v1957
        %v3825 = vmul.f32 %v3789, %v1957
        %v3826 = vmul.f32 %v3794, %v1957
        %v3827 = vmul.f32 %v3797, %v1957
        %v3828 = vmul.f32 %v3802, %v1957
        %v3829 = vmul.f32 %v3805, %v1957
        %v3830 = vmul.f32 %v3810, %v1957
        %v3831 = vmul.f32 %v3813, %v1957
        %v3832 = vsub.f32 %v3816, %v1965
        %v3833 = vsub.f32 %v3817, %v1965
        %v3834 = vsub.f32 %v3818, %v1965
        %v3835 = vsub.f32 %v3819, %v1965
        %v3836 = vsub.f32 %v3820, %v1965
        %v3837 = vsub.f32 %v3821, %v1965
        %v3838 = vsub.f32 %v3822, %v1965
        %v3839 = vsub.f32 %v3823, %v1965
        %v3840 = vsub.f32 %v3824, %v1965
        %v3841 = vsub.f32 %v3825, %v1965
        %v3842 = vsub.f32 %v3826, %v1965
        %v3843 = vsub.f32 %v3827, %v1965
        %v3844 = vsub.f32 %v3828, %v1965
        %v3845 = vsub.f32 %v3829, %v1965
        %v3846 = vsub.f32 %v3830, %v1965
        %v3847 = vsub.f32 %v3831, %v1965
        %s3848 = scalar_lea.vmem %s561, 256 [#allocation14]
        %3849 = vst [vmem:[%s3848] sm:$0xff] %v3832
        %3850 = vst [vmem:[%s3848 + $0x8] sm:$0xff] %v3833
        %3851 = vst [vmem:[%s3848 + $0x10] sm:$0xff] %v3834
        %3852 = vst [vmem:[%s3848 + $0x18] sm:$0xff] %v3835
        %3853 = vst [vmem:[%s3848 + $0x20] sm:$0xff] %v3836
        %3854 = vst [vmem:[%s3848 + $0x28] sm:$0xff] %v3837
        %3855 = vst [vmem:[%s3848 + $0x30] sm:$0xff] %v3838
        %3856 = vst [vmem:[%s3848 + $0x38] sm:$0xff] %v3839
        %3857 = vst [vmem:[%s3848 + $0x40] sm:$0xff] %v3840
        %3858 = vst [vmem:[%s3848 + $0x48] sm:$0xff] %v3841
        %3859 = vst [vmem:[%s3848 + $0x50] sm:$0xff] %v3842
        %3860 = vst [vmem:[%s3848 + $0x58] sm:$0xff] %v3843
        %3861 = vst [vmem:[%s3848 + $0x60] sm:$0xff] %v3844
        %3862 = vst [vmem:[%s3848 + $0x68] sm:$0xff] %v3845
        %3863 = vst [vmem:[%s3848 + $0x70] sm:$0xff] %v3846
        %3864 = vst [vmem:[%s3848 + $0x78] sm:$0xff] %v3847
        %s3865 = scalar_lea.vmem %s498, 64 [#allocation7]
        %v3866 = vld [vmem:[%s3865] sm:$0xff]
        %v3867 = vld [vmem:[%s3865 + $0x8] sm:$0xff]
        %v3868 = vld [vmem:[%s3865 + $0x10] sm:$0xff]
        %v3869 = vld [vmem:[%s3865 + $0x18] sm:$0xff]
        %v3870 = vunpack.c.0.s8 %v3866
        %v3871 = vunpack.c.1.s8 %v3866
        %v3872 = vunpack.c.2.s8 %v3866
        %v3873 = vunpack.c.3.s8 %v3866
        %v3874 = vunpack.c.0.s8 %v3867
        %v3875 = vunpack.c.1.s8 %v3867
        %v3876 = vunpack.c.2.s8 %v3867
        %v3877 = vunpack.c.3.s8 %v3867
        %v3878 = vunpack.c.0.s8 %v3868
        %v3879 = vunpack.c.1.s8 %v3868
        %v3880 = vunpack.c.2.s8 %v3868
        %v3881 = vunpack.c.3.s8 %v3868
        %v3882 = vunpack.c.0.s8 %v3869
        %v3883 = vunpack.c.1.s8 %v3869
        %v3884 = vunpack.c.2.s8 %v3869
        %v3885 = vunpack.c.3.s8 %v3869
        %v3886 = vcvt.s32.f32 %v3870
        %v3887 = vcvt.s32.f32 %v3871
        %v3888 = vcvt.s32.f32 %v3872
        %v3889 = vcvt.s32.f32 %v3873
        %v3890 = vcvt.s32.f32 %v3874
        %v3891 = vcvt.s32.f32 %v3875
        %v3892 = vcvt.s32.f32 %v3876
        %v3893 = vcvt.s32.f32 %v3877
        %v3894 = vcvt.s32.f32 %v3878
        %v3895 = vcvt.s32.f32 %v3879
        %v3896 = vcvt.s32.f32 %v3880
        %v3897 = vcvt.s32.f32 %v3881
        %v3898 = vcvt.s32.f32 %v3882
        %v3899 = vcvt.s32.f32 %v3883
        %v3900 = vcvt.s32.f32 %v3884
        %v3901 = vcvt.s32.f32 %v3885
        %v3902 = vmul.f32 %v3886, 2.0
        %v3903 = vmul.f32 %v3887, 2.0
        %v3904 = vmul.f32 %v3888, 2.0
        %v3905 = vmul.f32 %v3889, 2.0
        %v3906 = vmul.f32 %v3890, 2.0
        %v3907 = vmul.f32 %v3891, 2.0
        %v3908 = vmul.f32 %v3892, 2.0
        %v3909 = vmul.f32 %v3893, 2.0
        %v3910 = vmul.f32 %v3894, 2.0
        %v3911 = vmul.f32 %v3895, 2.0
        %v3912 = vmul.f32 %v3896, 2.0
        %v3913 = vmul.f32 %v3897, 2.0
        %v3914 = vmul.f32 %v3898, 2.0
        %v3915 = vmul.f32 %v3899, 2.0
        %v3916 = vmul.f32 %v3900, 2.0
        %v3917 = vmul.f32 %v3901, 2.0
        %v3918 = vsub.f32 1.0, %v3902
        %v3919 = vsub.f32 1.0, %v3903
        %v3920 = vsub.f32 1.0, %v3904
        %v3921 = vsub.f32 1.0, %v3905
        %v3922 = vsub.f32 1.0, %v3906
        %v3923 = vsub.f32 1.0, %v3907
        %v3924 = vsub.f32 1.0, %v3908
        %v3925 = vsub.f32 1.0, %v3909
        %v3926 = vsub.f32 1.0, %v3910
        %v3927 = vsub.f32 1.0, %v3911
        %v3928 = vsub.f32 1.0, %v3912
        %v3929 = vsub.f32 1.0, %v3913
        %v3930 = vsub.f32 1.0, %v3914
        %v3931 = vsub.f32 1.0, %v3915
        %v3932 = vsub.f32 1.0, %v3916
        %v3933 = vsub.f32 1.0, %v3917
        %v3934 = vmul.f32 %v3918, %v3832
        %v3935 = vmul.f32 %v3919, %v3833
        %v3936 = vmul.f32 %v3920, %v3834
        %v3937 = vmul.f32 %v3921, %v3835
        %v3938 = vmul.f32 %v3922, %v3836
        %v3939 = vmul.f32 %v3923, %v3837
        %v3940 = vmul.f32 %v3924, %v3838
        %v3941 = vmul.f32 %v3925, %v3839
        %v3942 = vmul.f32 %v3926, %v3840
        %v3943 = vmul.f32 %v3927, %v3841
        %v3944 = vmul.f32 %v3928, %v3842
        %v3945 = vmul.f32 %v3929, %v3843
        %v3946 = vmul.f32 %v3930, %v3844
        %v3947 = vmul.f32 %v3931, %v3845
        %v3948 = vmul.f32 %v3932, %v3846
        %v3949 = vmul.f32 %v3933, %v3847
        %v3950 = vmul.f32 %v3886, 1e+12
        %v3951 = vmul.f32 %v3887, 1e+12
        %v3952 = vmul.f32 %v3888, 1e+12
        %v3953 = vmul.f32 %v3889, 1e+12
        %v3954 = vmul.f32 %v3890, 1e+12
        %v3955 = vmul.f32 %v3891, 1e+12
        %v3956 = vmul.f32 %v3892, 1e+12
        %v3957 = vmul.f32 %v3893, 1e+12
        %v3958 = vmul.f32 %v3894, 1e+12
        %v3959 = vmul.f32 %v3895, 1e+12
        %v3960 = vmul.f32 %v3896, 1e+12
        %v3961 = vmul.f32 %v3897, 1e+12
        %v3962 = vmul.f32 %v3898, 1e+12
        %v3963 = vmul.f32 %v3899, 1e+12
        %v3964 = vmul.f32 %v3900, 1e+12
        %v3965 = vmul.f32 %v3901, 1e+12
        %v3966 = vsub.f32 %v3934, %v3950
        %v3967 = vsub.f32 %v3935, %v3951
        %v3968 = vsub.f32 %v3936, %v3952
        %v3969 = vsub.f32 %v3937, %v3953
        %v3970 = vsub.f32 %v3938, %v3954
        %v3971 = vsub.f32 %v3939, %v3955
        %v3972 = vsub.f32 %v3940, %v3956
        %v3973 = vsub.f32 %v3941, %v3957
        %v3974 = vsub.f32 %v3942, %v3958
        %v3975 = vsub.f32 %v3943, %v3959
        %v3976 = vsub.f32 %v3944, %v3960
        %v3977 = vsub.f32 %v3945, %v3961
        %v3978 = vsub.f32 %v3946, %v3962
        %v3979 = vsub.f32 %v3947, %v3963
        %v3980 = vsub.f32 %v3948, %v3964
        %v3981 = vsub.f32 %v3949, %v3965
        %v3982 = vsub.f32 1.0, %v3886
        %v3983 = vsub.f32 1.0, %v3887
        %v3984 = vsub.f32 1.0, %v3888
        %v3985 = vsub.f32 1.0, %v3889
        %v3986 = vsub.f32 1.0, %v3890
        %v3987 = vsub.f32 1.0, %v3891
        %v3988 = vsub.f32 1.0, %v3892
        %v3989 = vsub.f32 1.0, %v3893
        %v3990 = vsub.f32 1.0, %v3894
        %v3991 = vsub.f32 1.0, %v3895
        %v3992 = vsub.f32 1.0, %v3896
        %v3993 = vsub.f32 1.0, %v3897
        %v3994 = vsub.f32 1.0, %v3898
        %v3995 = vsub.f32 1.0, %v3899
        %v3996 = vsub.f32 1.0, %v3900
        %v3997 = vsub.f32 1.0, %v3901
        %v3998 = vmul.f32 %v3982, 1e+12
        %v3999 = vmul.f32 %v3983, 1e+12
        %v4000 = vmul.f32 %v3984, 1e+12
        %v4001 = vmul.f32 %v3985, 1e+12
        %v4002 = vmul.f32 %v3986, 1e+12
        %v4003 = vmul.f32 %v3987, 1e+12
        %v4004 = vmul.f32 %v3988, 1e+12
        %v4005 = vmul.f32 %v3989, 1e+12
        %v4006 = vmul.f32 %v3990, 1e+12
        %v4007 = vmul.f32 %v3991, 1e+12
        %v4008 = vmul.f32 %v3992, 1e+12
        %v4009 = vmul.f32 %v3993, 1e+12
        %v4010 = vmul.f32 %v3994, 1e+12
        %v4011 = vmul.f32 %v3995, 1e+12
        %v4012 = vmul.f32 %v3996, 1e+12
        %v4013 = vmul.f32 %v3997, 1e+12
        %v4014 = vsub.f32 %v3934, %v3998
        %v4015 = vsub.f32 %v3935, %v3999
        %v4016 = vsub.f32 %v3936, %v4000
        %v4017 = vsub.f32 %v3937, %v4001
        %v4018 = vsub.f32 %v3938, %v4002
        %v4019 = vsub.f32 %v3939, %v4003
        %v4020 = vsub.f32 %v3940, %v4004
        %v4021 = vsub.f32 %v3941, %v4005
        %v4022 = vsub.f32 %v3942, %v4006
        %v4023 = vsub.f32 %v3943, %v4007
        %v4024 = vsub.f32 %v3944, %v4008
        %v4025 = vsub.f32 %v3945, %v4009
        %v4026 = vsub.f32 %v3946, %v4010
        %v4027 = vsub.f32 %v3947, %v4011
        %v4028 = vsub.f32 %v3948, %v4012
        %v4029 = vsub.f32 %v3949, %v4013
        %4030 = vmax.xlane.f32.xlu0 %v3966
        %v4031 = vpop.xlane.xlu0 %4030
        %4032 = vmax.xlane.f32.xlu0 %v3967
        %v4033 = vpop.xlane.xlu0 %4032
        %4034 = vmax.xlane.f32.xlu0 %v3968
        %v4035 = vpop.xlane.xlu0 %4034
        %4036 = vmax.xlane.f32.xlu0 %v3969
        %v4037 = vpop.xlane.xlu0 %4036
        %4038 = vmax.xlane.f32.xlu0 %v3970
        %v4039 = vpop.xlane.xlu0 %4038
        %4040 = vmax.xlane.f32.xlu0 %v3971
        %v4041 = vpop.xlane.xlu0 %4040
        %4042 = vmax.xlane.f32.xlu0 %v3972
        %v4043 = vpop.xlane.xlu0 %4042
        %4044 = vmax.xlane.f32.xlu0 %v3973
        %v4045 = vpop.xlane.xlu0 %4044
        %4046 = vmax.xlane.f32.xlu0 %v3974
        %v4047 = vpop.xlane.xlu0 %4046
        %4048 = vmax.xlane.f32.xlu0 %v3975
        %v4049 = vpop.xlane.xlu0 %4048
        %4050 = vmax.xlane.f32.xlu0 %v3976
        %v4051 = vpop.xlane.xlu0 %4050
        %4052 = vmax.xlane.f32.xlu0 %v3977
        %v4053 = vpop.xlane.xlu0 %4052
        %4054 = vmax.xlane.f32.xlu0 %v3978
        %v4055 = vpop.xlane.xlu0 %4054
        %4056 = vmax.xlane.f32.xlu0 %v3979
        %v4057 = vpop.xlane.xlu0 %4056
        %4058 = vmax.xlane.f32.xlu0 %v3980
        %v4059 = vpop.xlane.xlu0 %4058
        %4060 = vmax.xlane.f32.xlu0 %v3981
        %v4061 = vpop.xlane.xlu0 %4060
        %v4062 = vmax.f32 %v4031, %v4039
        %v4063 = vmax.f32 %v4033, %v4041
        %v4064 = vmax.f32 %v4035, %v4043
        %v4065 = vmax.f32 %v4037, %v4045
        %v4066 = vmax.f32 %v4062, %v4047
        %v4067 = vmax.f32 %v4063, %v4049
        %v4068 = vmax.f32 %v4064, %v4051
        %v4069 = vmax.f32 %v4065, %v4053
        %v4070 = vmax.f32 %v4066, %v4055
        %v4071 = vmax.f32 %v4067, %v4057
        %v4072 = vmax.f32 %v4068, %v4059
        %v4073 = vmax.f32 %v4069, %v4061
        %v4074 = vmax.f32 %v4070, %v4071
        %v4075 = vmax.f32 %v4072, %v4073
        %v4076 = vmax.f32 %v4074, %v4075
        %v4077 = vrot.slane %v4076, 4
        %v4078 = vmax.f32 %v4076, %v4077
        %v4079 = vrot.slane %v4078, 2
        %v4080 = vmax.f32 %v4078, %v4079
        %v4081 = vrot.slane %v4080, 1
        %v4082 = vmax.f32 %v4080, %v4081
        %v4083 = vmax.f32 %v4082, 0.0
        %v4084 = vsub.f32 %v3966, %v4083
        %v4085 = vsub.f32 %v3967, %v4083
        %v4086 = vsub.f32 %v3968, %v4083
        %v4087 = vsub.f32 %v3969, %v4083
        %v4088 = vsub.f32 %v3970, %v4083
        %v4089 = vsub.f32 %v3971, %v4083
        %v4090 = vsub.f32 %v3972, %v4083
        %v4091 = vsub.f32 %v3973, %v4083
        %v4092 = vsub.f32 %v3974, %v4083
        %v4093 = vsub.f32 %v3975, %v4083
        %v4094 = vsub.f32 %v3976, %v4083
        %v4095 = vsub.f32 %v3977, %v4083
        %v4096 = vsub.f32 %v3978, %v4083
        %v4097 = vsub.f32 %v3979, %v4083
        %v4098 = vsub.f32 %v3980, %v4083
        %v4099 = vsub.f32 %v3981, %v4083
        %v4100 = vmul.f32 %v4084, 1.442695
        %v4101 = vpow.pop %v4100
        %v4102 = vmul.f32 %v4085, 1.442695
        %v4103 = vpow.pop %v4102
        %v4104 = vmul.f32 %v4086, 1.442695
        %v4105 = vpow.pop %v4104
        %v4106 = vmul.f32 %v4087, 1.442695
        %v4107 = vpow.pop %v4106
        %v4108 = vmul.f32 %v4088, 1.442695
        %v4109 = vpow.pop %v4108
        %v4110 = vmul.f32 %v4089, 1.442695
        %v4111 = vpow.pop %v4110
        %v4112 = vmul.f32 %v4090, 1.442695
        %v4113 = vpow.pop %v4112
        %v4114 = vmul.f32 %v4091, 1.442695
        %v4115 = vpow.pop %v4114
        %v4116 = vmul.f32 %v4092, 1.442695
        %v4117 = vpow.pop %v4116
        %v4118 = vmul.f32 %v4093, 1.442695
        %v4119 = vpow.pop %v4118
        %v4120 = vmul.f32 %v4094, 1.442695
        %v4121 = vpow.pop %v4120
        %v4122 = vmul.f32 %v4095, 1.442695
        %v4123 = vpow.pop %v4122
        %v4124 = vmul.f32 %v4096, 1.442695
        %v4125 = vpow.pop %v4124
        %v4126 = vmul.f32 %v4097, 1.442695
        %v4127 = vpow.pop %v4126
        %v4128 = vmul.f32 %v4098, 1.442695
        %v4129 = vpow.pop %v4128
        %v4130 = vmul.f32 %v4099, 1.442695
        %v4131 = vpow.pop %v4130
        %4132 = vadd.xlane.f32.xlu0 %v4101
        %v4133 = vpop.xlane.xlu0 %4132
        %4134 = vadd.xlane.f32.xlu0 %v4103
        %v4135 = vpop.xlane.xlu0 %4134
        %4136 = vadd.xlane.f32.xlu0 %v4105
        %v4137 = vpop.xlane.xlu0 %4136
        %4138 = vadd.xlane.f32.xlu0 %v4107
        %v4139 = vpop.xlane.xlu0 %4138
        %4140 = vadd.xlane.f32.xlu0 %v4109
        %v4141 = vpop.xlane.xlu0 %4140
        %4142 = vadd.xlane.f32.xlu0 %v4111
        %v4143 = vpop.xlane.xlu0 %4142
        %4144 = vadd.xlane.f32.xlu0 %v4113
        %v4145 = vpop.xlane.xlu0 %4144
        %4146 = vadd.xlane.f32.xlu0 %v4115
        %v4147 = vpop.xlane.xlu0 %4146
        %4148 = vadd.xlane.f32.xlu0 %v4117
        %v4149 = vpop.xlane.xlu0 %4148
        %4150 = vadd.xlane.f32.xlu0 %v4119
        %v4151 = vpop.xlane.xlu0 %4150
        %4152 = vadd.xlane.f32.xlu0 %v4121
        %v4153 = vpop.xlane.xlu0 %4152
        %4154 = vadd.xlane.f32.xlu0 %v4123
        %v4155 = vpop.xlane.xlu0 %4154
        %4156 = vadd.xlane.f32.xlu0 %v4125
        %v4157 = vpop.xlane.xlu0 %4156
        %4158 = vadd.xlane.f32.xlu0 %v4127
        %v4159 = vpop.xlane.xlu0 %4158
        %4160 = vadd.xlane.f32.xlu0 %v4129
        %v4161 = vpop.xlane.xlu0 %4160
        %4162 = vadd.xlane.f32.xlu0 %v4131
        %v4163 = vpop.xlane.xlu0 %4162
        %v4164 = vadd.f32 %v4133, %v4135
        %v4165 = vadd.f32 %v4164, %v4137
        %v4166 = vadd.f32 %v4165, %v4139
        %v4167 = vadd.f32 %v4166, %v4141
        %v4168 = vadd.f32 %v4167, %v4143
        %v4169 = vadd.f32 %v4168, %v4145
        %v4170 = vadd.f32 %v4169, %v4147
        %v4171 = vadd.f32 %v4170, %v4149
        %v4172 = vadd.f32 %v4171, %v4151
        %v4173 = vadd.f32 %v4172, %v4153
        %v4174 = vadd.f32 %v4173, %v4155
        %v4175 = vadd.f32 %v4174, %v4157
        %v4176 = vadd.f32 %v4175, %v4159
        %v4177 = vadd.f32 %v4176, %v4161
        %v4178 = vadd.f32 %v4177, %v4163
        %v4179 = vrot.slane %v4178, 4
        %v4180 = vadd.f32 %v4178, %v4179
        %v4181 = vrot.slane %v4180, 2
        %v4182 = vadd.f32 %v4180, %v4181
        %v4183 = vrot.slane %v4182, 1
        %v4184 = vadd.f32 %v4182, %v4183
        %v4185 = vsub.f32 0.0, %v4083
        %v4186 = vmul.f32 %v4185, 1.442695
        %v4187 = vpow.pop %v4186
        %v4188 = vadd.f32 %v4184, %v4187
        %v4189 = vlog2.pop %v4188
        %v4190 = vmul.f32 %v4189, 0.6931472
        %v4191 = vadd.f32 %v4083, %v4190
        %4192 = vmax.xlane.f32.xlu0 %v4014
        %v4193 = vpop.xlane.xlu0 %4192
        %4194 = vmax.xlane.f32.xlu0 %v4015
        %v4195 = vpop.xlane.xlu0 %4194
        %4196 = vmax.xlane.f32.xlu0 %v4016
        %v4197 = vpop.xlane.xlu0 %4196
        %4198 = vmax.xlane.f32.xlu0 %v4017
        %v4199 = vpop.xlane.xlu0 %4198
        %4200 = vmax.xlane.f32.xlu0 %v4018
        %v4201 = vpop.xlane.xlu0 %4200
        %4202 = vmax.xlane.f32.xlu0 %v4019
        %v4203 = vpop.xlane.xlu0 %4202
        %4204 = vmax.xlane.f32.xlu0 %v4020
        %v4205 = vpop.xlane.xlu0 %4204
        %4206 = vmax.xlane.f32.xlu0 %v4021
        %v4207 = vpop.xlane.xlu0 %4206
        %4208 = vmax.xlane.f32.xlu0 %v4022
        %v4209 = vpop.xlane.xlu0 %4208
        %4210 = vmax.xlane.f32.xlu0 %v4023
        %v4211 = vpop.xlane.xlu0 %4210
        %4212 = vmax.xlane.f32.xlu0 %v4024
        %v4213 = vpop.xlane.xlu0 %4212
        %4214 = vmax.xlane.f32.xlu0 %v4025
        %v4215 = vpop.xlane.xlu0 %4214
        %4216 = vmax.xlane.f32.xlu0 %v4026
        %v4217 = vpop.xlane.xlu0 %4216
        %4218 = vmax.xlane.f32.xlu0 %v4027
        %v4219 = vpop.xlane.xlu0 %4218
        %4220 = vmax.xlane.f32.xlu0 %v4028
        %v4221 = vpop.xlane.xlu0 %4220
        %4222 = vmax.xlane.f32.xlu0 %v4029
        %v4223 = vpop.xlane.xlu0 %4222
        %v4224 = vmax.f32 %v4193, %v4201
        %v4225 = vmax.f32 %v4195, %v4203
        %v4226 = vmax.f32 %v4197, %v4205
        %v4227 = vmax.f32 %v4199, %v4207
        %v4228 = vmax.f32 %v4224, %v4209
        %v4229 = vmax.f32 %v4225, %v4211
        %v4230 = vmax.f32 %v4226, %v4213
        %v4231 = vmax.f32 %v4227, %v4215
        %v4232 = vmax.f32 %v4228, %v4217
        %v4233 = vmax.f32 %v4229, %v4219
        %v4234 = vmax.f32 %v4230, %v4221
        %v4235 = vmax.f32 %v4231, %v4223
        %v4236 = vmax.f32 %v4232, %v4233
        %v4237 = vmax.f32 %v4234, %v4235
        %v4238 = vmax.f32 %v4236, %v4237
        %v4239 = vrot.slane %v4238, 4
        %v4240 = vmax.f32 %v4238, %v4239
        %v4241 = vrot.slane %v4240, 2
        %v4242 = vmax.f32 %v4240, %v4241
        %v4243 = vrot.slane %v4242, 1
        %v4244 = vmax.f32 %v4242, %v4243
        %v4245 = vmax.f32 %v4244, 0.0
        %v4246 = vsub.f32 %v4014, %v4245
        %v4247 = vsub.f32 %v4015, %v4245
        %v4248 = vsub.f32 %v4016, %v4245
        %v4249 = vsub.f32 %v4017, %v4245
        %v4250 = vsub.f32 %v4018, %v4245
        %v4251 = vsub.f32 %v4019, %v4245
        %v4252 = vsub.f32 %v4020, %v4245
        %v4253 = vsub.f32 %v4021, %v4245
        %v4254 = vsub.f32 %v4022, %v4245
        %v4255 = vsub.f32 %v4023, %v4245
        %v4256 = vsub.f32 %v4024, %v4245
        %v4257 = vsub.f32 %v4025, %v4245
        %v4258 = vsub.f32 %v4026, %v4245
        %v4259 = vsub.f32 %v4027, %v4245
        %v4260 = vsub.f32 %v4028, %v4245
        %v4261 = vsub.f32 %v4029, %v4245
        %v4262 = vmul.f32 %v4246, 1.442695
        %v4263 = vpow.pop %v4262
        %v4264 = vmul.f32 %v4247, 1.442695
        %v4265 = vpow.pop %v4264
        %v4266 = vmul.f32 %v4248, 1.442695
        %v4267 = vpow.pop %v4266
        %v4268 = vmul.f32 %v4249, 1.442695
        %v4269 = vpow.pop %v4268
        %v4270 = vmul.f32 %v4250, 1.442695
        %v4271 = vpow.pop %v4270
        %v4272 = vmul.f32 %v4251, 1.442695
        %v4273 = vpow.pop %v4272
        %v4274 = vmul.f32 %v4252, 1.442695
        %v4275 = vpow.pop %v4274
        %v4276 = vmul.f32 %v4253, 1.442695
        %v4277 = vpow.pop %v4276
        %v4278 = vmul.f32 %v4254, 1.442695
        %v4279 = vpow.pop %v4278
        %v4280 = vmul.f32 %v4255, 1.442695
        %v4281 = vpow.pop %v4280
        %v4282 = vmul.f32 %v4256, 1.442695
        %v4283 = vpow.pop %v4282
        %v4284 = vmul.f32 %v4257, 1.442695
        %v4285 = vpow.pop %v4284
        %v4286 = vmul.f32 %v4258, 1.442695
        %v4287 = vpow.pop %v4286
        %v4288 = vmul.f32 %v4259, 1.442695
        %v4289 = vpow.pop %v4288
        %v4290 = vmul.f32 %v4260, 1.442695
        %v4291 = vpow.pop %v4290
        %v4292 = vmul.f32 %v4261, 1.442695
        %v4293 = vpow.pop %v4292
        %4294 = vadd.xlane.f32.xlu0 %v4263
        %v4295 = vpop.xlane.xlu0 %4294
        %4296 = vadd.xlane.f32.xlu0 %v4265
        %v4297 = vpop.xlane.xlu0 %4296
        %4298 = vadd.xlane.f32.xlu0 %v4267
        %v4299 = vpop.xlane.xlu0 %4298
        %4300 = vadd.xlane.f32.xlu0 %v4269
        %v4301 = vpop.xlane.xlu0 %4300
        %4302 = vadd.xlane.f32.xlu0 %v4271
        %v4303 = vpop.xlane.xlu0 %4302
        %4304 = vadd.xlane.f32.xlu0 %v4273
        %v4305 = vpop.xlane.xlu0 %4304
        %4306 = vadd.xlane.f32.xlu0 %v4275
        %v4307 = vpop.xlane.xlu0 %4306
        %4308 = vadd.xlane.f32.xlu0 %v4277
        %v4309 = vpop.xlane.xlu0 %4308
        %4310 = vadd.xlane.f32.xlu0 %v4279
        %v4311 = vpop.xlane.xlu0 %4310
        %4312 = vadd.xlane.f32.xlu0 %v4281
        %v4313 = vpop.xlane.xlu0 %4312
        %4314 = vadd.xlane.f32.xlu0 %v4283
        %v4315 = vpop.xlane.xlu0 %4314
        %4316 = vadd.xlane.f32.xlu0 %v4285
        %v4317 = vpop.xlane.xlu0 %4316
        %4318 = vadd.xlane.f32.xlu0 %v4287
        %v4319 = vpop.xlane.xlu0 %4318
        %4320 = vadd.xlane.f32.xlu0 %v4289
        %v4321 = vpop.xlane.xlu0 %4320
        %4322 = vadd.xlane.f32.xlu0 %v4291
        %v4323 = vpop.xlane.xlu0 %4322
        %4324 = vadd.xlane.f32.xlu0 %v4293
        %v4325 = vpop.xlane.xlu0 %4324
        %v4326 = vadd.f32 %v4295, %v4297
        %v4327 = vadd.f32 %v4326, %v4299
        %v4328 = vadd.f32 %v4327, %v4301
        %v4329 = vadd.f32 %v4328, %v4303
        %v4330 = vadd.f32 %v4329, %v4305
        %v4331 = vadd.f32 %v4330, %v4307
        %v4332 = vadd.f32 %v4331, %v4309
        %v4333 = vadd.f32 %v4332, %v4311
        %v4334 = vadd.f32 %v4333, %v4313
        %v4335 = vadd.f32 %v4334, %v4315
        %v4336 = vadd.f32 %v4335, %v4317
        %v4337 = vadd.f32 %v4336, %v4319
        %v4338 = vadd.f32 %v4337, %v4321
        %v4339 = vadd.f32 %v4338, %v4323
        %v4340 = vadd.f32 %v4339, %v4325
        %v4341 = vrot.slane %v4340, 4
        %v4342 = vadd.f32 %v4340, %v4341
        %v4343 = vrot.slane %v4342, 2
        %v4344 = vadd.f32 %v4342, %v4343
        %v4345 = vrot.slane %v4344, 1
        %v4346 = vadd.f32 %v4344, %v4345
        %v4347 = vsub.f32 0.0, %v4245
        %v4348 = vmul.f32 %v4347, 1.442695
        %v4349 = vpow.pop %v4348
        %v4350 = vadd.f32 %v4346, %v4349
        %v4351 = vlog2.pop %v4350
        %v4352 = vmul.f32 %v4351, 0.6931472
        %v4353 = vadd.f32 %v4245, %v4352
        %v4354 = vadd.f32 %v4191, %v4353
        %s4355 = scalar_lea.vmem %s571, 2
        %4356 = vst.msk [vmem:[%s4355] sm:$0x1] %vm2759, %v4354
        %s4357 = sand.u32 %s289, 1
        %s4358 = scalar_lea.sflag [#allocation4], %s4357
        %s4359 = sand.u32 %s289, 1
        %s4360 = smul.addr %s4359, 384
        %s4361 = scalar_lea.vmem [#allocation14], %s4360
        %p4362 = scmp.lt.s32.totalorder %s35, 1
        %s4363 = scalar_select %p4362, %s35, 1
        %s4364 = smul.addr %s4363, 3
        %s4365 = scalar_lea.vmem %s12, %s4364
        // Predicated region
        $region93: #{tpu_custom_call.1} parent=63 // pred_check
          %p4366 = pneg %p299
        $region94: #{tpu_custom_call.1} parent=63 // pred_check_branch
          %4368 = sbr.rel (%p4366) target = $region96
        $region95: #{tpu_custom_call.1} parent=63 // pred_region
          %s4370 = ssub.s32 6144, 6144
          %4371 = vsyncadd %s4358, %s4370
          %s4372 = smul.addr %s35, 48
          %s4373 = smul.addr %s4372, 128
          %s4374 = scalar_lea.hbm %s11, %s4373
          %s4375 = sshll.u32 %s4361, 4
          %s4376 = int_to_ptr.vmem [resolvable:$true] %s4375
          %4381 = dma.vmem_to_hbm [thread:$0]  %s4376, 6144, %s4374, %s4358, 128, 128, 8
        $region96: #{tpu_custom_call.1} parent=63 // pred_fallthru
          _
        // Predicated region
        $region97: #{tpu_custom_call.1} parent=63 // pred_check
          %p4382 = pneg %p325
        $region98: #{tpu_custom_call.1} parent=63 // pred_check_branch
          %4384 = sbr.rel (%p4382) target = $region100
        $region99: #{tpu_custom_call.1} parent=63 // pred_region
          _
        $region100: #{tpu_custom_call.1} parent=63 // pred_fallthru
          _
      $region64: #{tpu_custom_call.1} parent=5 // pred_fallthru
        _
      %p4385 = scmp.le.s32.totalorder 2, %s30
      // Predicated region
      $region101: #{tpu_custom_call.1} parent=5 // pred_check
        %p4386 = pneg %p4385
      $region102: #{tpu_custom_call.1} parent=5 // pred_check_branch
        %4388 = sbr.rel (%p4386) target = $region104
      $region103: #{tpu_custom_call.1} parent=5 // pred_region
        %s4389 = ssub.s32 %s30, 2
        // Predicated region
        $region105: #{tpu_custom_call.1} parent=103 // pred_check
          %p4390 = pneg %p305
        $region106: #{tpu_custom_call.1} parent=103 // pred_check_branch
          %4392 = sbr.rel (%p4390) target = $region108
        $region107: #{tpu_custom_call.1} parent=103 // pred_region
          %s4393 = sand.u32 %s290, 1
          %s4394 = scalar_lea.sflag [#allocation4], %s4393
          %s4395 = sand.u32 %s290, 1
          %s4396 = smul.addr %s4395, 384
          %s4397 = scalar_lea.vmem [#allocation14], %s4396
          %4398 = dma.done %s4394, 6144
        $region108: #{tpu_custom_call.1} parent=103 // pred_fallthru
          _
        // Predicated region
        $region109: #{tpu_custom_call.1} parent=103 // pred_check
          %p4399 = pneg %p331
        $region110: #{tpu_custom_call.1} parent=103 // pred_check_branch
          %4401 = sbr.rel (%p4399) target = $region112
        $region111: #{tpu_custom_call.1} parent=103 // pred_region
          %p4402 = scmp.lt.s32.totalorder %s36, 1
          %s4403 = scalar_select %p4402, %s36, 1
          %s4404 = smul.addr %s4403, 3
          %s4405 = scalar_lea.vmem %s12, %s4404
        $region112: #{tpu_custom_call.1} parent=103 // pred_fallthru
          _
      $region104: #{tpu_custom_call.1} parent=5 // pred_fallthru
        _
    $region6: #{tpu_custom_call.1} parent=1 // loop_footer
      %s34 = sadd.s32 1, %s30
    $region7: #{tpu_custom_call.1} parent=1 // loop_footer_branch
      %29 = sbr.rel target = $region3
    $region8: #{tpu_custom_call.1} parent=1 // loop_exit
      _
    %4406 = vsyncpa [#allocation3], 1
    %s4407 = scalar_lea.sflag [#allocation3], 1
    %4408 = vsyncpa %s4407, 1
    %4409 = vsyncpa [#allocation6], 1
    %s4410 = scalar_lea.sflag [#allocation6], 1
    %4411 = vsyncpa %s4410, 1
    %4412 = vsyncpa [#allocation9], 1
    %4413 = vsyncpa [#allocation12], 1
    %4414 = vsyncpa [#allocation4], 1
    %s4415 = scalar_lea.sflag [#allocation4], 1
    %4416 = vsyncpa %s4415, 1

</llo_original>
